<compile_context>
chip_gen: v5e
topology: v5e:2x2
jax: 0.10.0
libtpu: 0.0.40
codegen_flags: <defaults>
</compile_context>

<pallas_src>
import functools

import jax
import jax.numpy as jnp
import numpy as np
from jax import lax
from jax.experimental import pallas as pl
from jax.experimental.pallas import tpu as pltpu


def _round_up(v, m):
    return ((v + m - 1) // m) * m


def _vmem_budget_bytes():
    """Per-generation usable VMEM budget (v5e/v6e ~96 MiB, v7x ~48 MiB)."""
    try:
        cap = int(pltpu.get_tpu_info().vmem_capacity_bytes)
    except Exception:                      # conservative fallback if query unavailable
        cap = 64 << 20
    return (cap * 3) // 4


@functools.partial(jax.jit,
                   static_argnames=("kernel_size", "compute_dtype", "out_dtype"))
def distributed_conv3d(x, weight, bias, kernel_size=3,
                       compute_dtype=jnp.bfloat16, out_dtype=jnp.float32):
    """x: (B, T, Cin, D, H, W); weight: (Cout, Cin, k, k, k); bias: (Cout,)."""
    B, T, Cin, D, H, W = x.shape
    Cout = weight.shape[0]
    k = kernel_size
    assert k % 2 == 1, "padding='same' implemented for odd kernel sizes"
    p = k // 2
    k3 = k * k * k
    K = k3 * Cin                           # fused contraction length
    N = B * T
    Dp, Hp, Wp = D + 2 * p, H + 2 * p, W + 2 * p

    c_item = jnp.dtype(compute_dtype).itemsize
    o_item = jnp.dtype(out_dtype).itemsize

    # Lane geometry: only the H real output rows are computed; the flattened output plane
    # is H*Wp lanes rounded to 128 (unmasked vst).  Every input depth plane lives in a
    # PLANE2-wide slot so all static tap shifts (<= (k-1)*(Wp+1)) stay in bounds.
    MOUT = _round_up(H * Wp, 128)
    max_sh = (k - 1) * (Wp + 1)
    PLANE2 = _round_up(MOUT + max_sh, 128)

    in_block = Dp * Cin * PLANE2 * c_item
    w_bytes = Cout * K * c_item

    def vmem_need(td):
        scratch = K * td * MOUT * c_item
        outb = Cout * td * MOUT * o_item
        return 2 * in_block + 2 * outb + 2 * w_bytes + scratch + (1 << 20)

    budget = _vmem_budget_bytes()
    lane_cap = max(1, 4096 // MOUT)        # output slab up to ~4096 lanes wide
    tile_d = 1
    for cand in range(min(D, lane_cap), 0, -1):
        if D % cand == 0 and vmem_need(cand) <= budget:
            tile_d = cand
            break
    n_dt = D // tile_d
    # Never under-provision the scoped VMEM limit (shrinking tile_d is handled above).
    vmem_limit = int(min(max(2 * vmem_need(tile_d), 16 << 20), budget))
    vmem_limit = max(vmem_limit, vmem_need(tile_d))

    # ---- glue: TimeDistributed flatten + cast + depth-major layout + zero-pads ----
    # (cast first so the transpose/pad passes move compute_dtype bytes, not f32)
    xr = x.astype(compute_dtype).reshape(N, Cin, D, H, W).transpose(0, 2, 1, 3, 4)
    xp = jnp.pad(xr, ((0, 0), (p, p), (0, 0), (p, p), (p, p)))        # (N,Dp,Cin,Hp,Wp)
    xp = xp.reshape(N, Dp, Cin, Hp * Wp)
    x_planes = jnp.pad(xp, ((0, 0), (0, 0), (0, 0), (0, PLANE2 - Hp * Wp)))

    # weight (Cout,Cin,kd,kh,kw) -> (Cout, K) with K index = ((kd*k+kh)*k+kw)*Cin + c
    w2 = weight.transpose(0, 2, 3, 4, 1).reshape(Cout, K).astype(compute_dtype)
    b_col = bias.reshape(Cout, 1).astype(jnp.float32)

    def kernel(x_ref, w_ref, b_ref, o_ref, rhs_ref):
        base = pl.program_id(1) * tile_d
        # Phase 1: input-stationary VMEM-local im2col.  Each padded depth plane is
        # loaded and lane-shifted once; its k^2 shifted slices are stored into the
        # (K, tile_d*MOUT) scratch for every output depth dd that consumes it.
        for pd in range(tile_d + 2 * p):                 # static unroll
            consumers = [(pd - kd, kd) for kd in range(k) if 0 <= pd - kd < tile_d]
            plane = x_ref[base + pd]                     # (Cin, PLANE2)
            for kh in range(k):
                for kw in range(k):
                    sh = kh * Wp + kw                    # static lane shift
                    sl = plane[:, sh:sh + MOUT]          # (Cin, MOUT)
                    for dd, kd in consumers:
                        tap = (kd * k + kh) * k + kw
                        rhs_ref[tap * Cin:(tap + 1) * Cin,
                                dd * MOUT:(dd + 1) * MOUT] = sl
        # Phase 2: one fused MXU dot per depth tile + f32 bias / SiLU epilogue.
        acc = jnp.dot(w_ref[...], rhs_ref[...], preferred_element_type=jnp.float32)
        acc = acc + b_ref[...]                           # (Cout,1) broadcast, f32
        o_ref[...] = (acc * jax.nn.sigmoid(acc)).astype(o_ref.dtype)

    cost = pl.CostEstimate(
        flops=2 * N * D * MOUT * K * Cout,
        transcendentals=N * D * MOUT * Cout,
        bytes_accessed=int(N * Dp * Cin * PLANE2) * c_item + Cout * K * c_item
        + Cout * 4 + int(N * Cout * D * MOUT) * o_item,
    )

    out_flat = pl.pallas_call(
        kernel,
        out_shape=jax.ShapeDtypeStruct((N, Cout, D * MOUT), out_dtype),
        grid_spec=pltpu.PrefetchScalarGridSpec(
            num_scalar_prefetch=0,
            grid=(N, n_dt),
            in_specs=[
                # padded frame: identical block for every depth tile -> fetched once/frame
                pl.BlockSpec((None, Dp, Cin, PLANE2), lambda n, t: (n, 0, 0, 0)),
                pl.BlockSpec((Cout, K), lambda n, t: (0, 0)),
                pl.BlockSpec((Cout, 1), lambda n, t: (0, 0)),
            ],
            out_specs=pl.BlockSpec((None, Cout, tile_d * MOUT), lambda n, t: (n, 0, t)),
            scratch_shapes=[pltpu.VMEM((K, tile_d * MOUT), compute_dtype)],
        ),
        compiler_params=pltpu.CompilerParams(
            # Only the frame axis is "parallel": on v7x this keeps each frame's input
            # DMA on a single TensorCore instead of duplicating it on both.
            dimension_semantics=("parallel", "arbitrary"),
            vmem_limit_bytes=vmem_limit),
        cost_estimate=cost,
    )(x_planes, w2, b_col)

    # ---- glue: strided slices back to (B, T, Cout, D, H, W); no transposes ----
    out = out_flat.reshape(N, Cout, D, MOUT)[:, :, :, :H * Wp]
    out = out.reshape(N, Cout, D, H, Wp)[:, :, :, :, :W]
    return out.reshape(B, T, Cout, D, H, W)


def reference(x, weight, bias):
    """Pure-JAX reference matching torch Conv3d(padding='same') + SiLU."""
    B, T, Cin, D, H, W = x.shape
    xf = x.reshape(B * T, Cin, D, H, W)
    y = lax.conv_general_dilated(
        xf, weight, window_strides=(1, 1, 1), padding="SAME",
        dimension_numbers=("NCDHW", "OIDHW", "NCDHW"))
    y = y + bias.reshape(1, -1, 1, 1, 1)
    y = y * jax.nn.sigmoid(y)
    return y.reshape(B, T, -1, D, H, W)


if __name__ == "__main__":
    B, T, Cin, Cout, D, H, W, K = 2, 3, 4, 8, 8, 8, 8, 3

    key = jax.random.PRNGKey(0)
    kx, kw_, kb = jax.random.split(key, 3)
    x = jax.random.normal(kx, (B, T, Cin, D, H, W), dtype=jnp.float32)
    weight = 0.1 * jax.random.normal(kw_, (Cout, Cin, K, K, K), dtype=jnp.float32)
    bias = 0.1 * jax.random.normal(kb, (Cout,), dtype=jnp.float32)

    # Full-precision path: check against the f32 reference.
    out_f32 = jax.block_until_ready(
        distributed_conv3d(x, weight, bias, kernel_size=K, compute_dtype=jnp.float32))
    ref_f32 = jax.block_until_ready(reference(x, weight, bias))
    np.testing.assert_allclose(np.asarray(out_f32), np.asarray(ref_f32),
                               rtol=1e-4, atol=1e-4)

    # bf16-MXU path (v6e/v7x recommendation): compare against the reference run on
    # bf16-rounded operands (identical quantization; only accumulation order differs).
    out_bf16 = jax.block_until_ready(
        distributed_conv3d(x, weight, bias, kernel_size=K, compute_dtype=jnp.bfloat16))
    xq = x.astype(jnp.bfloat16).astype(jnp.float32)
    wq = weight.astype(jnp.bfloat16).astype(jnp.float32)
    ref_bf16 = jax.block_until_ready(reference(xq, wq, bias))
    np.testing.assert_allclose(np.asarray(out_bf16), np.asarray(ref_bf16),
                               rtol=2e-3, atol=2e-3)

    print("KERNEL_OK")
</pallas_src>

<mosaic_0001>
module attributes {stable_mosaic.version = 11 : i64} {
  func.func @kernel(%arg0: i32, %arg1: i32, %arg2: memref<1x10x4x256xf32, #tpu.memory_space<vmem>>, %arg3: memref<8x108xf32, #tpu.memory_space<vmem>>, %arg4: memref<8x1xf32, #tpu.memory_space<vmem>>, %arg5: memref<1x8x1024xf32, #tpu.memory_space<vmem>>, %arg6: memref<108x1024xf32, #tpu.memory_space<vmem>>) attributes {dimension_semantics = [#tpu.dimension_semantics<parallel>, #tpu.dimension_semantics<arbitrary>], iteration_bounds = array<i64: 6, 1>, scalar_prefetch = 0 : i64, scratch_operands = 1 : i64, tpu.core_type = #tpu.core_type<tc>, window_params = [{transform_indices = @transform_0, window_bounds = array<i64: 1, 10, 4, 256>}, {pipeline_mode = #tpu.pipeline_mode<synchronous>, transform_indices = @transform_1, window_bounds = array<i64: 8, 108>}, {pipeline_mode = #tpu.pipeline_mode<synchronous>, transform_indices = @transform_2, window_bounds = array<i64: 8, 1>}, {transform_indices = @transform_3, window_bounds = array<i64: 1, 8, 1024>}]} {
    %c8_i32 = arith.constant 8 : i32
    %0 = arith.muli %arg1, %c8_i32 : i32
    %c0_i32 = arith.constant 0 : i32
    %1 = arith.addi %0, %c0_i32 : i32
    %c0 = arith.constant 0 : index
    %2 = arith.index_cast %1 : i32 to index
    %c0_0 = arith.constant 0 : index
    %c0_1 = arith.constant 0 : index
    %3 = vector.load %arg2[%c0, %2, %c0_0, %c0_1] : memref<1x10x4x256xf32, #tpu.memory_space<vmem>>, vector<1x1x4x256xf32>
    %4 = vector.shape_cast %3 : vector<1x1x4x256xf32> to vector<4x256xf32>
    %5 = vector.extract_strided_slice %4 {offsets = [0, 0], sizes = [4, 128], strides = [1, 1]} : vector<4x256xf32> to vector<4x128xf32>
    %c0_2 = arith.constant 0 : index
    %c0_3 = arith.constant 0 : index
    %6 = vector.load %arg6[%c0_2, %c0_3] : memref<108x1024xf32, #tpu.memory_space<vmem>>, vector<4x128xf32>
    tpu.vector_store %arg6[%c0_2, %c0_3], %5 {strides = array<i32>} : memref<108x1024xf32, #tpu.memory_space<vmem>>, vector<4x128xf32>,
    %7 = vector.extract_strided_slice %4 {offsets = [0, 1], sizes = [4, 128], strides = [1, 1]} : vector<4x256xf32> to vector<4x128xf32>
    %c4 = arith.constant 4 : index
    %c0_4 = arith.constant 0 : index
    %8 = vector.load %arg6[%c4, %c0_4] : memref<108x1024xf32, #tpu.memory_space<vmem>>, vector<4x128xf32>
    tpu.vector_store %arg6[%c4, %c0_4], %7 {strides = array<i32>} : memref<108x1024xf32, #tpu.memory_space<vmem>>, vector<4x128xf32>,
    %9 = vector.extract_strided_slice %4 {offsets = [0, 2], sizes = [4, 128], strides = [1, 1]} : vector<4x256xf32> to vector<4x128xf32>
    %c8 = arith.constant 8 : index
    %c0_5 = arith.constant 0 : index
    %10 = vector.load %arg6[%c8, %c0_5] : memref<108x1024xf32, #tpu.memory_space<vmem>>, vector<4x128xf32>
    tpu.vector_store %arg6[%c8, %c0_5], %9 {strides = array<i32>} : memref<108x1024xf32, #tpu.memory_space<vmem>>, vector<4x128xf32>,
    %11 = vector.extract_strided_slice %4 {offsets = [0, 10], sizes = [4, 128], strides = [1, 1]} : vector<4x256xf32> to vector<4x128xf32>
    %c12 = arith.constant 12 : index
    %c0_6 = arith.constant 0 : index
    %12 = vector.load %arg6[%c12, %c0_6] : memref<108x1024xf32, #tpu.memory_space<vmem>>, vector<4x128xf32>
    tpu.vector_store %arg6[%c12, %c0_6], %11 {strides = array<i32>} : memref<108x1024xf32, #tpu.memory_space<vmem>>, vector<4x128xf32>,
    %13 = vector.extract_strided_slice %4 {offsets = [0, 11], sizes = [4, 128], strides = [1, 1]} : vector<4x256xf32> to vector<4x128xf32>
    %c16 = arith.constant 16 : index
    %c0_7 = arith.constant 0 : index
    %14 = vector.load %arg6[%c16, %c0_7] : memref<108x1024xf32, #tpu.memory_space<vmem>>, vector<4x128xf32>
    tpu.vector_store %arg6[%c16, %c0_7], %13 {strides = array<i32>} : memref<108x1024xf32, #tpu.memory_space<vmem>>, vector<4x128xf32>,
    %15 = vector.extract_strided_slice %4 {offsets = [0, 12], sizes = [4, 128], strides = [1, 1]} : vector<4x256xf32> to vector<4x128xf32>
    %c20 = arith.constant 20 : index
    %c0_8 = arith.constant 0 : index
    %16 = vector.load %arg6[%c20, %c0_8] : memref<108x1024xf32, #tpu.memory_space<vmem>>, vector<4x128xf32>
    tpu.vector_store %arg6[%c20, %c0_8], %15 {strides = array<i32>} : memref<108x1024xf32, #tpu.memory_space<vmem>>, vector<4x128xf32>,
    %17 = vector.extract_strided_slice %4 {offsets = [0, 20], sizes = [4, 128], strides = [1, 1]} : vector<4x256xf32> to vector<4x128xf32>
    %c24 = arith.constant 24 : index
    %c0_9 = arith.constant 0 : index
    %18 = vector.load %arg6[%c24, %c0_9] : memref<108x1024xf32, #tpu.memory_space<vmem>>, vector<4x128xf32>
    tpu.vector_store %arg6[%c24, %c0_9], %17 {strides = array<i32>} : memref<108x1024xf32, #tpu.memory_space<vmem>>, vector<4x128xf32>,
    %19 = vector.extract_strided_slice %4 {offsets = [0, 21], sizes = [4, 128], strides = [1, 1]} : vector<4x256xf32> to vector<4x128xf32>
    %c28 = arith.constant 28 : index
    %c0_10 = arith.constant 0 : index
    %20 = vector.load %arg6[%c28, %c0_10] : memref<108x1024xf32, #tpu.memory_space<vmem>>, vector<4x128xf32>
    tpu.vector_store %arg6[%c28, %c0_10], %19 {strides = array<i32>} : memref<108x1024xf32, #tpu.memory_space<vmem>>, vector<4x128xf32>,
    %21 = vector.extract_strided_slice %4 {offsets = [0, 22], sizes = [4, 128], strides = [1, 1]} : vector<4x256xf32> to vector<4x128xf32>
    %c32 = arith.constant 32 : index
    %c0_11 = arith.constant 0 : index
    %22 = vector.load %arg6[%c32, %c0_11] : memref<108x1024xf32, #tpu.memory_space<vmem>>, vector<4x128xf32>
    tpu.vector_store %arg6[%c32, %c0_11], %21 {strides = array<i32>} : memref<108x1024xf32, #tpu.memory_space<vmem>>, vector<4x128xf32>,
    %c1_i32 = arith.constant 1 : i32
    %23 = arith.addi %0, %c1_i32 : i32
    %c0_12 = arith.constant 0 : index
    %24 = arith.index_cast %23 : i32 to index
    %c0_13 = arith.constant 0 : index
    %c0_14 = arith.constant 0 : index
    %25 = vector.load %arg2[%c0_12, %24, %c0_13, %c0_14] : memref<1x10x4x256xf32, #tpu.memory_space<vmem>>, vector<1x1x4x256xf32>
    %26 = vector.shape_cast %25 : vector<1x1x4x256xf32> to vector<4x256xf32>
    %27 = vector.extract_strided_slice %26 {offsets = [0, 0], sizes = [4, 128], strides = [1, 1]} : vector<4x256xf32> to vector<4x128xf32>
    %c0_15 = arith.constant 0 : index
    %c128 = arith.constant 128 : index
    %28 = vector.load %arg6[%c0_15, %c128] : memref<108x1024xf32, #tpu.memory_space<vmem>>, vector<4x128xf32>
    tpu.vector_store %arg6[%c0_15, %c128], %27 {strides = array<i32>} : memref<108x1024xf32, #tpu.memory_space<vmem>>, vector<4x128xf32>,
    %c36 = arith.constant 36 : index
    %c0_16 = arith.constant 0 : index
    %29 = vector.load %arg6[%c36, %c0_16] : memref<108x1024xf32, #tpu.memory_space<vmem>>, vector<4x128xf32>
    tpu.vector_store %arg6[%c36, %c0_16], %27 {strides = array<i32>} : memref<108x1024xf32, #tpu.memory_space<vmem>>, vector<4x128xf32>,
    %30 = vector.extract_strided_slice %26 {offsets = [0, 1], sizes = [4, 128], strides = [1, 1]} : vector<4x256xf32> to vector<4x128xf32>
    %c4_17 = arith.constant 4 : index
    %c128_18 = arith.constant 128 : index
    %31 = vector.load %arg6[%c4_17, %c128_18] : memref<108x1024xf32, #tpu.memory_space<vmem>>, vector<4x128xf32>
    tpu.vector_store %arg6[%c4_17, %c128_18], %30 {strides = array<i32>} : memref<108x1024xf32, #tpu.memory_space<vmem>>, vector<4x128xf32>,
    %c40 = arith.constant 40 : index
    %c0_19 = arith.constant 0 : index
    %32 = vector.load %arg6[%c40, %c0_19] : memref<108x1024xf32, #tpu.memory_space<vmem>>, vector<4x128xf32>
    tpu.vector_store %arg6[%c40, %c0_19], %30 {strides = array<i32>} : memref<108x1024xf32, #tpu.memory_space<vmem>>, vector<4x128xf32>,
    %33 = vector.extract_strided_slice %26 {offsets = [0, 2], sizes = [4, 128], strides = [1, 1]} : vector<4x256xf32> to vector<4x128xf32>
    %c8_20 = arith.constant 8 : index
    %c128_21 = arith.constant 128 : index
    %34 = vector.load %arg6[%c8_20, %c128_21] : memref<108x1024xf32, #tpu.memory_space<vmem>>, vector<4x128xf32>
    tpu.vector_store %arg6[%c8_20, %c128_21], %33 {strides = array<i32>} : memref<108x1024xf32, #tpu.memory_space<vmem>>, vector<4x128xf32>,
    %c44 = arith.constant 44 : index
    %c0_22 = arith.constant 0 : index
    %35 = vector.load %arg6[%c44, %c0_22] : memref<108x1024xf32, #tpu.memory_space<vmem>>, vector<4x128xf32>
    tpu.vector_store %arg6[%c44, %c0_22], %33 {strides = array<i32>} : memref<108x1024xf32, #tpu.memory_space<vmem>>, vector<4x128xf32>,
    %36 = vector.extract_strided_slice %26 {offsets = [0, 10], sizes = [4, 128], strides = [1, 1]} : vector<4x256xf32> to vector<4x128xf32>
    %c12_23 = arith.constant 12 : index
    %c128_24 = arith.constant 128 : index
    %37 = vector.load %arg6[%c12_23, %c128_24] : memref<108x1024xf32, #tpu.memory_space<vmem>>, vector<4x128xf32>
    tpu.vector_store %arg6[%c12_23, %c128_24], %36 {strides = array<i32>} : memref<108x1024xf32, #tpu.memory_space<vmem>>, vector<4x128xf32>,
    %c48 = arith.constant 48 : index
    %c0_25 = arith.constant 0 : index
    %38 = vector.load %arg6[%c48, %c0_25] : memref<108x1024xf32, #tpu.memory_space<vmem>>, vector<4x128xf32>
    tpu.vector_store %arg6[%c48, %c0_25], %36 {strides = array<i32>} : memref<108x1024xf32, #tpu.memory_space<vmem>>, vector<4x128xf32>,
    %39 = vector.extract_strided_slice %26 {offsets = [0, 11], sizes = [4, 128], strides = [1, 1]} : vector<4x256xf32> to vector<4x128xf32>
    %c16_26 = arith.constant 16 : index
    %c128_27 = arith.constant 128 : index
    %40 = vector.load %arg6[%c16_26, %c128_27] : memref<108x1024xf32, #tpu.memory_space<vmem>>, vector<4x128xf32>
    tpu.vector_store %arg6[%c16_26, %c128_27], %39 {strides = array<i32>} : memref<108x1024xf32, #tpu.memory_space<vmem>>, vector<4x128xf32>,
    %c52 = arith.constant 52 : index
    %c0_28 = arith.constant 0 : index
    %41 = vector.load %arg6[%c52, %c0_28] : memref<108x1024xf32, #tpu.memory_space<vmem>>, vector<4x128xf32>
    tpu.vector_store %arg6[%c52, %c0_28], %39 {strides = array<i32>} : memref<108x1024xf32, #tpu.memory_space<vmem>>, vector<4x128xf32>,
    %42 = vector.extract_strided_slice %26 {offsets = [0, 12], sizes = [4, 128], strides = [1, 1]} : vector<4x256xf32> to vector<4x128xf32>
    %c20_29 = arith.constant 20 : index
    %c128_30 = arith.constant 128 : index
    %43 = vector.load %arg6[%c20_29, %c128_30] : memref<108x1024xf32, #tpu.memory_space<vmem>>, vector<4x128xf32>
    tpu.vector_store %arg6[%c20_29, %c128_30], %42 {strides = array<i32>} : memref<108x1024xf32, #tpu.memory_space<vmem>>, vector<4x128xf32>,
    %c56 = arith.constant 56 : index
    %c0_31 = arith.constant 0 : index
    %44 = vector.load %arg6[%c56, %c0_31] : memref<108x1024xf32, #tpu.memory_space<vmem>>, vector<4x128xf32>
    tpu.vector_store %arg6[%c56, %c0_31], %42 {strides = array<i32>} : memref<108x1024xf32, #tpu.memory_space<vmem>>, vector<4x128xf32>,
    %45 = vector.extract_strided_slice %26 {offsets = [0, 20], sizes = [4, 128], strides = [1, 1]} : vector<4x256xf32> to vector<4x128xf32>
    %c24_32 = arith.constant 24 : index
    %c128_33 = arith.constant 128 : index
    %46 = vector.load %arg6[%c24_32, %c128_33] : memref<108x1024xf32, #tpu.memory_space<vmem>>, vector<4x128xf32>
    tpu.vector_store %arg6[%c24_32, %c128_33], %45 {strides = array<i32>} : memref<108x1024xf32, #tpu.memory_space<vmem>>, vector<4x128xf32>,
    %c60 = arith.constant 60 : index
    %c0_34 = arith.constant 0 : index
    %47 = vector.load %arg6[%c60, %c0_34] : memref<108x1024xf32, #tpu.memory_space<vmem>>, vector<4x128xf32>
    tpu.vector_store %arg6[%c60, %c0_34], %45 {strides = array<i32>} : memref<108x1024xf32, #tpu.memory_space<vmem>>, vector<4x128xf32>,
    %48 = vector.extract_strided_slice %26 {offsets = [0, 21], sizes = [4, 128], strides = [1, 1]} : vector<4x256xf32> to vector<4x128xf32>
    %c28_35 = arith.constant 28 : index
    %c128_36 = arith.constant 128 : index
    %49 = vector.load %arg6[%c28_35, %c128_36] : memref<108x1024xf32, #tpu.memory_space<vmem>>, vector<4x128xf32>
    tpu.vector_store %arg6[%c28_35, %c128_36], %48 {strides = array<i32>} : memref<108x1024xf32, #tpu.memory_space<vmem>>, vector<4x128xf32>,
    %c64 = arith.constant 64 : index
    %c0_37 = arith.constant 0 : index
    %50 = vector.load %arg6[%c64, %c0_37] : memref<108x1024xf32, #tpu.memory_space<vmem>>, vector<4x128xf32>
    tpu.vector_store %arg6[%c64, %c0_37], %48 {strides = array<i32>} : memref<108x1024xf32, #tpu.memory_space<vmem>>, vector<4x128xf32>,
    %51 = vector.extract_strided_slice %26 {offsets = [0, 22], sizes = [4, 128], strides = [1, 1]} : vector<4x256xf32> to vector<4x128xf32>
    %c32_38 = arith.constant 32 : index
    %c128_39 = arith.constant 128 : index
    %52 = vector.load %arg6[%c32_38, %c128_39] : memref<108x1024xf32, #tpu.memory_space<vmem>>, vector<4x128xf32>
    tpu.vector_store %arg6[%c32_38, %c128_39], %51 {strides = array<i32>} : memref<108x1024xf32, #tpu.memory_space<vmem>>, vector<4x128xf32>,
    %c68 = arith.constant 68 : index
    %c0_40 = arith.constant 0 : index
    %53 = vector.load %arg6[%c68, %c0_40] : memref<108x1024xf32, #tpu.memory_space<vmem>>, vector<4x128xf32>
    tpu.vector_store %arg6[%c68, %c0_40], %51 {strides = array<i32>} : memref<108x1024xf32, #tpu.memory_space<vmem>>, vector<4x128xf32>,
    %c2_i32 = arith.constant 2 : i32
    %54 = arith.addi %0, %c2_i32 : i32
    %c0_41 = arith.constant 0 : index
    %55 = arith.index_cast %54 : i32 to index
    %c0_42 = arith.constant 0 : index
    %c0_43 = arith.constant 0 : index
    %56 = vector.load %arg2[%c0_41, %55, %c0_42, %c0_43] : memref<1x10x4x256xf32, #tpu.memory_space<vmem>>, vector<1x1x4x256xf32>
    %57 = vector.shape_cast %56 : vector<1x1x4x256xf32> to vector<4x256xf32>
    %58 = vector.extract_strided_slice %57 {offsets = [0, 0], sizes = [4, 128], strides = [1, 1]} : vector<4x256xf32> to vector<4x128xf32>
    %c0_44 = arith.constant 0 : index
    %c256 = arith.constant 256 : index
    %59 = vector.load %arg6[%c0_44, %c256] : memref<108x1024xf32, #tpu.memory_space<vmem>>, vector<4x128xf32>
    tpu.vector_store %arg6[%c0_44, %c256], %58 {strides = array<i32>} : memref<108x1024xf32, #tpu.memory_space<vmem>>, vector<4x128xf32>,
    %c36_45 = arith.constant 36 : index
    %c128_46 = arith.constant 128 : index
    %60 = vector.load %arg6[%c36_45, %c128_46] : memref<108x1024xf32, #tpu.memory_space<vmem>>, vector<4x128xf32>
    tpu.vector_store %arg6[%c36_45, %c128_46], %58 {strides = array<i32>} : memref<108x1024xf32, #tpu.memory_space<vmem>>, vector<4x128xf32>,
    %c72 = arith.constant 72 : index
    %c0_47 = arith.constant 0 : index
    %61 = vector.load %arg6[%c72, %c0_47] : memref<108x1024xf32, #tpu.memory_space<vmem>>, vector<4x128xf32>
    tpu.vector_store %arg6[%c72, %c0_47], %58 {strides = array<i32>} : memref<108x1024xf32, #tpu.memory_space<vmem>>, vector<4x128xf32>,
    %62 = vector.extract_strided_slice %57 {offsets = [0, 1], sizes = [4, 128], strides = [1, 1]} : vector<4x256xf32> to vector<4x128xf32>
    %c4_48 = arith.constant 4 : index
    %c256_49 = arith.constant 256 : index
    %63 = vector.load %arg6[%c4_48, %c256_49] : memref<108x1024xf32, #tpu.memory_space<vmem>>, vector<4x128xf32>
    tpu.vector_store %arg6[%c4_48, %c256_49], %62 {strides = array<i32>} : memref<108x1024xf32, #tpu.memory_space<vmem>>, vector<4x128xf32>,
    %c40_50 = arith.constant 40 : index
    %c128_51 = arith.constant 128 : index
    %64 = vector.load %arg6[%c40_50, %c128_51] : memref<108x1024xf32, #tpu.memory_space<vmem>>, vector<4x128xf32>
    tpu.vector_store %arg6[%c40_50, %c128_51], %62 {strides = array<i32>} : memref<108x1024xf32, #tpu.memory_space<vmem>>, vector<4x128xf32>,
    %c76 = arith.constant 76 : index
    %c0_52 = arith.constant 0 : index
    %65 = vector.load %arg6[%c76, %c0_52] : memref<108x1024xf32, #tpu.memory_space<vmem>>, vector<4x128xf32>
    tpu.vector_store %arg6[%c76, %c0_52], %62 {strides = array<i32>} : memref<108x1024xf32, #tpu.memory_space<vmem>>, vector<4x128xf32>,
    %66 = vector.extract_strided_slice %57 {offsets = [0, 2], sizes = [4, 128], strides = [1, 1]} : vector<4x256xf32> to vector<4x128xf32>
    %c8_53 = arith.constant 8 : index
    %c256_54 = arith.constant 256 : index
    %67 = vector.load %arg6[%c8_53, %c256_54] : memref<108x1024xf32, #tpu.memory_space<vmem>>, vector<4x128xf32>
    tpu.vector_store %arg6[%c8_53, %c256_54], %66 {strides = array<i32>} : memref<108x1024xf32, #tpu.memory_space<vmem>>, vector<4x128xf32>,
    %c44_55 = arith.constant 44 : index
    %c128_56 = arith.constant 128 : index
    %68 = vector.load %arg6[%c44_55, %c128_56] : memref<108x1024xf32, #tpu.memory_space<vmem>>, vector<4x128xf32>
    tpu.vector_store %arg6[%c44_55, %c128_56], %66 {strides = array<i32>} : memref<108x1024xf32, #tpu.memory_space<vmem>>, vector<4x128xf32>,
    %c80 = arith.constant 80 : index
    %c0_57 = arith.constant 0 : index
    %69 = vector.load %arg6[%c80, %c0_57] : memref<108x1024xf32, #tpu.memory_space<vmem>>, vector<4x128xf32>
    tpu.vector_store %arg6[%c80, %c0_57], %66 {strides = array<i32>} : memref<108x1024xf32, #tpu.memory_space<vmem>>, vector<4x128xf32>,
    %70 = vector.extract_strided_slice %57 {offsets = [0, 10], sizes = [4, 128], strides = [1, 1]} : vector<4x256xf32> to vector<4x128xf32>
    %c12_58 = arith.constant 12 : index
    %c256_59 = arith.constant 256 : index
    %71 = vector.load %arg6[%c12_58, %c256_59] : memref<108x1024xf32, #tpu.memory_space<vmem>>, vector<4x128xf32>
    tpu.vector_store %arg6[%c12_58, %c256_59], %70 {strides = array<i32>} : memref<108x1024xf32, #tpu.memory_space<vmem>>, vector<4x128xf32>,
    %c48_60 = arith.constant 48 : index
    %c128_61 = arith.constant 128 : index
    %72 = vector.load %arg6[%c48_60, %c128_61] : memref<108x1024xf32, #tpu.memory_space<vmem>>, vector<4x128xf32>
    tpu.vector_store %arg6[%c48_60, %c128_61], %70 {strides = array<i32>} : memref<108x1024xf32, #tpu.memory_space<vmem>>, vector<4x128xf32>,
    %c84 = arith.constant 84 : index
    %c0_62 = arith.constant 0 : index
    %73 = vector.load %arg6[%c84, %c0_62] : memref<108x1024xf32, #tpu.memory_space<vmem>>, vector<4x128xf32>
    tpu.vector_store %arg6[%c84, %c0_62], %70 {strides = array<i32>} : memref<108x1024xf32, #tpu.memory_space<vmem>>, vector<4x128xf32>,
    %74 = vector.extract_strided_slice %57 {offsets = [0, 11], sizes = [4, 128], strides = [1, 1]} : vector<4x256xf32> to vector<4x128xf32>
    %c16_63 = arith.constant 16 : index
    %c256_64 = arith.constant 256 : index
    %75 = vector.load %arg6[%c16_63, %c256_64] : memref<108x1024xf32, #tpu.memory_space<vmem>>, vector<4x128xf32>
    tpu.vector_store %arg6[%c16_63, %c256_64], %74 {strides = array<i32>} : memref<108x1024xf32, #tpu.memory_space<vmem>>, vector<4x128xf32>,
    %c52_65 = arith.constant 52 : index
    %c128_66 = arith.constant 128 : index
    %76 = vector.load %arg6[%c52_65, %c128_66] : memref<108x1024xf32, #tpu.memory_space<vmem>>, vector<4x128xf32>
    tpu.vector_store %arg6[%c52_65, %c128_66], %74 {strides = array<i32>} : memref<108x1024xf32, #tpu.memory_space<vmem>>, vector<4x128xf32>,
    %c88 = arith.constant 88 : index
    %c0_67 = arith.constant 0 : index
    %77 = vector.load %arg6[%c88, %c0_67] : memref<108x1024xf32, #tpu.memory_space<vmem>>, vector<4x128xf32>
    tpu.vector_store %arg6[%c88, %c0_67], %74 {strides = array<i32>} : memref<108x1024xf32, #tpu.memory_space<vmem>>, vector<4x128xf32>,
    %78 = vector.extract_strided_slice %57 {offsets = [0, 12], sizes = [4, 128], strides = [1, 1]} : vector<4x256xf32> to vector<4x128xf32>
    %c20_68 = arith.constant 20 : index
    %c256_69 = arith.constant 256 : index
    %79 = vector.load %arg6[%c20_68, %c256_69] : memref<108x1024xf32, #tpu.memory_space<vmem>>, vector<4x128xf32>
    tpu.vector_store %arg6[%c20_68, %c256_69], %78 {strides = array<i32>} : memref<108x1024xf32, #tpu.memory_space<vmem>>, vector<4x128xf32>,
    %c56_70 = arith.constant 56 : index
    %c128_71 = arith.constant 128 : index
    %80 = vector.load %arg6[%c56_70, %c128_71] : memref<108x1024xf32, #tpu.memory_space<vmem>>, vector<4x128xf32>
    tpu.vector_store %arg6[%c56_70, %c128_71], %78 {strides = array<i32>} : memref<108x1024xf32, #tpu.memory_space<vmem>>, vector<4x128xf32>,
    %c92 = arith.constant 92 : index
    %c0_72 = arith.constant 0 : index
    %81 = vector.load %arg6[%c92, %c0_72] : memref<108x1024xf32, #tpu.memory_space<vmem>>, vector<4x128xf32>
    tpu.vector_store %arg6[%c92, %c0_72], %78 {strides = array<i32>} : memref<108x1024xf32, #tpu.memory_space<vmem>>, vector<4x128xf32>,
    %82 = vector.extract_strided_slice %57 {offsets = [0, 20], sizes = [4, 128], strides = [1, 1]} : vector<4x256xf32> to vector<4x128xf32>
    %c24_73 = arith.constant 24 : index
    %c256_74 = arith.constant 256 : index
    %83 = vector.load %arg6[%c24_73, %c256_74] : memref<108x1024xf32, #tpu.memory_space<vmem>>, vector<4x128xf32>
    tpu.vector_store %arg6[%c24_73, %c256_74], %82 {strides = array<i32>} : memref<108x1024xf32, #tpu.memory_space<vmem>>, vector<4x128xf32>,
    %c60_75 = arith.constant 60 : index
    %c128_76 = arith.constant 128 : index
    %84 = vector.load %arg6[%c60_75, %c128_76] : memref<108x1024xf32, #tpu.memory_space<vmem>>, vector<4x128xf32>
    tpu.vector_store %arg6[%c60_75, %c128_76], %82 {strides = array<i32>} : memref<108x1024xf32, #tpu.memory_space<vmem>>, vector<4x128xf32>,
    %c96 = arith.constant 96 : index
    %c0_77 = arith.constant 0 : index
    %85 = vector.load %arg6[%c96, %c0_77] : memref<108x1024xf32, #tpu.memory_space<vmem>>, vector<4x128xf32>
    tpu.vector_store %arg6[%c96, %c0_77], %82 {strides = array<i32>} : memref<108x1024xf32, #tpu.memory_space<vmem>>, vector<4x128xf32>,
    %86 = vector.extract_strided_slice %57 {offsets = [0, 21], sizes = [4, 128], strides = [1, 1]} : vector<4x256xf32> to vector<4x128xf32>
    %c28_78 = arith.constant 28 : index
    %c256_79 = arith.constant 256 : index
    %87 = vector.load %arg6[%c28_78, %c256_79] : memref<108x1024xf32, #tpu.memory_space<vmem>>, vector<4x128xf32>
    tpu.vector_store %arg6[%c28_78, %c256_79], %86 {strides = array<i32>} : memref<108x1024xf32, #tpu.memory_space<vmem>>, vector<4x128xf32>,
    %c64_80 = arith.constant 64 : index
    %c128_81 = arith.constant 128 : index
    %88 = vector.load %arg6[%c64_80, %c128_81] : memref<108x1024xf32, #tpu.memory_space<vmem>>, vector<4x128xf32>
    tpu.vector_store %arg6[%c64_80, %c128_81], %86 {strides = array<i32>} : memref<108x1024xf32, #tpu.memory_space<vmem>>, vector<4x128xf32>,
    %c100 = arith.constant 100 : index
    %c0_82 = arith.constant 0 : index
    %89 = vector.load %arg6[%c100, %c0_82] : memref<108x1024xf32, #tpu.memory_space<vmem>>, vector<4x128xf32>
    tpu.vector_store %arg6[%c100, %c0_82], %86 {strides = array<i32>} : memref<108x1024xf32, #tpu.memory_space<vmem>>, vector<4x128xf32>,
    %90 = vector.extract_strided_slice %57 {offsets = [0, 22], sizes = [4, 128], strides = [1, 1]} : vector<4x256xf32> to vector<4x128xf32>
    %c32_83 = arith.constant 32 : index
    %c256_84 = arith.constant 256 : index
    %91 = vector.load %arg6[%c32_83, %c256_84] : memref<108x1024xf32, #tpu.memory_space<vmem>>, vector<4x128xf32>
    tpu.vector_store %arg6[%c32_83, %c256_84], %90 {strides = array<i32>} : memref<108x1024xf32, #tpu.memory_space<vmem>>, vector<4x128xf32>,
    %c68_85 = arith.constant 68 : index
    %c128_86 = arith.constant 128 : index
    %92 = vector.load %arg6[%c68_85, %c128_86] : memref<108x1024xf32, #tpu.memory_space<vmem>>, vector<4x128xf32>
    tpu.vector_store %arg6[%c68_85, %c128_86], %90 {strides = array<i32>} : memref<108x1024xf32, #tpu.memory_space<vmem>>, vector<4x128xf32>,
    %c104 = arith.constant 104 : index
    %c0_87 = arith.constant 0 : index
    %93 = vector.load %arg6[%c104, %c0_87] : memref<108x1024xf32, #tpu.memory_space<vmem>>, vector<4x128xf32>
    tpu.vector_store %arg6[%c104, %c0_87], %90 {strides = array<i32>} : memref<108x1024xf32, #tpu.memory_space<vmem>>, vector<4x128xf32>,
    %c3_i32 = arith.constant 3 : i32
    %94 = arith.addi %0, %c3_i32 : i32
    %c0_88 = arith.constant 0 : index
    %95 = arith.index_cast %94 : i32 to index
    %c0_89 = arith.constant 0 : index
    %c0_90 = arith.constant 0 : index
    %96 = vector.load %arg2[%c0_88, %95, %c0_89, %c0_90] : memref<1x10x4x256xf32, #tpu.memory_space<vmem>>, vector<1x1x4x256xf32>
    %97 = vector.shape_cast %96 : vector<1x1x4x256xf32> to vector<4x256xf32>
    %98 = vector.extract_strided_slice %97 {offsets = [0, 0], sizes = [4, 128], strides = [1, 1]} : vector<4x256xf32> to vector<4x128xf32>
    %c0_91 = arith.constant 0 : index
    %c384 = arith.constant 384 : index
    %99 = vector.load %arg6[%c0_91, %c384] : memref<108x1024xf32, #tpu.memory_space<vmem>>, vector<4x128xf32>
    tpu.vector_store %arg6[%c0_91, %c384], %98 {strides = array<i32>} : memref<108x1024xf32, #tpu.memory_space<vmem>>, vector<4x128xf32>,
    %c36_92 = arith.constant 36 : index
    %c256_93 = arith.constant 256 : index
    %100 = vector.load %arg6[%c36_92, %c256_93] : memref<108x1024xf32, #tpu.memory_space<vmem>>, vector<4x128xf32>
    tpu.vector_store %arg6[%c36_92, %c256_93], %98 {strides = array<i32>} : memref<108x1024xf32, #tpu.memory_space<vmem>>, vector<4x128xf32>,
    %c72_94 = arith.constant 72 : index
    %c128_95 = arith.constant 128 : index
    %101 = vector.load %arg6[%c72_94, %c128_95] : memref<108x1024xf32, #tpu.memory_space<vmem>>, vector<4x128xf32>
    tpu.vector_store %arg6[%c72_94, %c128_95], %98 {strides = array<i32>} : memref<108x1024xf32, #tpu.memory_space<vmem>>, vector<4x128xf32>,
    %102 = vector.extract_strided_slice %97 {offsets = [0, 1], sizes = [4, 128], strides = [1, 1]} : vector<4x256xf32> to vector<4x128xf32>
    %c4_96 = arith.constant 4 : index
    %c384_97 = arith.constant 384 : index
    %103 = vector.load %arg6[%c4_96, %c384_97] : memref<108x1024xf32, #tpu.memory_space<vmem>>, vector<4x128xf32>
    tpu.vector_store %arg6[%c4_96, %c384_97], %102 {strides = array<i32>} : memref<108x1024xf32, #tpu.memory_space<vmem>>, vector<4x128xf32>,
    %c40_98 = arith.constant 40 : index
    %c256_99 = arith.constant 256 : index
    %104 = vector.load %arg6[%c40_98, %c256_99] : memref<108x1024xf32, #tpu.memory_space<vmem>>, vector<4x128xf32>
    tpu.vector_store %arg6[%c40_98, %c256_99], %102 {strides = array<i32>} : memref<108x1024xf32, #tpu.memory_space<vmem>>, vector<4x128xf32>,
    %c76_100 = arith.constant 76 : index
    %c128_101 = arith.constant 128 : index
    %105 = vector.load %arg6[%c76_100, %c128_101] : memref<108x1024xf32, #tpu.memory_space<vmem>>, vector<4x128xf32>
    tpu.vector_store %arg6[%c76_100, %c128_101], %102 {strides = array<i32>} : memref<108x1024xf32, #tpu.memory_space<vmem>>, vector<4x128xf32>,
    %106 = vector.extract_strided_slice %97 {offsets = [0, 2], sizes = [4, 128], strides = [1, 1]} : vector<4x256xf32> to vector<4x128xf32>
    %c8_102 = arith.constant 8 : index
    %c384_103 = arith.constant 384 : index
    %107 = vector.load %arg6[%c8_102, %c384_103] : memref<108x1024xf32, #tpu.memory_space<vmem>>, vector<4x128xf32>
    tpu.vector_store %arg6[%c8_102, %c384_103], %106 {strides = array<i32>} : memref<108x1024xf32, #tpu.memory_space<vmem>>, vector<4x128xf32>,
    %c44_104 = arith.constant 44 : index
    %c256_105 = arith.constant 256 : index
    %108 = vector.load %arg6[%c44_104, %c256_105] : memref<108x1024xf32, #tpu.memory_space<vmem>>, vector<4x128xf32>
    tpu.vector_store %arg6[%c44_104, %c256_105], %106 {strides = array<i32>} : memref<108x1024xf32, #tpu.memory_space<vmem>>, vector<4x128xf32>,
    %c80_106 = arith.constant 80 : index
    %c128_107 = arith.constant 128 : index
    %109 = vector.load %arg6[%c80_106, %c128_107] : memref<108x1024xf32, #tpu.memory_space<vmem>>, vector<4x128xf32>
    tpu.vector_store %arg6[%c80_106, %c128_107], %106 {strides = array<i32>} : memref<108x1024xf32, #tpu.memory_space<vmem>>, vector<4x128xf32>,
    %110 = vector.extract_strided_slice %97 {offsets = [0, 10], sizes = [4, 128], strides = [1, 1]} : vector<4x256xf32> to vector<4x128xf32>
    %c12_108 = arith.constant 12 : index
    %c384_109 = arith.constant 384 : index
    %111 = vector.load %arg6[%c12_108, %c384_109] : memref<108x1024xf32, #tpu.memory_space<vmem>>, vector<4x128xf32>
    tpu.vector_store %arg6[%c12_108, %c384_109], %110 {strides = array<i32>} : memref<108x1024xf32, #tpu.memory_space<vmem>>, vector<4x128xf32>,
    %c48_110 = arith.constant 48 : index
    %c256_111 = arith.constant 256 : index
    %112 = vector.load %arg6[%c48_110, %c256_111] : memref<108x1024xf32, #tpu.memory_space<vmem>>, vector<4x128xf32>
    tpu.vector_store %arg6[%c48_110, %c256_111], %110 {strides = array<i32>} : memref<108x1024xf32, #tpu.memory_space<vmem>>, vector<4x128xf32>,
    %c84_112 = arith.constant 84 : index
    %c128_113 = arith.constant 128 : index
    %113 = vector.load %arg6[%c84_112, %c128_113] : memref<108x1024xf32, #tpu.memory_space<vmem>>, vector<4x128xf32>
    tpu.vector_store %arg6[%c84_112, %c128_113], %110 {strides = array<i32>} : memref<108x1024xf32, #tpu.memory_space<vmem>>, vector<4x128xf32>,
    %114 = vector.extract_strided_slice %97 {offsets = [0, 11], sizes = [4, 128], strides = [1, 1]} : vector<4x256xf32> to vector<4x128xf32>
    %c16_114 = arith.constant 16 : index
    %c384_115 = arith.constant 384 : index
    %115 = vector.load %arg6[%c16_114, %c384_115] : memref<108x1024xf32, #tpu.memory_space<vmem>>, vector<4x128xf32>
    tpu.vector_store %arg6[%c16_114, %c384_115], %114 {strides = array<i32>} : memref<108x1024xf32, #tpu.memory_space<vmem>>, vector<4x128xf32>,
    %c52_116 = arith.constant 52 : index
    %c256_117 = arith.constant 256 : index
    %116 = vector.load %arg6[%c52_116, %c256_117] : memref<108x1024xf32, #tpu.memory_space<vmem>>, vector<4x128xf32>
    tpu.vector_store %arg6[%c52_116, %c256_117], %114 {strides = array<i32>} : memref<108x1024xf32, #tpu.memory_space<vmem>>, vector<4x128xf32>,
    %c88_118 = arith.constant 88 : index
    %c128_119 = arith.constant 128 : index
    %117 = vector.load %arg6[%c88_118, %c128_119] : memref<108x1024xf32, #tpu.memory_space<vmem>>, vector<4x128xf32>
    tpu.vector_store %arg6[%c88_118, %c128_119], %114 {strides = array<i32>} : memref<108x1024xf32, #tpu.memory_space<vmem>>, vector<4x128xf32>,
    %118 = vector.extract_strided_slice %97 {offsets = [0, 12], sizes = [4, 128], strides = [1, 1]} : vector<4x256xf32> to vector<4x128xf32>
    %c20_120 = arith.constant 20 : index
    %c384_121 = arith.constant 384 : index
    %119 = vector.load %arg6[%c20_120, %c384_121] : memref<108x1024xf32, #tpu.memory_space<vmem>>, vector<4x128xf32>
    tpu.vector_store %arg6[%c20_120, %c384_121], %118 {strides = array<i32>} : memref<108x1024xf32, #tpu.memory_space<vmem>>, vector<4x128xf32>,
    %c56_122 = arith.constant 56 : index
    %c256_123 = arith.constant 256 : index
    %120 = vector.load %arg6[%c56_122, %c256_123] : memref<108x1024xf32, #tpu.memory_space<vmem>>, vector<4x128xf32>
    tpu.vector_store %arg6[%c56_122, %c256_123], %118 {strides = array<i32>} : memref<108x1024xf32, #tpu.memory_space<vmem>>, vector<4x128xf32>,
    %c92_124 = arith.constant 92 : index
    %c128_125 = arith.constant 128 : index
    %121 = vector.load %arg6[%c92_124, %c128_125] : memref<108x1024xf32, #tpu.memory_space<vmem>>, vector<4x128xf32>
    tpu.vector_store %arg6[%c92_124, %c128_125], %118 {strides = array<i32>} : memref<108x1024xf32, #tpu.memory_space<vmem>>, vector<4x128xf32>,
    %122 = vector.extract_strided_slice %97 {offsets = [0, 20], sizes = [4, 128], strides = [1, 1]} : vector<4x256xf32> to vector<4x128xf32>
    %c24_126 = arith.constant 24 : index
    %c384_127 = arith.constant 384 : index
    %123 = vector.load %arg6[%c24_126, %c384_127] : memref<108x1024xf32, #tpu.memory_space<vmem>>, vector<4x128xf32>
    tpu.vector_store %arg6[%c24_126, %c384_127], %122 {strides = array<i32>} : memref<108x1024xf32, #tpu.memory_space<vmem>>, vector<4x128xf32>,
    %c60_128 = arith.constant 60 : index
    %c256_129 = arith.constant 256 : index
    %124 = vector.load %arg6[%c60_128, %c256_129] : memref<108x1024xf32, #tpu.memory_space<vmem>>, vector<4x128xf32>
    tpu.vector_store %arg6[%c60_128, %c256_129], %122 {strides = array<i32>} : memref<108x1024xf32, #tpu.memory_space<vmem>>, vector<4x128xf32>,
    %c96_130 = arith.constant 96 : index
    %c128_131 = arith.constant 128 : index
    %125 = vector.load %arg6[%c96_130, %c128_131] : memref<108x1024xf32, #tpu.memory_space<vmem>>, vector<4x128xf32>
    tpu.vector_store %arg6[%c96_130, %c128_131], %122 {strides = array<i32>} : memref<108x1024xf32, #tpu.memory_space<vmem>>, vector<4x128xf32>,
    %126 = vector.extract_strided_slice %97 {offsets = [0, 21], sizes = [4, 128], strides = [1, 1]} : vector<4x256xf32> to vector<4x128xf32>
    %c28_132 = arith.constant 28 : index
    %c384_133 = arith.constant 384 : index
    %127 = vector.load %arg6[%c28_132, %c384_133] : memref<108x1024xf32, #tpu.memory_space<vmem>>, vector<4x128xf32>
    tpu.vector_store %arg6[%c28_132, %c384_133], %126 {strides = array<i32>} : memref<108x1024xf32, #tpu.memory_space<vmem>>, vector<4x128xf32>,
    %c64_134 = arith.constant 64 : index
    %c256_135 = arith.constant 256 : index
    %128 = vector.load %arg6[%c64_134, %c256_135] : memref<108x1024xf32, #tpu.memory_space<vmem>>, vector<4x128xf32>
    tpu.vector_store %arg6[%c64_134, %c256_135], %126 {strides = array<i32>} : memref<108x1024xf32, #tpu.memory_space<vmem>>, vector<4x128xf32>,
    %c100_136 = arith.constant 100 : index
    %c128_137 = arith.constant 128 : index
    %129 = vector.load %arg6[%c100_136, %c128_137] : memref<108x1024xf32, #tpu.memory_space<vmem>>, vector<4x128xf32>
    tpu.vector_store %arg6[%c100_136, %c128_137], %126 {strides = array<i32>} : memref<108x1024xf32, #tpu.memory_space<vmem>>, vector<4x128xf32>,
    %130 = vector.extract_strided_slice %97 {offsets = [0, 22], sizes = [4, 128], strides = [1, 1]} : vector<4x256xf32> to vector<4x128xf32>
    %c32_138 = arith.constant 32 : index
    %c384_139 = arith.constant 384 : index
    %131 = vector.load %arg6[%c32_138, %c384_139] : memref<108x1024xf32, #tpu.memory_space<vmem>>, vector<4x128xf32>
    tpu.vector_store %arg6[%c32_138, %c384_139], %130 {strides = array<i32>} : memref<108x1024xf32, #tpu.memory_space<vmem>>, vector<4x128xf32>,
    %c68_140 = arith.constant 68 : index
    %c256_141 = arith.constant 256 : index
    %132 = vector.load %arg6[%c68_140, %c256_141] : memref<108x1024xf32, #tpu.memory_space<vmem>>, vector<4x128xf32>
    tpu.vector_store %arg6[%c68_140, %c256_141], %130 {strides = array<i32>} : memref<108x1024xf32, #tpu.memory_space<vmem>>, vector<4x128xf32>,
    %c104_142 = arith.constant 104 : index
    %c128_143 = arith.constant 128 : index
    %133 = vector.load %arg6[%c104_142, %c128_143] : memref<108x1024xf32, #tpu.memory_space<vmem>>, vector<4x128xf32>
    tpu.vector_store %arg6[%c104_142, %c128_143], %130 {strides = array<i32>} : memref<108x1024xf32, #tpu.memory_space<vmem>>, vector<4x128xf32>,
    %c4_i32 = arith.constant 4 : i32
    %134 = arith.addi %0, %c4_i32 : i32
    %c0_144 = arith.constant 0 : index
    %135 = arith.index_cast %134 : i32 to index
    %c0_145 = arith.constant 0 : index
    %c0_146 = arith.constant 0 : index
    %136 = vector.load %arg2[%c0_144, %135, %c0_145, %c0_146] : memref<1x10x4x256xf32, #tpu.memory_space<vmem>>, vector<1x1x4x256xf32>
    %137 = vector.shape_cast %136 : vector<1x1x4x256xf32> to vector<4x256xf32>
    %138 = vector.extract_strided_slice %137 {offsets = [0, 0], sizes = [4, 128], strides = [1, 1]} : vector<4x256xf32> to vector<4x128xf32>
    %c0_147 = arith.constant 0 : index
    %c512 = arith.constant 512 : index
    %139 = vector.load %arg6[%c0_147, %c512] : memref<108x1024xf32, #tpu.memory_space<vmem>>, vector<4x128xf32>
    tpu.vector_store %arg6[%c0_147, %c512], %138 {strides = array<i32>} : memref<108x1024xf32, #tpu.memory_space<vmem>>, vector<4x128xf32>,
    %c36_148 = arith.constant 36 : index
    %c384_149 = arith.constant 384 : index
    %140 = vector.load %arg6[%c36_148, %c384_149] : memref<108x1024xf32, #tpu.memory_space<vmem>>, vector<4x128xf32>
    tpu.vector_store %arg6[%c36_148, %c384_149], %138 {strides = array<i32>} : memref<108x1024xf32, #tpu.memory_space<vmem>>, vector<4x128xf32>,
    %c72_150 = arith.constant 72 : index
    %c256_151 = arith.constant 256 : index
    %141 = vector.load %arg6[%c72_150, %c256_151] : memref<108x1024xf32, #tpu.memory_space<vmem>>, vector<4x128xf32>
    tpu.vector_store %arg6[%c72_150, %c256_151], %138 {strides = array<i32>} : memref<108x1024xf32, #tpu.memory_space<vmem>>, vector<4x128xf32>,
    %142 = vector.extract_strided_slice %137 {offsets = [0, 1], sizes = [4, 128], strides = [1, 1]} : vector<4x256xf32> to vector<4x128xf32>
    %c4_152 = arith.constant 4 : index
    %c512_153 = arith.constant 512 : index
    %143 = vector.load %arg6[%c4_152, %c512_153] : memref<108x1024xf32, #tpu.memory_space<vmem>>, vector<4x128xf32>
    tpu.vector_store %arg6[%c4_152, %c512_153], %142 {strides = array<i32>} : memref<108x1024xf32, #tpu.memory_space<vmem>>, vector<4x128xf32>,
    %c40_154 = arith.constant 40 : index
    %c384_155 = arith.constant 384 : index
    %144 = vector.load %arg6[%c40_154, %c384_155] : memref<108x1024xf32, #tpu.memory_space<vmem>>, vector<4x128xf32>
    tpu.vector_store %arg6[%c40_154, %c384_155], %142 {strides = array<i32>} : memref<108x1024xf32, #tpu.memory_space<vmem>>, vector<4x128xf32>,
    %c76_156 = arith.constant 76 : index
    %c256_157 = arith.constant 256 : index
    %145 = vector.load %arg6[%c76_156, %c256_157] : memref<108x1024xf32, #tpu.memory_space<vmem>>, vector<4x128xf32>
    tpu.vector_store %arg6[%c76_156, %c256_157], %142 {strides = array<i32>} : memref<108x1024xf32, #tpu.memory_space<vmem>>, vector<4x128xf32>,
    %146 = vector.extract_strided_slice %137 {offsets = [0, 2], sizes = [4, 128], strides = [1, 1]} : vector<4x256xf32> to vector<4x128xf32>
    %c8_158 = arith.constant 8 : index
    %c512_159 = arith.constant 512 : index
    %147 = vector.load %arg6[%c8_158, %c512_159] : memref<108x1024xf32, #tpu.memory_space<vmem>>, vector<4x128xf32>
    tpu.vector_store %arg6[%c8_158, %c512_159], %146 {strides = array<i32>} : memref<108x1024xf32, #tpu.memory_space<vmem>>, vector<4x128xf32>,
    %c44_160 = arith.constant 44 : index
    %c384_161 = arith.constant 384 : index
    %148 = vector.load %arg6[%c44_160, %c384_161] : memref<108x1024xf32, #tpu.memory_space<vmem>>, vector<4x128xf32>
    tpu.vector_store %arg6[%c44_160, %c384_161], %146 {strides = array<i32>} : memref<108x1024xf32, #tpu.memory_space<vmem>>, vector<4x128xf32>,
    %c80_162 = arith.constant 80 : index
    %c256_163 = arith.constant 256 : index
    %149 = vector.load %arg6[%c80_162, %c256_163] : memref<108x1024xf32, #tpu.memory_space<vmem>>, vector<4x128xf32>
    tpu.vector_store %arg6[%c80_162, %c256_163], %146 {strides = array<i32>} : memref<108x1024xf32, #tpu.memory_space<vmem>>, vector<4x128xf32>,
    %150 = vector.extract_strided_slice %137 {offsets = [0, 10], sizes = [4, 128], strides = [1, 1]} : vector<4x256xf32> to vector<4x128xf32>
    %c12_164 = arith.constant 12 : index
    %c512_165 = arith.constant 512 : index
    %151 = vector.load %arg6[%c12_164, %c512_165] : memref<108x1024xf32, #tpu.memory_space<vmem>>, vector<4x128xf32>
    tpu.vector_store %arg6[%c12_164, %c512_165], %150 {strides = array<i32>} : memref<108x1024xf32, #tpu.memory_space<vmem>>, vector<4x128xf32>,
    %c48_166 = arith.constant 48 : index
    %c384_167 = arith.constant 384 : index
    %152 = vector.load %arg6[%c48_166, %c384_167] : memref<108x1024xf32, #tpu.memory_space<vmem>>, vector<4x128xf32>
    tpu.vector_store %arg6[%c48_166, %c384_167], %150 {strides = array<i32>} : memref<108x1024xf32, #tpu.memory_space<vmem>>, vector<4x128xf32>,
    %c84_168 = arith.constant 84 : index
    %c256_169 = arith.constant 256 : index
    %153 = vector.load %arg6[%c84_168, %c256_169] : memref<108x1024xf32, #tpu.memory_space<vmem>>, vector<4x128xf32>
    tpu.vector_store %arg6[%c84_168, %c256_169], %150 {strides = array<i32>} : memref<108x1024xf32, #tpu.memory_space<vmem>>, vector<4x128xf32>,
    %154 = vector.extract_strided_slice %137 {offsets = [0, 11], sizes = [4, 128], strides = [1, 1]} : vector<4x256xf32> to vector<4x128xf32>
    %c16_170 = arith.constant 16 : index
    %c512_171 = arith.constant 512 : index
    %155 = vector.load %arg6[%c16_170, %c512_171] : memref<108x1024xf32, #tpu.memory_space<vmem>>, vector<4x128xf32>
    tpu.vector_store %arg6[%c16_170, %c512_171], %154 {strides = array<i32>} : memref<108x1024xf32, #tpu.memory_space<vmem>>, vector<4x128xf32>,
    %c52_172 = arith.constant 52 : index
    %c384_173 = arith.constant 384 : index
    %156 = vector.load %arg6[%c52_172, %c384_173] : memref<108x1024xf32, #tpu.memory_space<vmem>>, vector<4x128xf32>
    tpu.vector_store %arg6[%c52_172, %c384_173], %154 {strides = array<i32>} : memref<108x1024xf32, #tpu.memory_space<vmem>>, vector<4x128xf32>,
    %c88_174 = arith.constant 88 : index
    %c256_175 = arith.constant 256 : index
    %157 = vector.load %arg6[%c88_174, %c256_175] : memref<108x1024xf32, #tpu.memory_space<vmem>>, vector<4x128xf32>
    tpu.vector_store %arg6[%c88_174, %c256_175], %154 {strides = array<i32>} : memref<108x1024xf32, #tpu.memory_space<vmem>>, vector<4x128xf32>,
    %158 = vector.extract_strided_slice %137 {offsets = [0, 12], sizes = [4, 128], strides = [1, 1]} : vector<4x256xf32> to vector<4x128xf32>
    %c20_176 = arith.constant 20 : index
    %c512_177 = arith.constant 512 : index
    %159 = vector.load %arg6[%c20_176, %c512_177] : memref<108x1024xf32, #tpu.memory_space<vmem>>, vector<4x128xf32>
    tpu.vector_store %arg6[%c20_176, %c512_177], %158 {strides = array<i32>} : memref<108x1024xf32, #tpu.memory_space<vmem>>, vector<4x128xf32>,
    %c56_178 = arith.constant 56 : index
    %c384_179 = arith.constant 384 : index
    %160 = vector.load %arg6[%c56_178, %c384_179] : memref<108x1024xf32, #tpu.memory_space<vmem>>, vector<4x128xf32>
    tpu.vector_store %arg6[%c56_178, %c384_179], %158 {strides = array<i32>} : memref<108x1024xf32, #tpu.memory_space<vmem>>, vector<4x128xf32>,
    %c92_180 = arith.constant 92 : index
    %c256_181 = arith.constant 256 : index
    %161 = vector.load %arg6[%c92_180, %c256_181] : memref<108x1024xf32, #tpu.memory_space<vmem>>, vector<4x128xf32>
    tpu.vector_store %arg6[%c92_180, %c256_181], %158 {strides = array<i32>} : memref<108x1024xf32, #tpu.memory_space<vmem>>, vector<4x128xf32>,
    %162 = vector.extract_strided_slice %137 {offsets = [0, 20], sizes = [4, 128], strides = [1, 1]} : vector<4x256xf32> to vector<4x128xf32>
    %c24_182 = arith.constant 24 : index
    %c512_183 = arith.constant 512 : index
    %163 = vector.load %arg6[%c24_182, %c512_183] : memref<108x1024xf32, #tpu.memory_space<vmem>>, vector<4x128xf32>
    tpu.vector_store %arg6[%c24_182, %c512_183], %162 {strides = array<i32>} : memref<108x1024xf32, #tpu.memory_space<vmem>>, vector<4x128xf32>,
    %c60_184 = arith.constant 60 : index
    %c384_185 = arith.constant 384 : index
    %164 = vector.load %arg6[%c60_184, %c384_185] : memref<108x1024xf32, #tpu.memory_space<vmem>>, vector<4x128xf32>
    tpu.vector_store %arg6[%c60_184, %c384_185], %162 {strides = array<i32>} : memref<108x1024xf32, #tpu.memory_space<vmem>>, vector<4x128xf32>,
    %c96_186 = arith.constant 96 : index
    %c256_187 = arith.constant 256 : index
    %165 = vector.load %arg6[%c96_186, %c256_187] : memref<108x1024xf32, #tpu.memory_space<vmem>>, vector<4x128xf32>
    tpu.vector_store %arg6[%c96_186, %c256_187], %162 {strides = array<i32>} : memref<108x1024xf32, #tpu.memory_space<vmem>>, vector<4x128xf32>,
    %166 = vector.extract_strided_slice %137 {offsets = [0, 21], sizes = [4, 128], strides = [1, 1]} : vector<4x256xf32> to vector<4x128xf32>
    %c28_188 = arith.constant 28 : index
    %c512_189 = arith.constant 512 : index
    %167 = vector.load %arg6[%c28_188, %c512_189] : memref<108x1024xf32, #tpu.memory_space<vmem>>, vector<4x128xf32>
    tpu.vector_store %arg6[%c28_188, %c512_189], %166 {strides = array<i32>} : memref<108x1024xf32, #tpu.memory_space<vmem>>, vector<4x128xf32>,
    %c64_190 = arith.constant 64 : index
    %c384_191 = arith.constant 384 : index
    %168 = vector.load %arg6[%c64_190, %c384_191] : memref<108x1024xf32, #tpu.memory_space<vmem>>, vector<4x128xf32>
    tpu.vector_store %arg6[%c64_190, %c384_191], %166 {strides = array<i32>} : memref<108x1024xf32, #tpu.memory_space<vmem>>, vector<4x128xf32>,
    %c100_192 = arith.constant 100 : index
    %c256_193 = arith.constant 256 : index
    %169 = vector.load %arg6[%c100_192, %c256_193] : memref<108x1024xf32, #tpu.memory_space<vmem>>, vector<4x128xf32>
    tpu.vector_store %arg6[%c100_192, %c256_193], %166 {strides = array<i32>} : memref<108x1024xf32, #tpu.memory_space<vmem>>, vector<4x128xf32>,
    %170 = vector.extract_strided_slice %137 {offsets = [0, 22], sizes = [4, 128], strides = [1, 1]} : vector<4x256xf32> to vector<4x128xf32>
    %c32_194 = arith.constant 32 : index
    %c512_195 = arith.constant 512 : index
    %171 = vector.load %arg6[%c32_194, %c512_195] : memref<108x1024xf32, #tpu.memory_space<vmem>>, vector<4x128xf32>
    tpu.vector_store %arg6[%c32_194, %c512_195], %170 {strides = array<i32>} : memref<108x1024xf32, #tpu.memory_space<vmem>>, vector<4x128xf32>,
    %c68_196 = arith.constant 68 : index
    %c384_197 = arith.constant 384 : index
    %172 = vector.load %arg6[%c68_196, %c384_197] : memref<108x1024xf32, #tpu.memory_space<vmem>>, vector<4x128xf32>
    tpu.vector_store %arg6[%c68_196, %c384_197], %170 {strides = array<i32>} : memref<108x1024xf32, #tpu.memory_space<vmem>>, vector<4x128xf32>,
    %c104_198 = arith.constant 104 : index
    %c256_199 = arith.constant 256 : index
    %173 = vector.load %arg6[%c104_198, %c256_199] : memref<108x1024xf32, #tpu.memory_space<vmem>>, vector<4x128xf32>
    tpu.vector_store %arg6[%c104_198, %c256_199], %170 {strides = array<i32>} : memref<108x1024xf32, #tpu.memory_space<vmem>>, vector<4x128xf32>,
    %c5_i32 = arith.constant 5 : i32
    %174 = arith.addi %0, %c5_i32 : i32
    %c0_200 = arith.constant 0 : index
    %175 = arith.index_cast %174 : i32 to index
    %c0_201 = arith.constant 0 : index
    %c0_202 = arith.constant 0 : index
    %176 = vector.load %arg2[%c0_200, %175, %c0_201, %c0_202] : memref<1x10x4x256xf32, #tpu.memory_space<vmem>>, vector<1x1x4x256xf32>
    %177 = vector.shape_cast %176 : vector<1x1x4x256xf32> to vector<4x256xf32>
    %178 = vector.extract_strided_slice %177 {offsets = [0, 0], sizes = [4, 128], strides = [1, 1]} : vector<4x256xf32> to vector<4x128xf32>
    %c0_203 = arith.constant 0 : index
    %c640 = arith.constant 640 : index
    %179 = vector.load %arg6[%c0_203, %c640] : memref<108x1024xf32, #tpu.memory_space<vmem>>, vector<4x128xf32>
    tpu.vector_store %arg6[%c0_203, %c640], %178 {strides = array<i32>} : memref<108x1024xf32, #tpu.memory_space<vmem>>, vector<4x128xf32>,
    %c36_204 = arith.constant 36 : index
    %c512_205 = arith.constant 512 : index
    %180 = vector.load %arg6[%c36_204, %c512_205] : memref<108x1024xf32, #tpu.memory_space<vmem>>, vector<4x128xf32>
    tpu.vector_store %arg6[%c36_204, %c512_205], %178 {strides = array<i32>} : memref<108x1024xf32, #tpu.memory_space<vmem>>, vector<4x128xf32>,
    %c72_206 = arith.constant 72 : index
    %c384_207 = arith.constant 384 : index
    %181 = vector.load %arg6[%c72_206, %c384_207] : memref<108x1024xf32, #tpu.memory_space<vmem>>, vector<4x128xf32>
    tpu.vector_store %arg6[%c72_206, %c384_207], %178 {strides = array<i32>} : memref<108x1024xf32, #tpu.memory_space<vmem>>, vector<4x128xf32>,
    %182 = vector.extract_strided_slice %177 {offsets = [0, 1], sizes = [4, 128], strides = [1, 1]} : vector<4x256xf32> to vector<4x128xf32>
    %c4_208 = arith.constant 4 : index
    %c640_209 = arith.constant 640 : index
    %183 = vector.load %arg6[%c4_208, %c640_209] : memref<108x1024xf32, #tpu.memory_space<vmem>>, vector<4x128xf32>
    tpu.vector_store %arg6[%c4_208, %c640_209], %182 {strides = array<i32>} : memref<108x1024xf32, #tpu.memory_space<vmem>>, vector<4x128xf32>,
    %c40_210 = arith.constant 40 : index
    %c512_211 = arith.constant 512 : index
    %184 = vector.load %arg6[%c40_210, %c512_211] : memref<108x1024xf32, #tpu.memory_space<vmem>>, vector<4x128xf32>
    tpu.vector_store %arg6[%c40_210, %c512_211], %182 {strides = array<i32>} : memref<108x1024xf32, #tpu.memory_space<vmem>>, vector<4x128xf32>,
    %c76_212 = arith.constant 76 : index
    %c384_213 = arith.constant 384 : index
    %185 = vector.load %arg6[%c76_212, %c384_213] : memref<108x1024xf32, #tpu.memory_space<vmem>>, vector<4x128xf32>
    tpu.vector_store %arg6[%c76_212, %c384_213], %182 {strides = array<i32>} : memref<108x1024xf32, #tpu.memory_space<vmem>>, vector<4x128xf32>,
    %186 = vector.extract_strided_slice %177 {offsets = [0, 2], sizes = [4, 128], strides = [1, 1]} : vector<4x256xf32> to vector<4x128xf32>
    %c8_214 = arith.constant 8 : index
    %c640_215 = arith.constant 640 : index
    %187 = vector.load %arg6[%c8_214, %c640_215] : memref<108x1024xf32, #tpu.memory_space<vmem>>, vector<4x128xf32>
    tpu.vector_store %arg6[%c8_214, %c640_215], %186 {strides = array<i32>} : memref<108x1024xf32, #tpu.memory_space<vmem>>, vector<4x128xf32>,
    %c44_216 = arith.constant 44 : index
    %c512_217 = arith.constant 512 : index
    %188 = vector.load %arg6[%c44_216, %c512_217] : memref<108x1024xf32, #tpu.memory_space<vmem>>, vector<4x128xf32>
    tpu.vector_store %arg6[%c44_216, %c512_217], %186 {strides = array<i32>} : memref<108x1024xf32, #tpu.memory_space<vmem>>, vector<4x128xf32>,
    %c80_218 = arith.constant 80 : index
    %c384_219 = arith.constant 384 : index
    %189 = vector.load %arg6[%c80_218, %c384_219] : memref<108x1024xf32, #tpu.memory_space<vmem>>, vector<4x128xf32>
    tpu.vector_store %arg6[%c80_218, %c384_219], %186 {strides = array<i32>} : memref<108x1024xf32, #tpu.memory_space<vmem>>, vector<4x128xf32>,
    %190 = vector.extract_strided_slice %177 {offsets = [0, 10], sizes = [4, 128], strides = [1, 1]} : vector<4x256xf32> to vector<4x128xf32>
    %c12_220 = arith.constant 12 : index
    %c640_221 = arith.constant 640 : index
    %191 = vector.load %arg6[%c12_220, %c640_221] : memref<108x1024xf32, #tpu.memory_space<vmem>>, vector<4x128xf32>
    tpu.vector_store %arg6[%c12_220, %c640_221], %190 {strides = array<i32>} : memref<108x1024xf32, #tpu.memory_space<vmem>>, vector<4x128xf32>,
    %c48_222 = arith.constant 48 : index
    %c512_223 = arith.constant 512 : index
    %192 = vector.load %arg6[%c48_222, %c512_223] : memref<108x1024xf32, #tpu.memory_space<vmem>>, vector<4x128xf32>
    tpu.vector_store %arg6[%c48_222, %c512_223], %190 {strides = array<i32>} : memref<108x1024xf32, #tpu.memory_space<vmem>>, vector<4x128xf32>,
    %c84_224 = arith.constant 84 : index
    %c384_225 = arith.constant 384 : index
    %193 = vector.load %arg6[%c84_224, %c384_225] : memref<108x1024xf32, #tpu.memory_space<vmem>>, vector<4x128xf32>
    tpu.vector_store %arg6[%c84_224, %c384_225], %190 {strides = array<i32>} : memref<108x1024xf32, #tpu.memory_space<vmem>>, vector<4x128xf32>,
    %194 = vector.extract_strided_slice %177 {offsets = [0, 11], sizes = [4, 128], strides = [1, 1]} : vector<4x256xf32> to vector<4x128xf32>
    %c16_226 = arith.constant 16 : index
    %c640_227 = arith.constant 640 : index
    %195 = vector.load %arg6[%c16_226, %c640_227] : memref<108x1024xf32, #tpu.memory_space<vmem>>, vector<4x128xf32>
    tpu.vector_store %arg6[%c16_226, %c640_227], %194 {strides = array<i32>} : memref<108x1024xf32, #tpu.memory_space<vmem>>, vector<4x128xf32>,
    %c52_228 = arith.constant 52 : index
    %c512_229 = arith.constant 512 : index
    %196 = vector.load %arg6[%c52_228, %c512_229] : memref<108x1024xf32, #tpu.memory_space<vmem>>, vector<4x128xf32>
    tpu.vector_store %arg6[%c52_228, %c512_229], %194 {strides = array<i32>} : memref<108x1024xf32, #tpu.memory_space<vmem>>, vector<4x128xf32>,
    %c88_230 = arith.constant 88 : index
    %c384_231 = arith.constant 384 : index
    %197 = vector.load %arg6[%c88_230, %c384_231] : memref<108x1024xf32, #tpu.memory_space<vmem>>, vector<4x128xf32>
    tpu.vector_store %arg6[%c88_230, %c384_231], %194 {strides = array<i32>} : memref<108x1024xf32, #tpu.memory_space<vmem>>, vector<4x128xf32>,
    %198 = vector.extract_strided_slice %177 {offsets = [0, 12], sizes = [4, 128], strides = [1, 1]} : vector<4x256xf32> to vector<4x128xf32>
    %c20_232 = arith.constant 20 : index
    %c640_233 = arith.constant 640 : index
    %199 = vector.load %arg6[%c20_232, %c640_233] : memref<108x1024xf32, #tpu.memory_space<vmem>>, vector<4x128xf32>
    tpu.vector_store %arg6[%c20_232, %c640_233], %198 {strides = array<i32>} : memref<108x1024xf32, #tpu.memory_space<vmem>>, vector<4x128xf32>,
    %c56_234 = arith.constant 56 : index
    %c512_235 = arith.constant 512 : index
    %200 = vector.load %arg6[%c56_234, %c512_235] : memref<108x1024xf32, #tpu.memory_space<vmem>>, vector<4x128xf32>
    tpu.vector_store %arg6[%c56_234, %c512_235], %198 {strides = array<i32>} : memref<108x1024xf32, #tpu.memory_space<vmem>>, vector<4x128xf32>,
    %c92_236 = arith.constant 92 : index
    %c384_237 = arith.constant 384 : index
    %201 = vector.load %arg6[%c92_236, %c384_237] : memref<108x1024xf32, #tpu.memory_space<vmem>>, vector<4x128xf32>
    tpu.vector_store %arg6[%c92_236, %c384_237], %198 {strides = array<i32>} : memref<108x1024xf32, #tpu.memory_space<vmem>>, vector<4x128xf32>,
    %202 = vector.extract_strided_slice %177 {offsets = [0, 20], sizes = [4, 128], strides = [1, 1]} : vector<4x256xf32> to vector<4x128xf32>
    %c24_238 = arith.constant 24 : index
    %c640_239 = arith.constant 640 : index
    %203 = vector.load %arg6[%c24_238, %c640_239] : memref<108x1024xf32, #tpu.memory_space<vmem>>, vector<4x128xf32>
    tpu.vector_store %arg6[%c24_238, %c640_239], %202 {strides = array<i32>} : memref<108x1024xf32, #tpu.memory_space<vmem>>, vector<4x128xf32>,
    %c60_240 = arith.constant 60 : index
    %c512_241 = arith.constant 512 : index
    %204 = vector.load %arg6[%c60_240, %c512_241] : memref<108x1024xf32, #tpu.memory_space<vmem>>, vector<4x128xf32>
    tpu.vector_store %arg6[%c60_240, %c512_241], %202 {strides = array<i32>} : memref<108x1024xf32, #tpu.memory_space<vmem>>, vector<4x128xf32>,
    %c96_242 = arith.constant 96 : index
    %c384_243 = arith.constant 384 : index
    %205 = vector.load %arg6[%c96_242, %c384_243] : memref<108x1024xf32, #tpu.memory_space<vmem>>, vector<4x128xf32>
    tpu.vector_store %arg6[%c96_242, %c384_243], %202 {strides = array<i32>} : memref<108x1024xf32, #tpu.memory_space<vmem>>, vector<4x128xf32>,
    %206 = vector.extract_strided_slice %177 {offsets = [0, 21], sizes = [4, 128], strides = [1, 1]} : vector<4x256xf32> to vector<4x128xf32>
    %c28_244 = arith.constant 28 : index
    %c640_245 = arith.constant 640 : index
    %207 = vector.load %arg6[%c28_244, %c640_245] : memref<108x1024xf32, #tpu.memory_space<vmem>>, vector<4x128xf32>
    tpu.vector_store %arg6[%c28_244, %c640_245], %206 {strides = array<i32>} : memref<108x1024xf32, #tpu.memory_space<vmem>>, vector<4x128xf32>,
    %c64_246 = arith.constant 64 : index
    %c512_247 = arith.constant 512 : index
    %208 = vector.load %arg6[%c64_246, %c512_247] : memref<108x1024xf32, #tpu.memory_space<vmem>>, vector<4x128xf32>
    tpu.vector_store %arg6[%c64_246, %c512_247], %206 {strides = array<i32>} : memref<108x1024xf32, #tpu.memory_space<vmem>>, vector<4x128xf32>,
    %c100_248 = arith.constant 100 : index
    %c384_249 = arith.constant 384 : index
    %209 = vector.load %arg6[%c100_248, %c384_249] : memref<108x1024xf32, #tpu.memory_space<vmem>>, vector<4x128xf32>
    tpu.vector_store %arg6[%c100_248, %c384_249], %206 {strides = array<i32>} : memref<108x1024xf32, #tpu.memory_space<vmem>>, vector<4x128xf32>,
    %210 = vector.extract_strided_slice %177 {offsets = [0, 22], sizes = [4, 128], strides = [1, 1]} : vector<4x256xf32> to vector<4x128xf32>
    %c32_250 = arith.constant 32 : index
    %c640_251 = arith.constant 640 : index
    %211 = vector.load %arg6[%c32_250, %c640_251] : memref<108x1024xf32, #tpu.memory_space<vmem>>, vector<4x128xf32>
    tpu.vector_store %arg6[%c32_250, %c640_251], %210 {strides = array<i32>} : memref<108x1024xf32, #tpu.memory_space<vmem>>, vector<4x128xf32>,
    %c68_252 = arith.constant 68 : index
    %c512_253 = arith.constant 512 : index
    %212 = vector.load %arg6[%c68_252, %c512_253] : memref<108x1024xf32, #tpu.memory_space<vmem>>, vector<4x128xf32>
    tpu.vector_store %arg6[%c68_252, %c512_253], %210 {strides = array<i32>} : memref<108x1024xf32, #tpu.memory_space<vmem>>, vector<4x128xf32>,
    %c104_254 = arith.constant 104 : index
    %c384_255 = arith.constant 384 : index
    %213 = vector.load %arg6[%c104_254, %c384_255] : memref<108x1024xf32, #tpu.memory_space<vmem>>, vector<4x128xf32>
    tpu.vector_store %arg6[%c104_254, %c384_255], %210 {strides = array<i32>} : memref<108x1024xf32, #tpu.memory_space<vmem>>, vector<4x128xf32>,
    %c6_i32 = arith.constant 6 : i32
    %214 = arith.addi %0, %c6_i32 : i32
    %c0_256 = arith.constant 0 : index
    %215 = arith.index_cast %214 : i32 to index
    %c0_257 = arith.constant 0 : index
    %c0_258 = arith.constant 0 : index
    %216 = vector.load %arg2[%c0_256, %215, %c0_257, %c0_258] : memref<1x10x4x256xf32, #tpu.memory_space<vmem>>, vector<1x1x4x256xf32>
    %217 = vector.shape_cast %216 : vector<1x1x4x256xf32> to vector<4x256xf32>
    %218 = vector.extract_strided_slice %217 {offsets = [0, 0], sizes = [4, 128], strides = [1, 1]} : vector<4x256xf32> to vector<4x128xf32>
    %c0_259 = arith.constant 0 : index
    %c768 = arith.constant 768 : index
    %219 = vector.load %arg6[%c0_259, %c768] : memref<108x1024xf32, #tpu.memory_space<vmem>>, vector<4x128xf32>
    tpu.vector_store %arg6[%c0_259, %c768], %218 {strides = array<i32>} : memref<108x1024xf32, #tpu.memory_space<vmem>>, vector<4x128xf32>,
    %c36_260 = arith.constant 36 : index
    %c640_261 = arith.constant 640 : index
    %220 = vector.load %arg6[%c36_260, %c640_261] : memref<108x1024xf32, #tpu.memory_space<vmem>>, vector<4x128xf32>
    tpu.vector_store %arg6[%c36_260, %c640_261], %218 {strides = array<i32>} : memref<108x1024xf32, #tpu.memory_space<vmem>>, vector<4x128xf32>,
    %c72_262 = arith.constant 72 : index
    %c512_263 = arith.constant 512 : index
    %221 = vector.load %arg6[%c72_262, %c512_263] : memref<108x1024xf32, #tpu.memory_space<vmem>>, vector<4x128xf32>
    tpu.vector_store %arg6[%c72_262, %c512_263], %218 {strides = array<i32>} : memref<108x1024xf32, #tpu.memory_space<vmem>>, vector<4x128xf32>,
    %222 = vector.extract_strided_slice %217 {offsets = [0, 1], sizes = [4, 128], strides = [1, 1]} : vector<4x256xf32> to vector<4x128xf32>
    %c4_264 = arith.constant 4 : index
    %c768_265 = arith.constant 768 : index
    %223 = vector.load %arg6[%c4_264, %c768_265] : memref<108x1024xf32, #tpu.memory_space<vmem>>, vector<4x128xf32>
    tpu.vector_store %arg6[%c4_264, %c768_265], %222 {strides = array<i32>} : memref<108x1024xf32, #tpu.memory_space<vmem>>, vector<4x128xf32>,
    %c40_266 = arith.constant 40 : index
    %c640_267 = arith.constant 640 : index
    %224 = vector.load %arg6[%c40_266, %c640_267] : memref<108x1024xf32, #tpu.memory_space<vmem>>, vector<4x128xf32>
    tpu.vector_store %arg6[%c40_266, %c640_267], %222 {strides = array<i32>} : memref<108x1024xf32, #tpu.memory_space<vmem>>, vector<4x128xf32>,
    %c76_268 = arith.constant 76 : index
    %c512_269 = arith.constant 512 : index
    %225 = vector.load %arg6[%c76_268, %c512_269] : memref<108x1024xf32, #tpu.memory_space<vmem>>, vector<4x128xf32>
    tpu.vector_store %arg6[%c76_268, %c512_269], %222 {strides = array<i32>} : memref<108x1024xf32, #tpu.memory_space<vmem>>, vector<4x128xf32>,
    %226 = vector.extract_strided_slice %217 {offsets = [0, 2], sizes = [4, 128], strides = [1, 1]} : vector<4x256xf32> to vector<4x128xf32>
    %c8_270 = arith.constant 8 : index
    %c768_271 = arith.constant 768 : index
    %227 = vector.load %arg6[%c8_270, %c768_271] : memref<108x1024xf32, #tpu.memory_space<vmem>>, vector<4x128xf32>
    tpu.vector_store %arg6[%c8_270, %c768_271], %226 {strides = array<i32>} : memref<108x1024xf32, #tpu.memory_space<vmem>>, vector<4x128xf32>,
    %c44_272 = arith.constant 44 : index
    %c640_273 = arith.constant 640 : index
    %228 = vector.load %arg6[%c44_272, %c640_273] : memref<108x1024xf32, #tpu.memory_space<vmem>>, vector<4x128xf32>
    tpu.vector_store %arg6[%c44_272, %c640_273], %226 {strides = array<i32>} : memref<108x1024xf32, #tpu.memory_space<vmem>>, vector<4x128xf32>,
    %c80_274 = arith.constant 80 : index
    %c512_275 = arith.constant 512 : index
    %229 = vector.load %arg6[%c80_274, %c512_275] : memref<108x1024xf32, #tpu.memory_space<vmem>>, vector<4x128xf32>
    tpu.vector_store %arg6[%c80_274, %c512_275], %226 {strides = array<i32>} : memref<108x1024xf32, #tpu.memory_space<vmem>>, vector<4x128xf32>,
    %230 = vector.extract_strided_slice %217 {offsets = [0, 10], sizes = [4, 128], strides = [1, 1]} : vector<4x256xf32> to vector<4x128xf32>
    %c12_276 = arith.constant 12 : index
    %c768_277 = arith.constant 768 : index
    %231 = vector.load %arg6[%c12_276, %c768_277] : memref<108x1024xf32, #tpu.memory_space<vmem>>, vector<4x128xf32>
    tpu.vector_store %arg6[%c12_276, %c768_277], %230 {strides = array<i32>} : memref<108x1024xf32, #tpu.memory_space<vmem>>, vector<4x128xf32>,
    %c48_278 = arith.constant 48 : index
    %c640_279 = arith.constant 640 : index
    %232 = vector.load %arg6[%c48_278, %c640_279] : memref<108x1024xf32, #tpu.memory_space<vmem>>, vector<4x128xf32>
    tpu.vector_store %arg6[%c48_278, %c640_279], %230 {strides = array<i32>} : memref<108x1024xf32, #tpu.memory_space<vmem>>, vector<4x128xf32>,
    %c84_280 = arith.constant 84 : index
    %c512_281 = arith.constant 512 : index
    %233 = vector.load %arg6[%c84_280, %c512_281] : memref<108x1024xf32, #tpu.memory_space<vmem>>, vector<4x128xf32>
    tpu.vector_store %arg6[%c84_280, %c512_281], %230 {strides = array<i32>} : memref<108x1024xf32, #tpu.memory_space<vmem>>, vector<4x128xf32>,
    %234 = vector.extract_strided_slice %217 {offsets = [0, 11], sizes = [4, 128], strides = [1, 1]} : vector<4x256xf32> to vector<4x128xf32>
    %c16_282 = arith.constant 16 : index
    %c768_283 = arith.constant 768 : index
    %235 = vector.load %arg6[%c16_282, %c768_283] : memref<108x1024xf32, #tpu.memory_space<vmem>>, vector<4x128xf32>
    tpu.vector_store %arg6[%c16_282, %c768_283], %234 {strides = array<i32>} : memref<108x1024xf32, #tpu.memory_space<vmem>>, vector<4x128xf32>,
    %c52_284 = arith.constant 52 : index
    %c640_285 = arith.constant 640 : index
    %236 = vector.load %arg6[%c52_284, %c640_285] : memref<108x1024xf32, #tpu.memory_space<vmem>>, vector<4x128xf32>
    tpu.vector_store %arg6[%c52_284, %c640_285], %234 {strides = array<i32>} : memref<108x1024xf32, #tpu.memory_space<vmem>>, vector<4x128xf32>,
    %c88_286 = arith.constant 88 : index
    %c512_287 = arith.constant 512 : index
    %237 = vector.load %arg6[%c88_286, %c512_287] : memref<108x1024xf32, #tpu.memory_space<vmem>>, vector<4x128xf32>
    tpu.vector_store %arg6[%c88_286, %c512_287], %234 {strides = array<i32>} : memref<108x1024xf32, #tpu.memory_space<vmem>>, vector<4x128xf32>,
    %238 = vector.extract_strided_slice %217 {offsets = [0, 12], sizes = [4, 128], strides = [1, 1]} : vector<4x256xf32> to vector<4x128xf32>
    %c20_288 = arith.constant 20 : index
    %c768_289 = arith.constant 768 : index
    %239 = vector.load %arg6[%c20_288, %c768_289] : memref<108x1024xf32, #tpu.memory_space<vmem>>, vector<4x128xf32>
    tpu.vector_store %arg6[%c20_288, %c768_289], %238 {strides = array<i32>} : memref<108x1024xf32, #tpu.memory_space<vmem>>, vector<4x128xf32>,
    %c56_290 = arith.constant 56 : index
    %c640_291 = arith.constant 640 : index
    %240 = vector.load %arg6[%c56_290, %c640_291] : memref<108x1024xf32, #tpu.memory_space<vmem>>, vector<4x128xf32>
    tpu.vector_store %arg6[%c56_290, %c640_291], %238 {strides = array<i32>} : memref<108x1024xf32, #tpu.memory_space<vmem>>, vector<4x128xf32>,
    %c92_292 = arith.constant 92 : index
    %c512_293 = arith.constant 512 : index
    %241 = vector.load %arg6[%c92_292, %c512_293] : memref<108x1024xf32, #tpu.memory_space<vmem>>, vector<4x128xf32>
    tpu.vector_store %arg6[%c92_292, %c512_293], %238 {strides = array<i32>} : memref<108x1024xf32, #tpu.memory_space<vmem>>, vector<4x128xf32>,
    %242 = vector.extract_strided_slice %217 {offsets = [0, 20], sizes = [4, 128], strides = [1, 1]} : vector<4x256xf32> to vector<4x128xf32>
    %c24_294 = arith.constant 24 : index
    %c768_295 = arith.constant 768 : index
    %243 = vector.load %arg6[%c24_294, %c768_295] : memref<108x1024xf32, #tpu.memory_space<vmem>>, vector<4x128xf32>
    tpu.vector_store %arg6[%c24_294, %c768_295], %242 {strides = array<i32>} : memref<108x1024xf32, #tpu.memory_space<vmem>>, vector<4x128xf32>,
    %c60_296 = arith.constant 60 : index
    %c640_297 = arith.constant 640 : index
    %244 = vector.load %arg6[%c60_296, %c640_297] : memref<108x1024xf32, #tpu.memory_space<vmem>>, vector<4x128xf32>
    tpu.vector_store %arg6[%c60_296, %c640_297], %242 {strides = array<i32>} : memref<108x1024xf32, #tpu.memory_space<vmem>>, vector<4x128xf32>,
    %c96_298 = arith.constant 96 : index
    %c512_299 = arith.constant 512 : index
    %245 = vector.load %arg6[%c96_298, %c512_299] : memref<108x1024xf32, #tpu.memory_space<vmem>>, vector<4x128xf32>
    tpu.vector_store %arg6[%c96_298, %c512_299], %242 {strides = array<i32>} : memref<108x1024xf32, #tpu.memory_space<vmem>>, vector<4x128xf32>,
    %246 = vector.extract_strided_slice %217 {offsets = [0, 21], sizes = [4, 128], strides = [1, 1]} : vector<4x256xf32> to vector<4x128xf32>
    %c28_300 = arith.constant 28 : index
    %c768_301 = arith.constant 768 : index
    %247 = vector.load %arg6[%c28_300, %c768_301] : memref<108x1024xf32, #tpu.memory_space<vmem>>, vector<4x128xf32>
    tpu.vector_store %arg6[%c28_300, %c768_301], %246 {strides = array<i32>} : memref<108x1024xf32, #tpu.memory_space<vmem>>, vector<4x128xf32>,
    %c64_302 = arith.constant 64 : index
    %c640_303 = arith.constant 640 : index
    %248 = vector.load %arg6[%c64_302, %c640_303] : memref<108x1024xf32, #tpu.memory_space<vmem>>, vector<4x128xf32>
    tpu.vector_store %arg6[%c64_302, %c640_303], %246 {strides = array<i32>} : memref<108x1024xf32, #tpu.memory_space<vmem>>, vector<4x128xf32>,
    %c100_304 = arith.constant 100 : index
    %c512_305 = arith.constant 512 : index
    %249 = vector.load %arg6[%c100_304, %c512_305] : memref<108x1024xf32, #tpu.memory_space<vmem>>, vector<4x128xf32>
    tpu.vector_store %arg6[%c100_304, %c512_305], %246 {strides = array<i32>} : memref<108x1024xf32, #tpu.memory_space<vmem>>, vector<4x128xf32>,
    %250 = vector.extract_strided_slice %217 {offsets = [0, 22], sizes = [4, 128], strides = [1, 1]} : vector<4x256xf32> to vector<4x128xf32>
    %c32_306 = arith.constant 32 : index
    %c768_307 = arith.constant 768 : index
    %251 = vector.load %arg6[%c32_306, %c768_307] : memref<108x1024xf32, #tpu.memory_space<vmem>>, vector<4x128xf32>
    tpu.vector_store %arg6[%c32_306, %c768_307], %250 {strides = array<i32>} : memref<108x1024xf32, #tpu.memory_space<vmem>>, vector<4x128xf32>,
    %c68_308 = arith.constant 68 : index
    %c640_309 = arith.constant 640 : index
    %252 = vector.load %arg6[%c68_308, %c640_309] : memref<108x1024xf32, #tpu.memory_space<vmem>>, vector<4x128xf32>
    tpu.vector_store %arg6[%c68_308, %c640_309], %250 {strides = array<i32>} : memref<108x1024xf32, #tpu.memory_space<vmem>>, vector<4x128xf32>,
    %c104_310 = arith.constant 104 : index
    %c512_311 = arith.constant 512 : index
    %253 = vector.load %arg6[%c104_310, %c512_311] : memref<108x1024xf32, #tpu.memory_space<vmem>>, vector<4x128xf32>
    tpu.vector_store %arg6[%c104_310, %c512_311], %250 {strides = array<i32>} : memref<108x1024xf32, #tpu.memory_space<vmem>>, vector<4x128xf32>,
    %c7_i32 = arith.constant 7 : i32
    %254 = arith.addi %0, %c7_i32 : i32
    %c0_312 = arith.constant 0 : index
    %255 = arith.index_cast %254 : i32 to index
    %c0_313 = arith.constant 0 : index
    %c0_314 = arith.constant 0 : index
    %256 = vector.load %arg2[%c0_312, %255, %c0_313, %c0_314] : memref<1x10x4x256xf32, #tpu.memory_space<vmem>>, vector<1x1x4x256xf32>
    %257 = vector.shape_cast %256 : vector<1x1x4x256xf32> to vector<4x256xf32>
    %258 = vector.extract_strided_slice %257 {offsets = [0, 0], sizes = [4, 128], strides = [1, 1]} : vector<4x256xf32> to vector<4x128xf32>
    %c0_315 = arith.constant 0 : index
    %c896 = arith.constant 896 : index
    %259 = vector.load %arg6[%c0_315, %c896] : memref<108x1024xf32, #tpu.memory_space<vmem>>, vector<4x128xf32>
    tpu.vector_store %arg6[%c0_315, %c896], %258 {strides = array<i32>} : memref<108x1024xf32, #tpu.memory_space<vmem>>, vector<4x128xf32>,
    %c36_316 = arith.constant 36 : index
    %c768_317 = arith.constant 768 : index
    %260 = vector.load %arg6[%c36_316, %c768_317] : memref<108x1024xf32, #tpu.memory_space<vmem>>, vector<4x128xf32>
    tpu.vector_store %arg6[%c36_316, %c768_317], %258 {strides = array<i32>} : memref<108x1024xf32, #tpu.memory_space<vmem>>, vector<4x128xf32>,
    %c72_318 = arith.constant 72 : index
    %c640_319 = arith.constant 640 : index
    %261 = vector.load %arg6[%c72_318, %c640_319] : memref<108x1024xf32, #tpu.memory_space<vmem>>, vector<4x128xf32>
    tpu.vector_store %arg6[%c72_318, %c640_319], %258 {strides = array<i32>} : memref<108x1024xf32, #tpu.memory_space<vmem>>, vector<4x128xf32>,
    %262 = vector.extract_strided_slice %257 {offsets = [0, 1], sizes = [4, 128], strides = [1, 1]} : vector<4x256xf32> to vector<4x128xf32>
    %c4_320 = arith.constant 4 : index
    %c896_321 = arith.constant 896 : index
    %263 = vector.load %arg6[%c4_320, %c896_321] : memref<108x1024xf32, #tpu.memory_space<vmem>>, vector<4x128xf32>
    tpu.vector_store %arg6[%c4_320, %c896_321], %262 {strides = array<i32>} : memref<108x1024xf32, #tpu.memory_space<vmem>>, vector<4x128xf32>,
    %c40_322 = arith.constant 40 : index
    %c768_323 = arith.constant 768 : index
    %264 = vector.load %arg6[%c40_322, %c768_323] : memref<108x1024xf32, #tpu.memory_space<vmem>>, vector<4x128xf32>
    tpu.vector_store %arg6[%c40_322, %c768_323], %262 {strides = array<i32>} : memref<108x1024xf32, #tpu.memory_space<vmem>>, vector<4x128xf32>,
    %c76_324 = arith.constant 76 : index
    %c640_325 = arith.constant 640 : index
    %265 = vector.load %arg6[%c76_324, %c640_325] : memref<108x1024xf32, #tpu.memory_space<vmem>>, vector<4x128xf32>
    tpu.vector_store %arg6[%c76_324, %c640_325], %262 {strides = array<i32>} : memref<108x1024xf32, #tpu.memory_space<vmem>>, vector<4x128xf32>,
    %266 = vector.extract_strided_slice %257 {offsets = [0, 2], sizes = [4, 128], strides = [1, 1]} : vector<4x256xf32> to vector<4x128xf32>
    %c8_326 = arith.constant 8 : index
    %c896_327 = arith.constant 896 : index
    %267 = vector.load %arg6[%c8_326, %c896_327] : memref<108x1024xf32, #tpu.memory_space<vmem>>, vector<4x128xf32>
    tpu.vector_store %arg6[%c8_326, %c896_327], %266 {strides = array<i32>} : memref<108x1024xf32, #tpu.memory_space<vmem>>, vector<4x128xf32>,
    %c44_328 = arith.constant 44 : index
    %c768_329 = arith.constant 768 : index
    %268 = vector.load %arg6[%c44_328, %c768_329] : memref<108x1024xf32, #tpu.memory_space<vmem>>, vector<4x128xf32>
    tpu.vector_store %arg6[%c44_328, %c768_329], %266 {strides = array<i32>} : memref<108x1024xf32, #tpu.memory_space<vmem>>, vector<4x128xf32>,
    %c80_330 = arith.constant 80 : index
    %c640_331 = arith.constant 640 : index
    %269 = vector.load %arg6[%c80_330, %c640_331] : memref<108x1024xf32, #tpu.memory_space<vmem>>, vector<4x128xf32>
    tpu.vector_store %arg6[%c80_330, %c640_331], %266 {strides = array<i32>} : memref<108x1024xf32, #tpu.memory_space<vmem>>, vector<4x128xf32>,
    %270 = vector.extract_strided_slice %257 {offsets = [0, 10], sizes = [4, 128], strides = [1, 1]} : vector<4x256xf32> to vector<4x128xf32>
    %c12_332 = arith.constant 12 : index
    %c896_333 = arith.constant 896 : index
    %271 = vector.load %arg6[%c12_332, %c896_333] : memref<108x1024xf32, #tpu.memory_space<vmem>>, vector<4x128xf32>
    tpu.vector_store %arg6[%c12_332, %c896_333], %270 {strides = array<i32>} : memref<108x1024xf32, #tpu.memory_space<vmem>>, vector<4x128xf32>,
    %c48_334 = arith.constant 48 : index
    %c768_335 = arith.constant 768 : index
    %272 = vector.load %arg6[%c48_334, %c768_335] : memref<108x1024xf32, #tpu.memory_space<vmem>>, vector<4x128xf32>
    tpu.vector_store %arg6[%c48_334, %c768_335], %270 {strides = array<i32>} : memref<108x1024xf32, #tpu.memory_space<vmem>>, vector<4x128xf32>,
    %c84_336 = arith.constant 84 : index
    %c640_337 = arith.constant 640 : index
    %273 = vector.load %arg6[%c84_336, %c640_337] : memref<108x1024xf32, #tpu.memory_space<vmem>>, vector<4x128xf32>
    tpu.vector_store %arg6[%c84_336, %c640_337], %270 {strides = array<i32>} : memref<108x1024xf32, #tpu.memory_space<vmem>>, vector<4x128xf32>,
    %274 = vector.extract_strided_slice %257 {offsets = [0, 11], sizes = [4, 128], strides = [1, 1]} : vector<4x256xf32> to vector<4x128xf32>
    %c16_338 = arith.constant 16 : index
    %c896_339 = arith.constant 896 : index
    %275 = vector.load %arg6[%c16_338, %c896_339] : memref<108x1024xf32, #tpu.memory_space<vmem>>, vector<4x128xf32>
    tpu.vector_store %arg6[%c16_338, %c896_339], %274 {strides = array<i32>} : memref<108x1024xf32, #tpu.memory_space<vmem>>, vector<4x128xf32>,
    %c52_340 = arith.constant 52 : index
    %c768_341 = arith.constant 768 : index
    %276 = vector.load %arg6[%c52_340, %c768_341] : memref<108x1024xf32, #tpu.memory_space<vmem>>, vector<4x128xf32>
    tpu.vector_store %arg6[%c52_340, %c768_341], %274 {strides = array<i32>} : memref<108x1024xf32, #tpu.memory_space<vmem>>, vector<4x128xf32>,
    %c88_342 = arith.constant 88 : index
    %c640_343 = arith.constant 640 : index
    %277 = vector.load %arg6[%c88_342, %c640_343] : memref<108x1024xf32, #tpu.memory_space<vmem>>, vector<4x128xf32>
    tpu.vector_store %arg6[%c88_342, %c640_343], %274 {strides = array<i32>} : memref<108x1024xf32, #tpu.memory_space<vmem>>, vector<4x128xf32>,
    %278 = vector.extract_strided_slice %257 {offsets = [0, 12], sizes = [4, 128], strides = [1, 1]} : vector<4x256xf32> to vector<4x128xf32>
    %c20_344 = arith.constant 20 : index
    %c896_345 = arith.constant 896 : index
    %279 = vector.load %arg6[%c20_344, %c896_345] : memref<108x1024xf32, #tpu.memory_space<vmem>>, vector<4x128xf32>
    tpu.vector_store %arg6[%c20_344, %c896_345], %278 {strides = array<i32>} : memref<108x1024xf32, #tpu.memory_space<vmem>>, vector<4x128xf32>,
    %c56_346 = arith.constant 56 : index
    %c768_347 = arith.constant 768 : index
    %280 = vector.load %arg6[%c56_346, %c768_347] : memref<108x1024xf32, #tpu.memory_space<vmem>>, vector<4x128xf32>
    tpu.vector_store %arg6[%c56_346, %c768_347], %278 {strides = array<i32>} : memref<108x1024xf32, #tpu.memory_space<vmem>>, vector<4x128xf32>,
    %c92_348 = arith.constant 92 : index
    %c640_349 = arith.constant 640 : index
    %281 = vector.load %arg6[%c92_348, %c640_349] : memref<108x1024xf32, #tpu.memory_space<vmem>>, vector<4x128xf32>
    tpu.vector_store %arg6[%c92_348, %c640_349], %278 {strides = array<i32>} : memref<108x1024xf32, #tpu.memory_space<vmem>>, vector<4x128xf32>,
    %282 = vector.extract_strided_slice %257 {offsets = [0, 20], sizes = [4, 128], strides = [1, 1]} : vector<4x256xf32> to vector<4x128xf32>
    %c24_350 = arith.constant 24 : index
    %c896_351 = arith.constant 896 : index
    %283 = vector.load %arg6[%c24_350, %c896_351] : memref<108x1024xf32, #tpu.memory_space<vmem>>, vector<4x128xf32>
    tpu.vector_store %arg6[%c24_350, %c896_351], %282 {strides = array<i32>} : memref<108x1024xf32, #tpu.memory_space<vmem>>, vector<4x128xf32>,
    %c60_352 = arith.constant 60 : index
    %c768_353 = arith.constant 768 : index
    %284 = vector.load %arg6[%c60_352, %c768_353] : memref<108x1024xf32, #tpu.memory_space<vmem>>, vector<4x128xf32>
    tpu.vector_store %arg6[%c60_352, %c768_353], %282 {strides = array<i32>} : memref<108x1024xf32, #tpu.memory_space<vmem>>, vector<4x128xf32>,
    %c96_354 = arith.constant 96 : index
    %c640_355 = arith.constant 640 : index
    %285 = vector.load %arg6[%c96_354, %c640_355] : memref<108x1024xf32, #tpu.memory_space<vmem>>, vector<4x128xf32>
    tpu.vector_store %arg6[%c96_354, %c640_355], %282 {strides = array<i32>} : memref<108x1024xf32, #tpu.memory_space<vmem>>, vector<4x128xf32>,
    %286 = vector.extract_strided_slice %257 {offsets = [0, 21], sizes = [4, 128], strides = [1, 1]} : vector<4x256xf32> to vector<4x128xf32>
    %c28_356 = arith.constant 28 : index
    %c896_357 = arith.constant 896 : index
    %287 = vector.load %arg6[%c28_356, %c896_357] : memref<108x1024xf32, #tpu.memory_space<vmem>>, vector<4x128xf32>
    tpu.vector_store %arg6[%c28_356, %c896_357], %286 {strides = array<i32>} : memref<108x1024xf32, #tpu.memory_space<vmem>>, vector<4x128xf32>,
    %c64_358 = arith.constant 64 : index
    %c768_359 = arith.constant 768 : index
    %288 = vector.load %arg6[%c64_358, %c768_359] : memref<108x1024xf32, #tpu.memory_space<vmem>>, vector<4x128xf32>
    tpu.vector_store %arg6[%c64_358, %c768_359], %286 {strides = array<i32>} : memref<108x1024xf32, #tpu.memory_space<vmem>>, vector<4x128xf32>,
    %c100_360 = arith.constant 100 : index
    %c640_361 = arith.constant 640 : index
    %289 = vector.load %arg6[%c100_360, %c640_361] : memref<108x1024xf32, #tpu.memory_space<vmem>>, vector<4x128xf32>
    tpu.vector_store %arg6[%c100_360, %c640_361], %286 {strides = array<i32>} : memref<108x1024xf32, #tpu.memory_space<vmem>>, vector<4x128xf32>,
    %290 = vector.extract_strided_slice %257 {offsets = [0, 22], sizes = [4, 128], strides = [1, 1]} : vector<4x256xf32> to vector<4x128xf32>
    %c32_362 = arith.constant 32 : index
    %c896_363 = arith.constant 896 : index
    %291 = vector.load %arg6[%c32_362, %c896_363] : memref<108x1024xf32, #tpu.memory_space<vmem>>, vector<4x128xf32>
    tpu.vector_store %arg6[%c32_362, %c896_363], %290 {strides = array<i32>} : memref<108x1024xf32, #tpu.memory_space<vmem>>, vector<4x128xf32>,
    %c68_364 = arith.constant 68 : index
    %c768_365 = arith.constant 768 : index
    %292 = vector.load %arg6[%c68_364, %c768_365] : memref<108x1024xf32, #tpu.memory_space<vmem>>, vector<4x128xf32>
    tpu.vector_store %arg6[%c68_364, %c768_365], %290 {strides = array<i32>} : memref<108x1024xf32, #tpu.memory_space<vmem>>, vector<4x128xf32>,
    %c104_366 = arith.constant 104 : index
    %c640_367 = arith.constant 640 : index
    %293 = vector.load %arg6[%c104_366, %c640_367] : memref<108x1024xf32, #tpu.memory_space<vmem>>, vector<4x128xf32>
    tpu.vector_store %arg6[%c104_366, %c640_367], %290 {strides = array<i32>} : memref<108x1024xf32, #tpu.memory_space<vmem>>, vector<4x128xf32>,
    %c8_i32_368 = arith.constant 8 : i32
    %294 = arith.addi %0, %c8_i32_368 : i32
    %c0_369 = arith.constant 0 : index
    %295 = arith.index_cast %294 : i32 to index
    %c0_370 = arith.constant 0 : index
    %c0_371 = arith.constant 0 : index
    %296 = vector.load %arg2[%c0_369, %295, %c0_370, %c0_371] : memref<1x10x4x256xf32, #tpu.memory_space<vmem>>, vector<1x1x4x256xf32>
    %297 = vector.shape_cast %296 : vector<1x1x4x256xf32> to vector<4x256xf32>
    %298 = vector.extract_strided_slice %297 {offsets = [0, 0], sizes = [4, 128], strides = [1, 1]} : vector<4x256xf32> to vector<4x128xf32>
    %c36_372 = arith.constant 36 : index
    %c896_373 = arith.constant 896 : index
    %299 = vector.load %arg6[%c36_372, %c896_373] : memref<108x1024xf32, #tpu.memory_space<vmem>>, vector<4x128xf32>
    tpu.vector_store %arg6[%c36_372, %c896_373], %298 {strides = array<i32>} : memref<108x1024xf32, #tpu.memory_space<vmem>>, vector<4x128xf32>,
    %c72_374 = arith.constant 72 : index
    %c768_375 = arith.constant 768 : index
    %300 = vector.load %arg6[%c72_374, %c768_375] : memref<108x1024xf32, #tpu.memory_space<vmem>>, vector<4x128xf32>
    tpu.vector_store %arg6[%c72_374, %c768_375], %298 {strides = array<i32>} : memref<108x1024xf32, #tpu.memory_space<vmem>>, vector<4x128xf32>,
    %301 = vector.extract_strided_slice %297 {offsets = [0, 1], sizes = [4, 128], strides = [1, 1]} : vector<4x256xf32> to vector<4x128xf32>
    %c40_376 = arith.constant 40 : index
    %c896_377 = arith.constant 896 : index
    %302 = vector.load %arg6[%c40_376, %c896_377] : memref<108x1024xf32, #tpu.memory_space<vmem>>, vector<4x128xf32>
    tpu.vector_store %arg6[%c40_376, %c896_377], %301 {strides = array<i32>} : memref<108x1024xf32, #tpu.memory_space<vmem>>, vector<4x128xf32>,
    %c76_378 = arith.constant 76 : index
    %c768_379 = arith.constant 768 : index
    %303 = vector.load %arg6[%c76_378, %c768_379] : memref<108x1024xf32, #tpu.memory_space<vmem>>, vector<4x128xf32>
    tpu.vector_store %arg6[%c76_378, %c768_379], %301 {strides = array<i32>} : memref<108x1024xf32, #tpu.memory_space<vmem>>, vector<4x128xf32>,
    %304 = vector.extract_strided_slice %297 {offsets = [0, 2], sizes = [4, 128], strides = [1, 1]} : vector<4x256xf32> to vector<4x128xf32>
    %c44_380 = arith.constant 44 : index
    %c896_381 = arith.constant 896 : index
    %305 = vector.load %arg6[%c44_380, %c896_381] : memref<108x1024xf32, #tpu.memory_space<vmem>>, vector<4x128xf32>
    tpu.vector_store %arg6[%c44_380, %c896_381], %304 {strides = array<i32>} : memref<108x1024xf32, #tpu.memory_space<vmem>>, vector<4x128xf32>,
    %c80_382 = arith.constant 80 : index
    %c768_383 = arith.constant 768 : index
    %306 = vector.load %arg6[%c80_382, %c768_383] : memref<108x1024xf32, #tpu.memory_space<vmem>>, vector<4x128xf32>
    tpu.vector_store %arg6[%c80_382, %c768_383], %304 {strides = array<i32>} : memref<108x1024xf32, #tpu.memory_space<vmem>>, vector<4x128xf32>,
    %307 = vector.extract_strided_slice %297 {offsets = [0, 10], sizes = [4, 128], strides = [1, 1]} : vector<4x256xf32> to vector<4x128xf32>
    %c48_384 = arith.constant 48 : index
    %c896_385 = arith.constant 896 : index
    %308 = vector.load %arg6[%c48_384, %c896_385] : memref<108x1024xf32, #tpu.memory_space<vmem>>, vector<4x128xf32>
    tpu.vector_store %arg6[%c48_384, %c896_385], %307 {strides = array<i32>} : memref<108x1024xf32, #tpu.memory_space<vmem>>, vector<4x128xf32>,
    %c84_386 = arith.constant 84 : index
    %c768_387 = arith.constant 768 : index
    %309 = vector.load %arg6[%c84_386, %c768_387] : memref<108x1024xf32, #tpu.memory_space<vmem>>, vector<4x128xf32>
    tpu.vector_store %arg6[%c84_386, %c768_387], %307 {strides = array<i32>} : memref<108x1024xf32, #tpu.memory_space<vmem>>, vector<4x128xf32>,
    %310 = vector.extract_strided_slice %297 {offsets = [0, 11], sizes = [4, 128], strides = [1, 1]} : vector<4x256xf32> to vector<4x128xf32>
    %c52_388 = arith.constant 52 : index
    %c896_389 = arith.constant 896 : index
    %311 = vector.load %arg6[%c52_388, %c896_389] : memref<108x1024xf32, #tpu.memory_space<vmem>>, vector<4x128xf32>
    tpu.vector_store %arg6[%c52_388, %c896_389], %310 {strides = array<i32>} : memref<108x1024xf32, #tpu.memory_space<vmem>>, vector<4x128xf32>,
    %c88_390 = arith.constant 88 : index
    %c768_391 = arith.constant 768 : index
    %312 = vector.load %arg6[%c88_390, %c768_391] : memref<108x1024xf32, #tpu.memory_space<vmem>>, vector<4x128xf32>
    tpu.vector_store %arg6[%c88_390, %c768_391], %310 {strides = array<i32>} : memref<108x1024xf32, #tpu.memory_space<vmem>>, vector<4x128xf32>,
    %313 = vector.extract_strided_slice %297 {offsets = [0, 12], sizes = [4, 128], strides = [1, 1]} : vector<4x256xf32> to vector<4x128xf32>
    %c56_392 = arith.constant 56 : index
    %c896_393 = arith.constant 896 : index
    %314 = vector.load %arg6[%c56_392, %c896_393] : memref<108x1024xf32, #tpu.memory_space<vmem>>, vector<4x128xf32>
    tpu.vector_store %arg6[%c56_392, %c896_393], %313 {strides = array<i32>} : memref<108x1024xf32, #tpu.memory_space<vmem>>, vector<4x128xf32>,
    %c92_394 = arith.constant 92 : index
    %c768_395 = arith.constant 768 : index
    %315 = vector.load %arg6[%c92_394, %c768_395] : memref<108x1024xf32, #tpu.memory_space<vmem>>, vector<4x128xf32>
    tpu.vector_store %arg6[%c92_394, %c768_395], %313 {strides = array<i32>} : memref<108x1024xf32, #tpu.memory_space<vmem>>, vector<4x128xf32>,
    %316 = vector.extract_strided_slice %297 {offsets = [0, 20], sizes = [4, 128], strides = [1, 1]} : vector<4x256xf32> to vector<4x128xf32>
    %c60_396 = arith.constant 60 : index
    %c896_397 = arith.constant 896 : index
    %317 = vector.load %arg6[%c60_396, %c896_397] : memref<108x1024xf32, #tpu.memory_space<vmem>>, vector<4x128xf32>
    tpu.vector_store %arg6[%c60_396, %c896_397], %316 {strides = array<i32>} : memref<108x1024xf32, #tpu.memory_space<vmem>>, vector<4x128xf32>,
    %c96_398 = arith.constant 96 : index
    %c768_399 = arith.constant 768 : index
    %318 = vector.load %arg6[%c96_398, %c768_399] : memref<108x1024xf32, #tpu.memory_space<vmem>>, vector<4x128xf32>
    tpu.vector_store %arg6[%c96_398, %c768_399], %316 {strides = array<i32>} : memref<108x1024xf32, #tpu.memory_space<vmem>>, vector<4x128xf32>,
    %319 = vector.extract_strided_slice %297 {offsets = [0, 21], sizes = [4, 128], strides = [1, 1]} : vector<4x256xf32> to vector<4x128xf32>
    %c64_400 = arith.constant 64 : index
    %c896_401 = arith.constant 896 : index
    %320 = vector.load %arg6[%c64_400, %c896_401] : memref<108x1024xf32, #tpu.memory_space<vmem>>, vector<4x128xf32>
    tpu.vector_store %arg6[%c64_400, %c896_401], %319 {strides = array<i32>} : memref<108x1024xf32, #tpu.memory_space<vmem>>, vector<4x128xf32>,
    %c100_402 = arith.constant 100 : index
    %c768_403 = arith.constant 768 : index
    %321 = vector.load %arg6[%c100_402, %c768_403] : memref<108x1024xf32, #tpu.memory_space<vmem>>, vector<4x128xf32>
    tpu.vector_store %arg6[%c100_402, %c768_403], %319 {strides = array<i32>} : memref<108x1024xf32, #tpu.memory_space<vmem>>, vector<4x128xf32>,
    %322 = vector.extract_strided_slice %297 {offsets = [0, 22], sizes = [4, 128], strides = [1, 1]} : vector<4x256xf32> to vector<4x128xf32>
    %c68_404 = arith.constant 68 : index
    %c896_405 = arith.constant 896 : index
    %323 = vector.load %arg6[%c68_404, %c896_405] : memref<108x1024xf32, #tpu.memory_space<vmem>>, vector<4x128xf32>
    tpu.vector_store %arg6[%c68_404, %c896_405], %322 {strides = array<i32>} : memref<108x1024xf32, #tpu.memory_space<vmem>>, vector<4x128xf32>,
    %c104_406 = arith.constant 104 : index
    %c768_407 = arith.constant 768 : index
    %324 = vector.load %arg6[%c104_406, %c768_407] : memref<108x1024xf32, #tpu.memory_space<vmem>>, vector<4x128xf32>
    tpu.vector_store %arg6[%c104_406, %c768_407], %322 {strides = array<i32>} : memref<108x1024xf32, #tpu.memory_space<vmem>>, vector<4x128xf32>,
    %c9_i32 = arith.constant 9 : i32
    %325 = arith.addi %0, %c9_i32 : i32
    %c0_408 = arith.constant 0 : index
    %326 = arith.index_cast %325 : i32 to index
    %c0_409 = arith.constant 0 : index
    %c0_410 = arith.constant 0 : index
    %327 = vector.load %arg2[%c0_408, %326, %c0_409, %c0_410] : memref<1x10x4x256xf32, #tpu.memory_space<vmem>>, vector<1x1x4x256xf32>
    %328 = vector.shape_cast %327 : vector<1x1x4x256xf32> to vector<4x256xf32>
    %329 = vector.extract_strided_slice %328 {offsets = [0, 0], sizes = [4, 128], strides = [1, 1]} : vector<4x256xf32> to vector<4x128xf32>
    %c72_411 = arith.constant 72 : index
    %c896_412 = arith.constant 896 : index
    %330 = vector.load %arg6[%c72_411, %c896_412] : memref<108x1024xf32, #tpu.memory_space<vmem>>, vector<4x128xf32>
    tpu.vector_store %arg6[%c72_411, %c896_412], %329 {strides = array<i32>} : memref<108x1024xf32, #tpu.memory_space<vmem>>, vector<4x128xf32>,
    %331 = vector.extract_strided_slice %328 {offsets = [0, 1], sizes = [4, 128], strides = [1, 1]} : vector<4x256xf32> to vector<4x128xf32>
    %c76_413 = arith.constant 76 : index
    %c896_414 = arith.constant 896 : index
    %332 = vector.load %arg6[%c76_413, %c896_414] : memref<108x1024xf32, #tpu.memory_space<vmem>>, vector<4x128xf32>
    tpu.vector_store %arg6[%c76_413, %c896_414], %331 {strides = array<i32>} : memref<108x1024xf32, #tpu.memory_space<vmem>>, vector<4x128xf32>,
    %333 = vector.extract_strided_slice %328 {offsets = [0, 2], sizes = [4, 128], strides = [1, 1]} : vector<4x256xf32> to vector<4x128xf32>
    %c80_415 = arith.constant 80 : index
    %c896_416 = arith.constant 896 : index
    %334 = vector.load %arg6[%c80_415, %c896_416] : memref<108x1024xf32, #tpu.memory_space<vmem>>, vector<4x128xf32>
    tpu.vector_store %arg6[%c80_415, %c896_416], %333 {strides = array<i32>} : memref<108x1024xf32, #tpu.memory_space<vmem>>, vector<4x128xf32>,
    %335 = vector.extract_strided_slice %328 {offsets = [0, 10], sizes = [4, 128], strides = [1, 1]} : vector<4x256xf32> to vector<4x128xf32>
    %c84_417 = arith.constant 84 : index
    %c896_418 = arith.constant 896 : index
    %336 = vector.load %arg6[%c84_417, %c896_418] : memref<108x1024xf32, #tpu.memory_space<vmem>>, vector<4x128xf32>
    tpu.vector_store %arg6[%c84_417, %c896_418], %335 {strides = array<i32>} : memref<108x1024xf32, #tpu.memory_space<vmem>>, vector<4x128xf32>,
    %337 = vector.extract_strided_slice %328 {offsets = [0, 11], sizes = [4, 128], strides = [1, 1]} : vector<4x256xf32> to vector<4x128xf32>
    %c88_419 = arith.constant 88 : index
    %c896_420 = arith.constant 896 : index
    %338 = vector.load %arg6[%c88_419, %c896_420] : memref<108x1024xf32, #tpu.memory_space<vmem>>, vector<4x128xf32>
    tpu.vector_store %arg6[%c88_419, %c896_420], %337 {strides = array<i32>} : memref<108x1024xf32, #tpu.memory_space<vmem>>, vector<4x128xf32>,
    %339 = vector.extract_strided_slice %328 {offsets = [0, 12], sizes = [4, 128], strides = [1, 1]} : vector<4x256xf32> to vector<4x128xf32>
    %c92_421 = arith.constant 92 : index
    %c896_422 = arith.constant 896 : index
    %340 = vector.load %arg6[%c92_421, %c896_422] : memref<108x1024xf32, #tpu.memory_space<vmem>>, vector<4x128xf32>
    tpu.vector_store %arg6[%c92_421, %c896_422], %339 {strides = array<i32>} : memref<108x1024xf32, #tpu.memory_space<vmem>>, vector<4x128xf32>,
    %341 = vector.extract_strided_slice %328 {offsets = [0, 20], sizes = [4, 128], strides = [1, 1]} : vector<4x256xf32> to vector<4x128xf32>
    %c96_423 = arith.constant 96 : index
    %c896_424 = arith.constant 896 : index
    %342 = vector.load %arg6[%c96_423, %c896_424] : memref<108x1024xf32, #tpu.memory_space<vmem>>, vector<4x128xf32>
    tpu.vector_store %arg6[%c96_423, %c896_424], %341 {strides = array<i32>} : memref<108x1024xf32, #tpu.memory_space<vmem>>, vector<4x128xf32>,
    %343 = vector.extract_strided_slice %328 {offsets = [0, 21], sizes = [4, 128], strides = [1, 1]} : vector<4x256xf32> to vector<4x128xf32>
    %c100_425 = arith.constant 100 : index
    %c896_426 = arith.constant 896 : index
    %344 = vector.load %arg6[%c100_425, %c896_426] : memref<108x1024xf32, #tpu.memory_space<vmem>>, vector<4x128xf32>
    tpu.vector_store %arg6[%c100_425, %c896_426], %343 {strides = array<i32>} : memref<108x1024xf32, #tpu.memory_space<vmem>>, vector<4x128xf32>,
    %345 = vector.extract_strided_slice %328 {offsets = [0, 22], sizes = [4, 128], strides = [1, 1]} : vector<4x256xf32> to vector<4x128xf32>
    %c104_427 = arith.constant 104 : index
    %c896_428 = arith.constant 896 : index
    %346 = vector.load %arg6[%c104_427, %c896_428] : memref<108x1024xf32, #tpu.memory_space<vmem>>, vector<4x128xf32>
    tpu.vector_store %arg6[%c104_427, %c896_428], %345 {strides = array<i32>} : memref<108x1024xf32, #tpu.memory_space<vmem>>, vector<4x128xf32>,
    %c0_429 = arith.constant 0 : index
    %c0_430 = arith.constant 0 : index
    %347 = vector.load %arg3[%c0_429, %c0_430] : memref<8x108xf32, #tpu.memory_space<vmem>>, vector<8x108xf32>
    %c0_431 = arith.constant 0 : index
    %c0_432 = arith.constant 0 : index
    %348 = vector.load %arg6[%c0_431, %c0_432] : memref<108x1024xf32, #tpu.memory_space<vmem>>, vector<108x1024xf32>
    %cst = arith.constant dense<0.000000e+00> : vector<8x1024xf32>
    %349 = tpu.matmul %347, %348, %cst {dimension_numbers = #tpu.dot_dimension_numbers<[1], [0], [0], [1], [0, 0, 1, 1], [], []>} : vector<8x108xf32>, vector<108x1024xf32>, vector<8x1024xf32> -> vector<8x1024xf32>
    %c0_433 = arith.constant 0 : index
    %c0_434 = arith.constant 0 : index
    %350 = vector.load %arg4[%c0_433, %c0_434] : memref<8x1xf32, #tpu.memory_space<vmem>>, vector<8x1xf32>
    %351 = vector.broadcast %350 : vector<8x1xf32> to vector<8x1024xf32>
    %352 = arith.addf %349, %351 : vector<8x1024xf32>
    %353 = arith.negf %352 : vector<8x1024xf32>
    %354 = math.exp %353 : vector<8x1024xf32>
    %cst_435 = arith.constant 1.000000e+00 : f32
    %355 = vector.broadcast %cst_435 : f32 to vector<8x1024xf32>
    %356 = arith.addf %355, %354 : vector<8x1024xf32>
    %357 = arith.divf %355, %356 : vector<8x1024xf32>
    %358 = arith.mulf %352, %357 : vector<8x1024xf32>
    %c0_436 = arith.constant 0 : index
    %c0_437 = arith.constant 0 : index
    %c0_438 = arith.constant 0 : index
    %359 = vector.load %arg5[%c0_436, %c0_437, %c0_438] : memref<1x8x1024xf32, #tpu.memory_space<vmem>>, vector<1x8x1024xf32>
    %360 = vector.shape_cast %359 : vector<1x8x1024xf32> to vector<8x1024xf32>
    %361 = vector.shape_cast %358 : vector<8x1024xf32> to vector<1x8x1024xf32>
    tpu.vector_store %arg5[%c0_436, %c0_437, %c0_438], %361 {strides = array<i32>} : memref<1x8x1024xf32, #tpu.memory_space<vmem>>, vector<1x8x1024xf32>,
    return
  }
  func.func @transform_0(%arg0: i32, %arg1: i32) -> (i32, i32, i32, i32) {
    %c0_i32 = arith.constant 0 : i32
    %c0_i32_0 = arith.constant 0 : i32
    %c0_i32_1 = arith.constant 0 : i32
    %c0_i32_2 = arith.constant 0 : i32
    return %arg0, %c0_i32, %c0_i32_0, %c0_i32_1 : i32, i32, i32, i32
  }
  func.func @transform_1(%arg0: i32, %arg1: i32) -> (i32, i32) {
    %c0_i32 = arith.constant 0 : i32
    %c0_i32_0 = arith.constant 0 : i32
    %c0_i32_1 = arith.constant 0 : i32
    return %c0_i32, %c0_i32_0 : i32, i32
  }
  func.func @transform_2(%arg0: i32, %arg1: i32) -> (i32, i32) {
    %c0_i32 = arith.constant 0 : i32
    %c0_i32_0 = arith.constant 0 : i32
    %c0_i32_1 = arith.constant 0 : i32
    return %c0_i32, %c0_i32_0 : i32, i32
  }
  func.func @transform_3(%arg0: i32, %arg1: i32) -> (i32, i32, i32) {
    %c0_i32 = arith.constant 0 : i32
    %c0_i32_0 = arith.constant 0 : i32
    return %arg0, %c0_i32, %arg1 : i32, i32, i32
  }
}

</mosaic_0001>

<llo_original>
// kernel: distributed_conv3d.1
$region0: #{distributed_conv3d.1}
  #allocation0 [shape = 'u32[]', space=smem, size = 0x4, offset = 0x4, fixed_abs, tag = 'smem constant byte address 0x4 - core index']
  #allocation1 [shape = 'u32[72,128]{1,0:T(1,128)}', space=vmem, size = 0x9000, scoped, tag = 'internal scratch']
  #allocation2 [shape = 'f32[108,1024]{1,0:T(8,128)}', space=vmem, size = 0x70000, scoped, tag = 'scratch operand']
  %s0 = inlined_call_operand.vmem [shape: f32[6,10,4,256], index: 0, kind: input, shape index: {}]
  %s1 = inlined_call_operand.vmem [shape: f32[8,108], index: 1, kind: input, shape index: {}]
  %s2 = inlined_call_operand.vmem [shape: f32[8,1], index: 2, kind: input, shape index: {}]
  %s3 = inlined_call_operand.vmem [shape: f32[6,8,1024], index: 3, kind: output, shape index: {}]
  %s4 = sld [smem:[#allocation0]]
  $region45: #{distributed_conv3d.1} parent=0
    _
  %s6 = ssub.s32 1, %s4
  %s7 = scalar_select 0, %s6, %s4
  loop: start=0, step=1, limit=8
  $region2: #{distributed_conv3d.1} parent=0 // loop_pre_header
    _
  $region3: #{distributed_conv3d.1} parent=0 // loop_header
    %s9 = sphi 0, %s13
    %p10 = scmp.ge.s32.totalorder %s9, 8
    %s16 = sphi 0, %s28
    %s17 = sphi 0, %s24
    %s18 = sphi 0, %s16
    %s19 = sphi 0, %s17
    %s20 = sphi 0, %s18
    %s21 = sphi 0, %s19
    %s31 = sphi 0, %s33
    %s34 = sphi 0, %s31
    %s35 = sphi 0, %s34
    %s51 = sphi 0, %s35
    %s55 = sphi 0, %s55
    %s57 = sphi 0, %s55
    %s58 = sphi 0, %s57
    %s72 = sphi 0, %s58
    %s76 = sphi 0, %s76
    %s78 = sphi 0, %s76
    %s79 = sphi 0, %s78
    %s93 = sphi 0, %s79
    %s101 = sphi 0, %s103
    %s104 = sphi 0, %s101
    %s105 = sphi 0, %s104
    %s121 = sphi 0, %s105
  $region4: #{distributed_conv3d.1} parent=0 // loop_header_branch
    %12 = sbr.rel (%p10) target = $region8
  $region5: #{distributed_conv3d.1} parent=0 // loop_body
    %s14 = ssub.s32 %s9, 1
    %s15 = ssub.s32 %s9, 2
    %s22 = sadd.s32 1, %s17
    %p23 = scmp.ge.s32.totalorder %s22, 1
    %s24 = scalar_select %p23, 0, %s22
    %s25 = sadd.s32 1, %s16
    %s26 = scalar_select %p23, %s25, %s16
    %p27 = scmp.ge.s32.totalorder %s26, 6
    %s28 = scalar_select %p27, 0, %s26
    %s29 = ssub.s32 %s16, %s28
    %p30 = scmp.eq.s32.totalorder %s29, 0
    %s32 = sadd.s32 %s31, 1
    %s33 = scalar_select %p30, %s31, %s32
    %p36 = pneg %p30
    %p37 = scmp.eq.s32.totalorder %s9, 5
    %p38 = por %p36, %p37
    %p39 = scmp.ne.s32.totalorder %s31, %s34
    %p40 = scmp.eq.s32.totalorder %s9, 0
    %p41 = por %p39, %p40
    %p42 = scmp.ne.s32.totalorder %s31, %s34
    %p43 = scmp.eq.s32.totalorder %s14, 5
    %p44 = por %p42, %p43
    %p45 = scmp.ne.s32.totalorder %s34, %s35
    %p46 = scmp.eq.s32.totalorder %s14, 0
    %p47 = por %p45, %p46
    %p48 = scmp.ne.s32.totalorder %s34, %s35
    %p49 = scmp.eq.s32.totalorder %s15, 5
    %p50 = por %p48, %p49
    %p52 = scmp.ne.s32.totalorder %s35, %s51
    %p53 = scmp.eq.s32.totalorder %s15, 0
    %p54 = por %p52, %p53
    %s56 = sadd.s32 %s55, 1
    %p59 = scmp.eq.s32.totalorder %s9, 5
    %p60 = scmp.ne.s32.totalorder %s55, %s57
    %p61 = scmp.eq.s32.totalorder %s9, 0
    %p62 = por %p60, %p61
    %p63 = scmp.ne.s32.totalorder %s55, %s57
    %p64 = scmp.eq.s32.totalorder %s14, 5
    %p65 = por %p63, %p64
    %p66 = scmp.ne.s32.totalorder %s57, %s58
    %p67 = scmp.eq.s32.totalorder %s14, 0
    %p68 = por %p66, %p67
    %p69 = scmp.ne.s32.totalorder %s57, %s58
    %p70 = scmp.eq.s32.totalorder %s15, 5
    %p71 = por %p69, %p70
    %p73 = scmp.ne.s32.totalorder %s58, %s72
    %p74 = scmp.eq.s32.totalorder %s15, 0
    %p75 = por %p73, %p74
    %s77 = sadd.s32 %s76, 1
    %p80 = scmp.eq.s32.totalorder %s9, 5
    %p81 = scmp.ne.s32.totalorder %s76, %s78
    %p82 = scmp.eq.s32.totalorder %s9, 0
    %p83 = por %p81, %p82
    %p84 = scmp.ne.s32.totalorder %s76, %s78
    %p85 = scmp.eq.s32.totalorder %s14, 5
    %p86 = por %p84, %p85
    %p87 = scmp.ne.s32.totalorder %s78, %s79
    %p88 = scmp.eq.s32.totalorder %s14, 0
    %p89 = por %p87, %p88
    %p90 = scmp.ne.s32.totalorder %s78, %s79
    %p91 = scmp.eq.s32.totalorder %s15, 5
    %p92 = por %p90, %p91
    %p94 = scmp.ne.s32.totalorder %s79, %s93
    %p95 = scmp.eq.s32.totalorder %s15, 0
    %p96 = por %p94, %p95
    %s97 = ssub.s32 %s16, %s28
    %s98 = ssub.s32 %s17, %s24
    %s99 = sor.u32 %s97, %s98
    %p100 = scmp.eq.s32.totalorder %s99, 0
    %s102 = sadd.s32 %s101, 1
    %s103 = scalar_select %p100, %s101, %s102
    %p106 = pneg %p100
    %p107 = scmp.eq.s32.totalorder %s9, 5
    %p108 = por %p106, %p107
    %p109 = scmp.ne.s32.totalorder %s101, %s104
    %p110 = scmp.eq.s32.totalorder %s9, 0
    %p111 = por %p109, %p110
    %p112 = scmp.ne.s32.totalorder %s101, %s104
    %p113 = scmp.eq.s32.totalorder %s14, 5
    %p114 = por %p112, %p113
    %p115 = scmp.ne.s32.totalorder %s104, %s105
    %p116 = scmp.eq.s32.totalorder %s14, 0
    %p117 = por %p115, %p116
    %p118 = scmp.ne.s32.totalorder %s104, %s105
    %p119 = scmp.eq.s32.totalorder %s15, 5
    %p120 = por %p118, %p119
    %p122 = scmp.ne.s32.totalorder %s105, %s121
    %p123 = scmp.eq.s32.totalorder %s15, 0
    %p124 = por %p122, %p123
    %p125 = scmp.le.s32.totalorder 1, %s9
    %p126 = scmp.lt.s32.totalorder %s9, 7
    %p127 = pnand %p125, %p126
    %p128 = pneg %p127
    // Predicated region
    $region9: #{distributed_conv3d.1} parent=5 // pred_check
      _
    $region10: #{distributed_conv3d.1} parent=5 // pred_check_branch
      %130 = sbr.rel (%p127) target = $region12
    $region11: #{distributed_conv3d.1} parent=5 // pred_region
      %s131 = ssub.s32 %s9, 1
      // Predicated region
      $region13: #{distributed_conv3d.1} parent=11 // pred_check
        %p132 = pneg %p68
      $region14: #{distributed_conv3d.1} parent=11 // pred_check_branch
        %134 = sbr.rel (%p132) target = $region16
      $region15: #{distributed_conv3d.1} parent=11 // pred_region
        _
      $region16: #{distributed_conv3d.1} parent=11 // pred_fallthru
        _
      // Predicated region
      $region17: #{distributed_conv3d.1} parent=11 // pred_check
        %p135 = pneg %p89
      $region18: #{distributed_conv3d.1} parent=11 // pred_check_branch
        %137 = sbr.rel (%p135) target = $region20
      $region19: #{distributed_conv3d.1} parent=11 // pred_region
        _
      $region20: #{distributed_conv3d.1} parent=11 // pred_fallthru
        _
    $region12: #{distributed_conv3d.1} parent=5 // pred_fallthru
      _
    %p138 = scmp.lt.s32.totalorder %s9, 6
    // Predicated region
    $region21: #{distributed_conv3d.1} parent=5 // pred_check
      %p139 = pneg %p138
    $region22: #{distributed_conv3d.1} parent=5 // pred_check_branch
      %141 = sbr.rel (%p139) target = $region24
    $region23: #{distributed_conv3d.1} parent=5 // pred_region
      // Predicated region
      $region25: #{distributed_conv3d.1} parent=23 // pred_check
        %p142 = pneg %p41
      $region26: #{distributed_conv3d.1} parent=23 // pred_check_branch
        %144 = sbr.rel (%p142) target = $region28
      $region27: #{distributed_conv3d.1} parent=23 // pred_region
        %p145 = scmp.lt.s32.totalorder %s16, 5
        %s146 = scalar_select %p145, %s16, 5
        %s147 = smul.addr %s146, 20
        %s148 = smul.addr %s147, 4
        %s149 = scalar_lea.vmem %s0, %s148
      $region28: #{distributed_conv3d.1} parent=23 // pred_fallthru
        _
    $region24: #{distributed_conv3d.1} parent=5 // pred_fallthru
      _
    %p150 = scmp.le.s32.totalorder 1, %s9
    %p151 = scmp.lt.s32.totalorder %s9, 7
    %p152 = pnand %p150, %p151
    %p153 = pneg %p152
    // Predicated region
    $region29: #{distributed_conv3d.1} parent=5 // pred_check
      _
    $region30: #{distributed_conv3d.1} parent=5 // pred_check_branch
      %155 = sbr.rel (%p152) target = $region32
    $region31: #{distributed_conv3d.1} parent=5 // pred_region
      %s156 = ssub.s32 %s9, 1
      %p157 = scmp.lt.s32.totalorder %s18, 5
      %s158 = scalar_select %p157, %s18, 5
      %s159 = smul.addr %s158, 20
      %s160 = smul.addr %s159, 4
      %s161 = scalar_lea.vmem %s0, %s160
      %p162 = pneg %p47
      %p163 = pneg %p44
      %p164 = pneg %p68
      %p165 = pneg %p65
      %p166 = pneg %p89
      %p167 = pneg %p86
      %p168 = pneg %p117
      %p169 = pneg %p114
      %s170 = smul.u32 8, %s19
      %p171 = scmp.lt.s32.totalorder %s18, 5
      %s172 = scalar_select %p171, %s18, 5
      %p173 = scmp.lt.s32.totalorder %s170, 7
      %s174 = scalar_select %p173, %s170, 7
      %s175 = smul.addr %s172, 8
      %s176 = sadd.s32 %s174, %s175
      %s177 = smul.addr %s176, 8
      %s178 = scalar_lea.vmem %s3, %s177
      %p179 = scmp.lt.s32.totalorder %s18, 5
      %s180 = scalar_select %p179, %s18, 5
      %s181 = smul.addr %s180, 20
      %s182 = smul.addr %s181, 4
      %s183 = scalar_lea.vmem %s0, %s182
      %s184 = smul.u32 8, %s19
      %p185 = scmp.lt.s32.totalorder %s18, 5
      %s186 = scalar_select %p185, %s18, 5
      %p187 = scmp.lt.s32.totalorder %s184, 7
      %s188 = scalar_select %p187, %s184, 7
      %s189 = smul.addr %s186, 8
      %s190 = sadd.s32 %s188, %s189
      %s191 = smul.addr %s190, 8
      %s192 = scalar_lea.vmem %s3, %s191
      %s193 = smul.u32 8, %s19
      %s194 = smul.u32 %s19, 8
      %s195 = smul.u32 %s194, 2
      %s196 = smul.addr %s195, 4
      %s197 = scalar_lea.vmem %s183, %s196
      %v198 = vld [vmem:[%s197] sm:$0xff]
      %199 = vst [vmem:[#allocation2] sm:$0xf] %v198
      %s201 = scalar_lea.vmem [#allocation1], 1
      %202 = vst [vmem:[%s201] ss:$2 sm:$0xff] %v198
      %v203 = vld.sshfl [vmem:[#allocation1] sm:$0xff pattern:$0x75316420]
      %v204 = vld.sshfl [vmem:[#allocation1 + $0x8] sm:$0xff pattern:$0x75316420]
      %205 = vrot.lane.b32.xlu0 %v203, 127
      %v206 = vpop.permute.xlu0 %205
      %207 = vrot.lane.b32.xlu0 %v204, 127
      %v208 = vpop.permute.xlu0 %207
      %vm209 = vcmask 1039360
      %v210 = vsel %vm209, %v206, %v208
      %212 = vst [vmem:[#allocation2] sm:$0xf0] %v210
      %213 = vst [vmem:[#allocation1] ss:$2 sm:$0xff] %v198
      %v214 = vld.sshfl [vmem:[#allocation1] sm:$0xff pattern:$0x75316420]
      %v215 = vld.sshfl [vmem:[#allocation1 + $0x8] sm:$0xff pattern:$0x75316420]
      %216 = vrot.lane.b32.xlu0 %v214, 126
      %v217 = vpop.permute.xlu0 %216
      %218 = vrot.lane.b32.xlu0 %v215, 126
      %v219 = vpop.permute.xlu0 %218
      %vm220 = vcmask 1031168
      %v221 = vsel %vm220, %v217, %v219
      %223 = vst [vmem:[#allocation2 + $0x40] sm:$0xf] %v221
      %s224 = scalar_lea.vmem [#allocation1], 1
      %225 = vst [vmem:[%s224] ss:$2 sm:$0xff] %v198
      %v226 = vld.sshfl [vmem:[#allocation1] sm:$0xff pattern:$0x75316420]
      %v227 = vld.sshfl [vmem:[#allocation1 + $0x8] sm:$0xff pattern:$0x75316420]
      %228 = vrot.lane.b32.xlu0 %v226, 118
      %v229 = vpop.permute.xlu0 %228
      %230 = vrot.lane.b32.xlu0 %v227, 118
      %v231 = vpop.permute.xlu0 %230
      %vm232 = vcmask 965632
      %v233 = vsel %vm232, %v229, %v231
      %235 = vst [vmem:[#allocation2 + $0x40] sm:$0xf0] %v233
      %236 = vst [vmem:[#allocation1] ss:$2 sm:$0xff] %v198
      %v237 = vld.sshfl [vmem:[#allocation1] sm:$0xff pattern:$0x75316420]
      %v238 = vld.sshfl [vmem:[#allocation1 + $0x8] sm:$0xff pattern:$0x75316420]
      %239 = vrot.lane.b32.xlu0 %v237, 117
      %v240 = vpop.permute.xlu0 %239
      %241 = vrot.lane.b32.xlu0 %v238, 117
      %v242 = vpop.permute.xlu0 %241
      %vm243 = vcmask 957440
      %v244 = vsel %vm243, %v240, %v242
      %246 = vst [vmem:[#allocation2 + $0x80] sm:$0xf] %v244
      %s247 = scalar_lea.vmem [#allocation1], 1
      %248 = vst [vmem:[%s247] ss:$2 sm:$0xff] %v198
      %v249 = vld.sshfl [vmem:[#allocation1] sm:$0xff pattern:$0x75316420]
      %v250 = vld.sshfl [vmem:[#allocation1 + $0x8] sm:$0xff pattern:$0x75316420]
      %251 = vrot.lane.b32.xlu0 %v249, 116
      %v252 = vpop.permute.xlu0 %251
      %253 = vrot.lane.b32.xlu0 %v250, 116
      %v254 = vpop.permute.xlu0 %253
      %vm255 = vcmask 949248
      %v256 = vsel %vm255, %v252, %v254
      %258 = vst [vmem:[#allocation2 + $0x80] sm:$0xf0] %v256
      %259 = vst [vmem:[#allocation1] ss:$2 sm:$0xff] %v198
      %v260 = vld.sshfl [vmem:[#allocation1] sm:$0xff pattern:$0x75316420]
      %v261 = vld.sshfl [vmem:[#allocation1 + $0x8] sm:$0xff pattern:$0x75316420]
      %262 = vrot.lane.b32.xlu0 %v260, 108
      %v263 = vpop.permute.xlu0 %262
      %264 = vrot.lane.b32.xlu0 %v261, 108
      %v265 = vpop.permute.xlu0 %264
      %vm266 = vcmask 883712
      %v267 = vsel %vm266, %v263, %v265
      %269 = vst [vmem:[#allocation2 + $0xc0] sm:$0xf] %v267
      %s270 = scalar_lea.vmem [#allocation1], 1
      %271 = vst [vmem:[%s270] ss:$2 sm:$0xff] %v198
      %v272 = vld.sshfl [vmem:[#allocation1] sm:$0xff pattern:$0x75316420]
      %v273 = vld.sshfl [vmem:[#allocation1 + $0x8] sm:$0xff pattern:$0x75316420]
      %274 = vrot.lane.b32.xlu0 %v272, 107
      %v275 = vpop.permute.xlu0 %274
      %276 = vrot.lane.b32.xlu0 %v273, 107
      %v277 = vpop.permute.xlu0 %276
      %vm278 = vcmask 875520
      %v279 = vsel %vm278, %v275, %v277
      %281 = vst [vmem:[#allocation2 + $0xc0] sm:$0xf0] %v279
      %282 = vst [vmem:[#allocation1] ss:$2 sm:$0xff] %v198
      %v283 = vld.sshfl [vmem:[#allocation1] sm:$0xff pattern:$0x75316420]
      %v284 = vld.sshfl [vmem:[#allocation1 + $0x8] sm:$0xff pattern:$0x75316420]
      %285 = vrot.lane.b32.xlu0 %v283, 106
      %v286 = vpop.permute.xlu0 %285
      %287 = vrot.lane.b32.xlu0 %v284, 106
      %v288 = vpop.permute.xlu0 %287
      %vm289 = vcmask 867328
      %v290 = vsel %vm289, %v286, %v288
      %292 = vst [vmem:[#allocation2 + $0x100] sm:$0xf] %v290
      %s293 = sadd.s32 %s194, 1
      %s294 = smul.u32 %s293, 2
      %s295 = smul.addr %s294, 4
      %s296 = scalar_lea.vmem %s183, %s295
      %v297 = vld [vmem:[%s296] sm:$0xff]
      %298 = vst [vmem:[#allocation2 + $0x8] sm:$0xf] %v297
      %s300 = scalar_lea.vmem [#allocation1], 1
      %301 = vst [vmem:[%s300] ss:$2 sm:$0xff] %v297
      %v302 = vld.sshfl [vmem:[#allocation1] sm:$0xff pattern:$0x75316420]
      %304 = vst [vmem:[#allocation2 + $0x100] sm:$0xf0] %v302
      %s305 = scalar_lea.vmem [#allocation1], 1
      %306 = vst [vmem:[%s305] ss:$2 sm:$0xff] %v297
      %v307 = vld.sshfl [vmem:[#allocation1] sm:$0xff pattern:$0x75316420]
      %v308 = vld.sshfl [vmem:[#allocation1 + $0x8] sm:$0xff pattern:$0x75316420]
      %309 = vrot.lane.b32.xlu0 %v307, 127
      %v310 = vpop.permute.xlu0 %309
      %311 = vrot.lane.b32.xlu0 %v308, 127
      %v312 = vpop.permute.xlu0 %311
      %v313 = vsel %vm209, %v310, %v312
      %315 = vst [vmem:[#allocation2 + $0x8] sm:$0xf0] %v313
      %316 = vst [vmem:[#allocation1] ss:$2 sm:$0xff] %v297
      %v317 = vld.sshfl [vmem:[#allocation1] sm:$0xff pattern:$0x75316420]
      %v318 = vld.sshfl [vmem:[#allocation1 + $0x8] sm:$0xff pattern:$0x75316420]
      %319 = vrot.lane.b32.xlu0 %v317, 127
      %v320 = vpop.permute.xlu0 %319
      %321 = vrot.lane.b32.xlu0 %v318, 127
      %v322 = vpop.permute.xlu0 %321
      %v323 = vsel %vm209, %v320, %v322
      %325 = vst [vmem:[#allocation2 + $0x140] sm:$0xf] %v323
      %326 = vst [vmem:[#allocation1] ss:$2 sm:$0xff] %v297
      %v327 = vld.sshfl [vmem:[#allocation1] sm:$0xff pattern:$0x75316420]
      %v328 = vld.sshfl [vmem:[#allocation1 + $0x8] sm:$0xff pattern:$0x75316420]
      %329 = vrot.lane.b32.xlu0 %v327, 126
      %v330 = vpop.permute.xlu0 %329
      %331 = vrot.lane.b32.xlu0 %v328, 126
      %v332 = vpop.permute.xlu0 %331
      %v333 = vsel %vm220, %v330, %v332
      %335 = vst [vmem:[#allocation2 + $0x48] sm:$0xf] %v333
      %s336 = scalar_lea.vmem [#allocation1], 1
      %337 = vst [vmem:[%s336] ss:$2 sm:$0xff] %v297
      %v338 = vld.sshfl [vmem:[#allocation1] sm:$0xff pattern:$0x75316420]
      %v339 = vld.sshfl [vmem:[#allocation1 + $0x8] sm:$0xff pattern:$0x75316420]
      %340 = vrot.lane.b32.xlu0 %v338, 126
      %v341 = vpop.permute.xlu0 %340
      %342 = vrot.lane.b32.xlu0 %v339, 126
      %v343 = vpop.permute.xlu0 %342
      %v344 = vsel %vm220, %v341, %v343
      %346 = vst [vmem:[#allocation2 + $0x140] sm:$0xf0] %v344
      %s347 = scalar_lea.vmem [#allocation1], 1
      %348 = vst [vmem:[%s347] ss:$2 sm:$0xff] %v297
      %v349 = vld.sshfl [vmem:[#allocation1] sm:$0xff pattern:$0x75316420]
      %v350 = vld.sshfl [vmem:[#allocation1 + $0x8] sm:$0xff pattern:$0x75316420]
      %351 = vrot.lane.b32.xlu0 %v349, 118
      %v352 = vpop.permute.xlu0 %351
      %353 = vrot.lane.b32.xlu0 %v350, 118
      %v354 = vpop.permute.xlu0 %353
      %v355 = vsel %vm232, %v352, %v354
      %357 = vst [vmem:[#allocation2 + $0x48] sm:$0xf0] %v355
      %358 = vst [vmem:[#allocation1] ss:$2 sm:$0xff] %v297
      %v359 = vld.sshfl [vmem:[#allocation1] sm:$0xff pattern:$0x75316420]
      %v360 = vld.sshfl [vmem:[#allocation1 + $0x8] sm:$0xff pattern:$0x75316420]
      %361 = vrot.lane.b32.xlu0 %v359, 118
      %v362 = vpop.permute.xlu0 %361
      %363 = vrot.lane.b32.xlu0 %v360, 118
      %v364 = vpop.permute.xlu0 %363
      %v365 = vsel %vm232, %v362, %v364
      %367 = vst [vmem:[#allocation2 + $0x180] sm:$0xf] %v365
      %368 = vst [vmem:[#allocation1] ss:$2 sm:$0xff] %v297
      %v369 = vld.sshfl [vmem:[#allocation1] sm:$0xff pattern:$0x75316420]
      %v370 = vld.sshfl [vmem:[#allocation1 + $0x8] sm:$0xff pattern:$0x75316420]
      %371 = vrot.lane.b32.xlu0 %v369, 117
      %v372 = vpop.permute.xlu0 %371
      %373 = vrot.lane.b32.xlu0 %v370, 117
      %v374 = vpop.permute.xlu0 %373
      %v375 = vsel %vm243, %v372, %v374
      %377 = vst [vmem:[#allocation2 + $0x88] sm:$0xf] %v375
      %s378 = scalar_lea.vmem [#allocation1], 1
      %379 = vst [vmem:[%s378] ss:$2 sm:$0xff] %v297
      %v380 = vld.sshfl [vmem:[#allocation1] sm:$0xff pattern:$0x75316420]
      %v381 = vld.sshfl [vmem:[#allocation1 + $0x8] sm:$0xff pattern:$0x75316420]
      %382 = vrot.lane.b32.xlu0 %v380, 117
      %v383 = vpop.permute.xlu0 %382
      %384 = vrot.lane.b32.xlu0 %v381, 117
      %v385 = vpop.permute.xlu0 %384
      %v386 = vsel %vm243, %v383, %v385
      %388 = vst [vmem:[#allocation2 + $0x180] sm:$0xf0] %v386
      %s389 = scalar_lea.vmem [#allocation1], 1
      %390 = vst [vmem:[%s389] ss:$2 sm:$0xff] %v297
      %v391 = vld.sshfl [vmem:[#allocation1] sm:$0xff pattern:$0x75316420]
      %v392 = vld.sshfl [vmem:[#allocation1 + $0x8] sm:$0xff pattern:$0x75316420]
      %393 = vrot.lane.b32.xlu0 %v391, 116
      %v394 = vpop.permute.xlu0 %393
      %395 = vrot.lane.b32.xlu0 %v392, 116
      %v396 = vpop.permute.xlu0 %395
      %v397 = vsel %vm255, %v394, %v396
      %399 = vst [vmem:[#allocation2 + $0x88] sm:$0xf0] %v397
      %400 = vst [vmem:[#allocation1] ss:$2 sm:$0xff] %v297
      %v401 = vld.sshfl [vmem:[#allocation1] sm:$0xff pattern:$0x75316420]
      %v402 = vld.sshfl [vmem:[#allocation1 + $0x8] sm:$0xff pattern:$0x75316420]
      %403 = vrot.lane.b32.xlu0 %v401, 116
      %v404 = vpop.permute.xlu0 %403
      %405 = vrot.lane.b32.xlu0 %v402, 116
      %v406 = vpop.permute.xlu0 %405
      %v407 = vsel %vm255, %v404, %v406
      %409 = vst [vmem:[#allocation2 + $0x1c0] sm:$0xf] %v407
      %410 = vst [vmem:[#allocation1] ss:$2 sm:$0xff] %v297
      %v411 = vld.sshfl [vmem:[#allocation1] sm:$0xff pattern:$0x75316420]
      %v412 = vld.sshfl [vmem:[#allocation1 + $0x8] sm:$0xff pattern:$0x75316420]
      %413 = vrot.lane.b32.xlu0 %v411, 108
      %v414 = vpop.permute.xlu0 %413
      %415 = vrot.lane.b32.xlu0 %v412, 108
      %v416 = vpop.permute.xlu0 %415
      %v417 = vsel %vm266, %v414, %v416
      %419 = vst [vmem:[#allocation2 + $0xc8] sm:$0xf] %v417
      %s420 = scalar_lea.vmem [#allocation1], 1
      %421 = vst [vmem:[%s420] ss:$2 sm:$0xff] %v297
      %v422 = vld.sshfl [vmem:[#allocation1] sm:$0xff pattern:$0x75316420]
      %v423 = vld.sshfl [vmem:[#allocation1 + $0x8] sm:$0xff pattern:$0x75316420]
      %424 = vrot.lane.b32.xlu0 %v422, 108
      %v425 = vpop.permute.xlu0 %424
      %426 = vrot.lane.b32.xlu0 %v423, 108
      %v427 = vpop.permute.xlu0 %426
      %v428 = vsel %vm266, %v425, %v427
      %430 = vst [vmem:[#allocation2 + $0x1c0] sm:$0xf0] %v428
      %s431 = scalar_lea.vmem [#allocation1], 1
      %432 = vst [vmem:[%s431] ss:$2 sm:$0xff] %v297
      %v433 = vld.sshfl [vmem:[#allocation1] sm:$0xff pattern:$0x75316420]
      %v434 = vld.sshfl [vmem:[#allocation1 + $0x8] sm:$0xff pattern:$0x75316420]
      %435 = vrot.lane.b32.xlu0 %v433, 107
      %v436 = vpop.permute.xlu0 %435
      %437 = vrot.lane.b32.xlu0 %v434, 107
      %v438 = vpop.permute.xlu0 %437
      %v439 = vsel %vm278, %v436, %v438
      %441 = vst [vmem:[#allocation2 + $0xc8] sm:$0xf0] %v439
      %442 = vst [vmem:[#allocation1] ss:$2 sm:$0xff] %v297
      %v443 = vld.sshfl [vmem:[#allocation1] sm:$0xff pattern:$0x75316420]
      %v444 = vld.sshfl [vmem:[#allocation1 + $0x8] sm:$0xff pattern:$0x75316420]
      %445 = vrot.lane.b32.xlu0 %v443, 107
      %v446 = vpop.permute.xlu0 %445
      %447 = vrot.lane.b32.xlu0 %v444, 107
      %v448 = vpop.permute.xlu0 %447
      %v449 = vsel %vm278, %v446, %v448
      %451 = vst [vmem:[#allocation2 + $0x200] sm:$0xf] %v449
      %452 = vst [vmem:[#allocation1] ss:$2 sm:$0xff] %v297
      %v453 = vld.sshfl [vmem:[#allocation1] sm:$0xff pattern:$0x75316420]
      %v454 = vld.sshfl [vmem:[#allocation1 + $0x8] sm:$0xff pattern:$0x75316420]
      %455 = vrot.lane.b32.xlu0 %v453, 106
      %v456 = vpop.permute.xlu0 %455
      %457 = vrot.lane.b32.xlu0 %v454, 106
      %v458 = vpop.permute.xlu0 %457
      %v459 = vsel %vm289, %v456, %v458
      %461 = vst [vmem:[#allocation2 + $0x108] sm:$0xf] %v459
      %s462 = scalar_lea.vmem [#allocation1], 1
      %463 = vst [vmem:[%s462] ss:$2 sm:$0xff] %v297
      %v464 = vld.sshfl [vmem:[#allocation1] sm:$0xff pattern:$0x75316420]
      %v465 = vld.sshfl [vmem:[#allocation1 + $0x8] sm:$0xff pattern:$0x75316420]
      %466 = vrot.lane.b32.xlu0 %v464, 106
      %v467 = vpop.permute.xlu0 %466
      %468 = vrot.lane.b32.xlu0 %v465, 106
      %v469 = vpop.permute.xlu0 %468
      %v470 = vsel %vm289, %v467, %v469
      %472 = vst [vmem:[#allocation2 + $0x200] sm:$0xf0] %v470
      %s473 = sadd.s32 %s194, 2
      %s474 = smul.u32 %s473, 2
      %s475 = smul.addr %s474, 4
      %s476 = scalar_lea.vmem %s183, %s475
      %v477 = vld [vmem:[%s476] sm:$0xff]
      %478 = vst [vmem:[#allocation2 + $0x10] sm:$0xf] %v477
      %s480 = scalar_lea.vmem [#allocation1], 1
      %481 = vst [vmem:[%s480] ss:$2 sm:$0xff] %v477
      %v482 = vld.sshfl [vmem:[#allocation1] sm:$0xff pattern:$0x75316420]
      %484 = vst [vmem:[#allocation2 + $0x108] sm:$0xf0] %v482
      %485 = vst [vmem:[#allocation2 + $0x240] sm:$0xf] %v477
      %s486 = scalar_lea.vmem [#allocation1], 1
      %487 = vst [vmem:[%s486] ss:$2 sm:$0xff] %v477
      %v488 = vld.sshfl [vmem:[#allocation1] sm:$0xff pattern:$0x75316420]
      %v489 = vld.sshfl [vmem:[#allocation1 + $0x8] sm:$0xff pattern:$0x75316420]
      %490 = vrot.lane.b32.xlu0 %v488, 127
      %v491 = vpop.permute.xlu0 %490
      %492 = vrot.lane.b32.xlu0 %v489, 127
      %v493 = vpop.permute.xlu0 %492
      %v494 = vsel %vm209, %v491, %v493
      %496 = vst [vmem:[#allocation2 + $0x10] sm:$0xf0] %v494
      %497 = vst [vmem:[#allocation1] ss:$2 sm:$0xff] %v477
      %v498 = vld.sshfl [vmem:[#allocation1] sm:$0xff pattern:$0x75316420]
      %v499 = vld.sshfl [vmem:[#allocation1 + $0x8] sm:$0xff pattern:$0x75316420]
      %500 = vrot.lane.b32.xlu0 %v498, 127
      %v501 = vpop.permute.xlu0 %500
      %502 = vrot.lane.b32.xlu0 %v499, 127
      %v503 = vpop.permute.xlu0 %502
      %v504 = vsel %vm209, %v501, %v503
      %506 = vst [vmem:[#allocation2 + $0x148] sm:$0xf] %v504
      %s507 = scalar_lea.vmem [#allocation1], 1
      %508 = vst [vmem:[%s507] ss:$2 sm:$0xff] %v477
      %v509 = vld.sshfl [vmem:[#allocation1] sm:$0xff pattern:$0x75316420]
      %v510 = vld.sshfl [vmem:[#allocation1 + $0x8] sm:$0xff pattern:$0x75316420]
      %511 = vrot.lane.b32.xlu0 %v509, 127
      %v512 = vpop.permute.xlu0 %511
      %513 = vrot.lane.b32.xlu0 %v510, 127
      %v514 = vpop.permute.xlu0 %513
      %v515 = vsel %vm209, %v512, %v514
      %517 = vst [vmem:[#allocation2 + $0x240] sm:$0xf0] %v515
      %518 = vst [vmem:[#allocation1] ss:$2 sm:$0xff] %v477
      %v519 = vld.sshfl [vmem:[#allocation1] sm:$0xff pattern:$0x75316420]
      %v520 = vld.sshfl [vmem:[#allocation1 + $0x8] sm:$0xff pattern:$0x75316420]
      %521 = vrot.lane.b32.xlu0 %v519, 126
      %v522 = vpop.permute.xlu0 %521
      %523 = vrot.lane.b32.xlu0 %v520, 126
      %v524 = vpop.permute.xlu0 %523
      %v525 = vsel %vm220, %v522, %v524
      %527 = vst [vmem:[#allocation2 + $0x50] sm:$0xf] %v525
      %s528 = scalar_lea.vmem [#allocation1], 1
      %529 = vst [vmem:[%s528] ss:$2 sm:$0xff] %v477
      %v530 = vld.sshfl [vmem:[#allocation1] sm:$0xff pattern:$0x75316420]
      %v531 = vld.sshfl [vmem:[#allocation1 + $0x8] sm:$0xff pattern:$0x75316420]
      %532 = vrot.lane.b32.xlu0 %v530, 126
      %v533 = vpop.permute.xlu0 %532
      %534 = vrot.lane.b32.xlu0 %v531, 126
      %v535 = vpop.permute.xlu0 %534
      %v536 = vsel %vm220, %v533, %v535
      %538 = vst [vmem:[#allocation2 + $0x148] sm:$0xf0] %v536
      %539 = vst [vmem:[#allocation1] ss:$2 sm:$0xff] %v477
      %v540 = vld.sshfl [vmem:[#allocation1] sm:$0xff pattern:$0x75316420]
      %v541 = vld.sshfl [vmem:[#allocation1 + $0x8] sm:$0xff pattern:$0x75316420]
      %542 = vrot.lane.b32.xlu0 %v540, 126
      %v543 = vpop.permute.xlu0 %542
      %544 = vrot.lane.b32.xlu0 %v541, 126
      %v545 = vpop.permute.xlu0 %544
      %v546 = vsel %vm220, %v543, %v545
      %548 = vst [vmem:[#allocation2 + $0x280] sm:$0xf] %v546
      %s549 = scalar_lea.vmem [#allocation1], 1
      %550 = vst [vmem:[%s549] ss:$2 sm:$0xff] %v477
      %v551 = vld.sshfl [vmem:[#allocation1] sm:$0xff pattern:$0x75316420]
      %v552 = vld.sshfl [vmem:[#allocation1 + $0x8] sm:$0xff pattern:$0x75316420]
      %553 = vrot.lane.b32.xlu0 %v551, 118
      %v554 = vpop.permute.xlu0 %553
      %555 = vrot.lane.b32.xlu0 %v552, 118
      %v556 = vpop.permute.xlu0 %555
      %v557 = vsel %vm232, %v554, %v556
      %559 = vst [vmem:[#allocation2 + $0x50] sm:$0xf0] %v557
      %560 = vst [vmem:[#allocation1] ss:$2 sm:$0xff] %v477
      %v561 = vld.sshfl [vmem:[#allocation1] sm:$0xff pattern:$0x75316420]
      %v562 = vld.sshfl [vmem:[#allocation1 + $0x8] sm:$0xff pattern:$0x75316420]
      %563 = vrot.lane.b32.xlu0 %v561, 118
      %v564 = vpop.permute.xlu0 %563
      %565 = vrot.lane.b32.xlu0 %v562, 118
      %v566 = vpop.permute.xlu0 %565
      %v567 = vsel %vm232, %v564, %v566
      %569 = vst [vmem:[#allocation2 + $0x188] sm:$0xf] %v567
      %s570 = scalar_lea.vmem [#allocation1], 1
      %571 = vst [vmem:[%s570] ss:$2 sm:$0xff] %v477
      %v572 = vld.sshfl [vmem:[#allocation1] sm:$0xff pattern:$0x75316420]
      %v573 = vld.sshfl [vmem:[#allocation1 + $0x8] sm:$0xff pattern:$0x75316420]
      %574 = vrot.lane.b32.xlu0 %v572, 118
      %v575 = vpop.permute.xlu0 %574
      %576 = vrot.lane.b32.xlu0 %v573, 118
      %v577 = vpop.permute.xlu0 %576
      %v578 = vsel %vm232, %v575, %v577
      %580 = vst [vmem:[#allocation2 + $0x280] sm:$0xf0] %v578
      %581 = vst [vmem:[#allocation1] ss:$2 sm:$0xff] %v477
      %v582 = vld.sshfl [vmem:[#allocation1] sm:$0xff pattern:$0x75316420]
      %v583 = vld.sshfl [vmem:[#allocation1 + $0x8] sm:$0xff pattern:$0x75316420]
      %584 = vrot.lane.b32.xlu0 %v582, 117
      %v585 = vpop.permute.xlu0 %584
      %586 = vrot.lane.b32.xlu0 %v583, 117
      %v587 = vpop.permute.xlu0 %586
      %v588 = vsel %vm243, %v585, %v587
      %590 = vst [vmem:[#allocation2 + $0x90] sm:$0xf] %v588
      %s591 = scalar_lea.vmem [#allocation1], 1
      %592 = vst [vmem:[%s591] ss:$2 sm:$0xff] %v477
      %v593 = vld.sshfl [vmem:[#allocation1] sm:$0xff pattern:$0x75316420]
      %v594 = vld.sshfl [vmem:[#allocation1 + $0x8] sm:$0xff pattern:$0x75316420]
      %595 = vrot.lane.b32.xlu0 %v593, 117
      %v596 = vpop.permute.xlu0 %595
      %597 = vrot.lane.b32.xlu0 %v594, 117
      %v598 = vpop.permute.xlu0 %597
      %v599 = vsel %vm243, %v596, %v598
      %601 = vst [vmem:[#allocation2 + $0x188] sm:$0xf0] %v599
      %602 = vst [vmem:[#allocation1] ss:$2 sm:$0xff] %v477
      %v603 = vld.sshfl [vmem:[#allocation1] sm:$0xff pattern:$0x75316420]
      %v604 = vld.sshfl [vmem:[#allocation1 + $0x8] sm:$0xff pattern:$0x75316420]
      %605 = vrot.lane.b32.xlu0 %v603, 117
      %v606 = vpop.permute.xlu0 %605
      %607 = vrot.lane.b32.xlu0 %v604, 117
      %v608 = vpop.permute.xlu0 %607
      %v609 = vsel %vm243, %v606, %v608
      %611 = vst [vmem:[#allocation2 + $0x2c0] sm:$0xf] %v609
      %s612 = scalar_lea.vmem [#allocation1], 1
      %613 = vst [vmem:[%s612] ss:$2 sm:$0xff] %v477
      %v614 = vld.sshfl [vmem:[#allocation1] sm:$0xff pattern:$0x75316420]
      %v615 = vld.sshfl [vmem:[#allocation1 + $0x8] sm:$0xff pattern:$0x75316420]
      %616 = vrot.lane.b32.xlu0 %v614, 116
      %v617 = vpop.permute.xlu0 %616
      %618 = vrot.lane.b32.xlu0 %v615, 116
      %v619 = vpop.permute.xlu0 %618
      %v620 = vsel %vm255, %v617, %v619
      %622 = vst [vmem:[#allocation2 + $0x90] sm:$0xf0] %v620
      %623 = vst [vmem:[#allocation1] ss:$2 sm:$0xff] %v477
      %v624 = vld.sshfl [vmem:[#allocation1] sm:$0xff pattern:$0x75316420]
      %v625 = vld.sshfl [vmem:[#allocation1 + $0x8] sm:$0xff pattern:$0x75316420]
      %626 = vrot.lane.b32.xlu0 %v624, 116
      %v627 = vpop.permute.xlu0 %626
      %628 = vrot.lane.b32.xlu0 %v625, 116
      %v629 = vpop.permute.xlu0 %628
      %v630 = vsel %vm255, %v627, %v629
      %632 = vst [vmem:[#allocation2 + $0x1c8] sm:$0xf] %v630
      %s633 = scalar_lea.vmem [#allocation1], 1
      %634 = vst [vmem:[%s633] ss:$2 sm:$0xff] %v477
      %v635 = vld.sshfl [vmem:[#allocation1] sm:$0xff pattern:$0x75316420]
      %v636 = vld.sshfl [vmem:[#allocation1 + $0x8] sm:$0xff pattern:$0x75316420]
      %637 = vrot.lane.b32.xlu0 %v635, 116
      %v638 = vpop.permute.xlu0 %637
      %639 = vrot.lane.b32.xlu0 %v636, 116
      %v640 = vpop.permute.xlu0 %639
      %v641 = vsel %vm255, %v638, %v640
      %643 = vst [vmem:[#allocation2 + $0x2c0] sm:$0xf0] %v641
      %644 = vst [vmem:[#allocation1] ss:$2 sm:$0xff] %v477
      %v645 = vld.sshfl [vmem:[#allocation1] sm:$0xff pattern:$0x75316420]
      %v646 = vld.sshfl [vmem:[#allocation1 + $0x8] sm:$0xff pattern:$0x75316420]
      %647 = vrot.lane.b32.xlu0 %v645, 108
      %v648 = vpop.permute.xlu0 %647
      %649 = vrot.lane.b32.xlu0 %v646, 108
      %v650 = vpop.permute.xlu0 %649
      %v651 = vsel %vm266, %v648, %v650
      %653 = vst [vmem:[#allocation2 + $0xd0] sm:$0xf] %v651
      %s654 = scalar_lea.vmem [#allocation1], 1
      %655 = vst [vmem:[%s654] ss:$2 sm:$0xff] %v477
      %v656 = vld.sshfl [vmem:[#allocation1] sm:$0xff pattern:$0x75316420]
      %v657 = vld.sshfl [vmem:[#allocation1 + $0x8] sm:$0xff pattern:$0x75316420]
      %658 = vrot.lane.b32.xlu0 %v656, 108
      %v659 = vpop.permute.xlu0 %658
      %660 = vrot.lane.b32.xlu0 %v657, 108
      %v661 = vpop.permute.xlu0 %660
      %v662 = vsel %vm266, %v659, %v661
      %664 = vst [vmem:[#allocation2 + $0x1c8] sm:$0xf0] %v662
      %665 = vst [vmem:[#allocation1] ss:$2 sm:$0xff] %v477
      %v666 = vld.sshfl [vmem:[#allocation1] sm:$0xff pattern:$0x75316420]
      %v667 = vld.sshfl [vmem:[#allocation1 + $0x8] sm:$0xff pattern:$0x75316420]
      %668 = vrot.lane.b32.xlu0 %v666, 108
      %v669 = vpop.permute.xlu0 %668
      %670 = vrot.lane.b32.xlu0 %v667, 108
      %v671 = vpop.permute.xlu0 %670
      %v672 = vsel %vm266, %v669, %v671
      %674 = vst [vmem:[#allocation2 + $0x300] sm:$0xf] %v672
      %s675 = scalar_lea.vmem [#allocation1], 1
      %676 = vst [vmem:[%s675] ss:$2 sm:$0xff] %v477
      %v677 = vld.sshfl [vmem:[#allocation1] sm:$0xff pattern:$0x75316420]
      %v678 = vld.sshfl [vmem:[#allocation1 + $0x8] sm:$0xff pattern:$0x75316420]
      %679 = vrot.lane.b32.xlu0 %v677, 107
      %v680 = vpop.permute.xlu0 %679
      %681 = vrot.lane.b32.xlu0 %v678, 107
      %v682 = vpop.permute.xlu0 %681
      %v683 = vsel %vm278, %v680, %v682
      %685 = vst [vmem:[#allocation2 + $0xd0] sm:$0xf0] %v683
      %686 = vst [vmem:[#allocation1] ss:$2 sm:$0xff] %v477
      %v687 = vld.sshfl [vmem:[#allocation1] sm:$0xff pattern:$0x75316420]
      %v688 = vld.sshfl [vmem:[#allocation1 + $0x8] sm:$0xff pattern:$0x75316420]
      %689 = vrot.lane.b32.xlu0 %v687, 107
      %v690 = vpop.permute.xlu0 %689
      %691 = vrot.lane.b32.xlu0 %v688, 107
      %v692 = vpop.permute.xlu0 %691
      %v693 = vsel %vm278, %v690, %v692
      %695 = vst [vmem:[#allocation2 + $0x208] sm:$0xf] %v693
      %s696 = scalar_lea.vmem [#allocation1], 1
      %697 = vst [vmem:[%s696] ss:$2 sm:$0xff] %v477
      %v698 = vld.sshfl [vmem:[#allocation1] sm:$0xff pattern:$0x75316420]
      %v699 = vld.sshfl [vmem:[#allocation1 + $0x8] sm:$0xff pattern:$0x75316420]
      %700 = vrot.lane.b32.xlu0 %v698, 107
      %v701 = vpop.permute.xlu0 %700
      %702 = vrot.lane.b32.xlu0 %v699, 107
      %v703 = vpop.permute.xlu0 %702
      %v704 = vsel %vm278, %v701, %v703
      %706 = vst [vmem:[#allocation2 + $0x300] sm:$0xf0] %v704
      %707 = vst [vmem:[#allocation1] ss:$2 sm:$0xff] %v477
      %v708 = vld.sshfl [vmem:[#allocation1] sm:$0xff pattern:$0x75316420]
      %v709 = vld.sshfl [vmem:[#allocation1 + $0x8] sm:$0xff pattern:$0x75316420]
      %710 = vrot.lane.b32.xlu0 %v708, 106
      %v711 = vpop.permute.xlu0 %710
      %712 = vrot.lane.b32.xlu0 %v709, 106
      %v713 = vpop.permute.xlu0 %712
      %v714 = vsel %vm289, %v711, %v713
      %716 = vst [vmem:[#allocation2 + $0x110] sm:$0xf] %v714
      %s717 = scalar_lea.vmem [#allocation1], 1
      %718 = vst [vmem:[%s717] ss:$2 sm:$0xff] %v477
      %v719 = vld.sshfl [vmem:[#allocation1] sm:$0xff pattern:$0x75316420]
      %v720 = vld.sshfl [vmem:[#allocation1 + $0x8] sm:$0xff pattern:$0x75316420]
      %721 = vrot.lane.b32.xlu0 %v719, 106
      %v722 = vpop.permute.xlu0 %721
      %723 = vrot.lane.b32.xlu0 %v720, 106
      %v724 = vpop.permute.xlu0 %723
      %v725 = vsel %vm289, %v722, %v724
      %727 = vst [vmem:[#allocation2 + $0x208] sm:$0xf0] %v725
      %728 = vst [vmem:[#allocation1] ss:$2 sm:$0xff] %v477
      %v729 = vld.sshfl [vmem:[#allocation1] sm:$0xff pattern:$0x75316420]
      %v730 = vld.sshfl [vmem:[#allocation1 + $0x8] sm:$0xff pattern:$0x75316420]
      %731 = vrot.lane.b32.xlu0 %v729, 106
      %v732 = vpop.permute.xlu0 %731
      %733 = vrot.lane.b32.xlu0 %v730, 106
      %v734 = vpop.permute.xlu0 %733
      %v735 = vsel %vm289, %v732, %v734
      %737 = vst [vmem:[#allocation2 + $0x340] sm:$0xf] %v735
      %s738 = sadd.s32 %s194, 3
      %s739 = smul.u32 %s738, 2
      %s740 = smul.addr %s739, 4
      %s741 = scalar_lea.vmem %s183, %s740
      %v742 = vld [vmem:[%s741] sm:$0xff]
      %743 = vst [vmem:[#allocation2 + $0x18] sm:$0xf] %v742
      %s745 = scalar_lea.vmem [#allocation1], 1
      %746 = vst [vmem:[%s745] ss:$2 sm:$0xff] %v742
      %v747 = vld.sshfl [vmem:[#allocation1] sm:$0xff pattern:$0x75316420]
      %749 = vst [vmem:[#allocation2 + $0x110] sm:$0xf0] %v747
      %750 = vst [vmem:[#allocation2 + $0x248] sm:$0xf] %v742
      %s751 = scalar_lea.vmem [#allocation1], 1
      %752 = vst [vmem:[%s751] ss:$2 sm:$0xff] %v742
      %v753 = vld.sshfl [vmem:[#allocation1] sm:$0xff pattern:$0x75316420]
      %v754 = vld.sshfl [vmem:[#allocation1 + $0x8] sm:$0xff pattern:$0x75316420]
      %755 = vrot.lane.b32.xlu0 %v753, 127
      %v756 = vpop.permute.xlu0 %755
      %757 = vrot.lane.b32.xlu0 %v754, 127
      %v758 = vpop.permute.xlu0 %757
      %v759 = vsel %vm209, %v756, %v758
      %761 = vst [vmem:[#allocation2 + $0x18] sm:$0xf0] %v759
      %762 = vst [vmem:[#allocation1] ss:$2 sm:$0xff] %v742
      %v763 = vld.sshfl [vmem:[#allocation1] sm:$0xff pattern:$0x75316420]
      %v764 = vld.sshfl [vmem:[#allocation1 + $0x8] sm:$0xff pattern:$0x75316420]
      %765 = vrot.lane.b32.xlu0 %v763, 127
      %v766 = vpop.permute.xlu0 %765
      %767 = vrot.lane.b32.xlu0 %v764, 127
      %v768 = vpop.permute.xlu0 %767
      %v769 = vsel %vm209, %v766, %v768
      %771 = vst [vmem:[#allocation2 + $0x150] sm:$0xf] %v769
      %s772 = scalar_lea.vmem [#allocation1], 1
      %773 = vst [vmem:[%s772] ss:$2 sm:$0xff] %v742
      %v774 = vld.sshfl [vmem:[#allocation1] sm:$0xff pattern:$0x75316420]
      %v775 = vld.sshfl [vmem:[#allocation1 + $0x8] sm:$0xff pattern:$0x75316420]
      %776 = vrot.lane.b32.xlu0 %v774, 127
      %v777 = vpop.permute.xlu0 %776
      %778 = vrot.lane.b32.xlu0 %v775, 127
      %v779 = vpop.permute.xlu0 %778
      %v780 = vsel %vm209, %v777, %v779
      %782 = vst [vmem:[#allocation2 + $0x248] sm:$0xf0] %v780
      %783 = vst [vmem:[#allocation1] ss:$2 sm:$0xff] %v742
      %v784 = vld.sshfl [vmem:[#allocation1] sm:$0xff pattern:$0x75316420]
      %v785 = vld.sshfl [vmem:[#allocation1 + $0x8] sm:$0xff pattern:$0x75316420]
      %786 = vrot.lane.b32.xlu0 %v784, 126
      %v787 = vpop.permute.xlu0 %786
      %788 = vrot.lane.b32.xlu0 %v785, 126
      %v789 = vpop.permute.xlu0 %788
      %v790 = vsel %vm220, %v787, %v789
      %792 = vst [vmem:[#allocation2 + $0x58] sm:$0xf] %v790
      %s793 = scalar_lea.vmem [#allocation1], 1
      %794 = vst [vmem:[%s793] ss:$2 sm:$0xff] %v742
      %v795 = vld.sshfl [vmem:[#allocation1] sm:$0xff pattern:$0x75316420]
      %v796 = vld.sshfl [vmem:[#allocation1 + $0x8] sm:$0xff pattern:$0x75316420]
      %797 = vrot.lane.b32.xlu0 %v795, 126
      %v798 = vpop.permute.xlu0 %797
      %799 = vrot.lane.b32.xlu0 %v796, 126
      %v800 = vpop.permute.xlu0 %799
      %v801 = vsel %vm220, %v798, %v800
      %803 = vst [vmem:[#allocation2 + $0x150] sm:$0xf0] %v801
      %804 = vst [vmem:[#allocation1] ss:$2 sm:$0xff] %v742
      %v805 = vld.sshfl [vmem:[#allocation1] sm:$0xff pattern:$0x75316420]
      %v806 = vld.sshfl [vmem:[#allocation1 + $0x8] sm:$0xff pattern:$0x75316420]
      %807 = vrot.lane.b32.xlu0 %v805, 126
      %v808 = vpop.permute.xlu0 %807
      %809 = vrot.lane.b32.xlu0 %v806, 126
      %v810 = vpop.permute.xlu0 %809
      %v811 = vsel %vm220, %v808, %v810
      %813 = vst [vmem:[#allocation2 + $0x288] sm:$0xf] %v811
      %s814 = scalar_lea.vmem [#allocation1], 1
      %815 = vst [vmem:[%s814] ss:$2 sm:$0xff] %v742
      %v816 = vld.sshfl [vmem:[#allocation1] sm:$0xff pattern:$0x75316420]
      %v817 = vld.sshfl [vmem:[#allocation1 + $0x8] sm:$0xff pattern:$0x75316420]
      %818 = vrot.lane.b32.xlu0 %v816, 118
      %v819 = vpop.permute.xlu0 %818
      %820 = vrot.lane.b32.xlu0 %v817, 118
      %v821 = vpop.permute.xlu0 %820
      %v822 = vsel %vm232, %v819, %v821
      %824 = vst [vmem:[#allocation2 + $0x58] sm:$0xf0] %v822
      %825 = vst [vmem:[#allocation1] ss:$2 sm:$0xff] %v742
      %v826 = vld.sshfl [vmem:[#allocation1] sm:$0xff pattern:$0x75316420]
      %v827 = vld.sshfl [vmem:[#allocation1 + $0x8] sm:$0xff pattern:$0x75316420]
      %828 = vrot.lane.b32.xlu0 %v826, 118
      %v829 = vpop.permute.xlu0 %828
      %830 = vrot.lane.b32.xlu0 %v827, 118
      %v831 = vpop.permute.xlu0 %830
      %v832 = vsel %vm232, %v829, %v831
      %834 = vst [vmem:[#allocation2 + $0x190] sm:$0xf] %v832
      %s835 = scalar_lea.vmem [#allocation1], 1
      %836 = vst [vmem:[%s835] ss:$2 sm:$0xff] %v742
      %v837 = vld.sshfl [vmem:[#allocation1] sm:$0xff pattern:$0x75316420]
      %v838 = vld.sshfl [vmem:[#allocation1 + $0x8] sm:$0xff pattern:$0x75316420]
      %839 = vrot.lane.b32.xlu0 %v837, 118
      %v840 = vpop.permute.xlu0 %839
      %841 = vrot.lane.b32.xlu0 %v838, 118
      %v842 = vpop.permute.xlu0 %841
      %v843 = vsel %vm232, %v840, %v842
      %845 = vst [vmem:[#allocation2 + $0x288] sm:$0xf0] %v843
      %846 = vst [vmem:[#allocation1] ss:$2 sm:$0xff] %v742
      %v847 = vld.sshfl [vmem:[#allocation1] sm:$0xff pattern:$0x75316420]
      %v848 = vld.sshfl [vmem:[#allocation1 + $0x8] sm:$0xff pattern:$0x75316420]
      %849 = vrot.lane.b32.xlu0 %v847, 117
      %v850 = vpop.permute.xlu0 %849
      %851 = vrot.lane.b32.xlu0 %v848, 117
      %v852 = vpop.permute.xlu0 %851
      %v853 = vsel %vm243, %v850, %v852
      %855 = vst [vmem:[#allocation2 + $0x98] sm:$0xf] %v853
      %s856 = scalar_lea.vmem [#allocation1], 1
      %857 = vst [vmem:[%s856] ss:$2 sm:$0xff] %v742
      %v858 = vld.sshfl [vmem:[#allocation1] sm:$0xff pattern:$0x75316420]
      %v859 = vld.sshfl [vmem:[#allocation1 + $0x8] sm:$0xff pattern:$0x75316420]
      %860 = vrot.lane.b32.xlu0 %v858, 117
      %v861 = vpop.permute.xlu0 %860
      %862 = vrot.lane.b32.xlu0 %v859, 117
      %v863 = vpop.permute.xlu0 %862
      %v864 = vsel %vm243, %v861, %v863
      %866 = vst [vmem:[#allocation2 + $0x190] sm:$0xf0] %v864
      %867 = vst [vmem:[#allocation1] ss:$2 sm:$0xff] %v742
      %v868 = vld.sshfl [vmem:[#allocation1] sm:$0xff pattern:$0x75316420]
      %v869 = vld.sshfl [vmem:[#allocation1 + $0x8] sm:$0xff pattern:$0x75316420]
      %870 = vrot.lane.b32.xlu0 %v868, 117
      %v871 = vpop.permute.xlu0 %870
      %872 = vrot.lane.b32.xlu0 %v869, 117
      %v873 = vpop.permute.xlu0 %872
      %v874 = vsel %vm243, %v871, %v873
      %876 = vst [vmem:[#allocation2 + $0x2c8] sm:$0xf] %v874
      %s877 = scalar_lea.vmem [#allocation1], 1
      %878 = vst [vmem:[%s877] ss:$2 sm:$0xff] %v742
      %v879 = vld.sshfl [vmem:[#allocation1] sm:$0xff pattern:$0x75316420]
      %v880 = vld.sshfl [vmem:[#allocation1 + $0x8] sm:$0xff pattern:$0x75316420]
      %881 = vrot.lane.b32.xlu0 %v879, 116
      %v882 = vpop.permute.xlu0 %881
      %883 = vrot.lane.b32.xlu0 %v880, 116
      %v884 = vpop.permute.xlu0 %883
      %v885 = vsel %vm255, %v882, %v884
      %887 = vst [vmem:[#allocation2 + $0x98] sm:$0xf0] %v885
      %888 = vst [vmem:[#allocation1] ss:$2 sm:$0xff] %v742
      %v889 = vld.sshfl [vmem:[#allocation1] sm:$0xff pattern:$0x75316420]
      %v890 = vld.sshfl [vmem:[#allocation1 + $0x8] sm:$0xff pattern:$0x75316420]
      %891 = vrot.lane.b32.xlu0 %v889, 116
      %v892 = vpop.permute.xlu0 %891
      %893 = vrot.lane.b32.xlu0 %v890, 116
      %v894 = vpop.permute.xlu0 %893
      %v895 = vsel %vm255, %v892, %v894
      %897 = vst [vmem:[#allocation2 + $0x1d0] sm:$0xf] %v895
      %s898 = scalar_lea.vmem [#allocation1], 1
      %899 = vst [vmem:[%s898] ss:$2 sm:$0xff] %v742
      %v900 = vld.sshfl [vmem:[#allocation1] sm:$0xff pattern:$0x75316420]
      %v901 = vld.sshfl [vmem:[#allocation1 + $0x8] sm:$0xff pattern:$0x75316420]
      %902 = vrot.lane.b32.xlu0 %v900, 116
      %v903 = vpop.permute.xlu0 %902
      %904 = vrot.lane.b32.xlu0 %v901, 116
      %v905 = vpop.permute.xlu0 %904
      %v906 = vsel %vm255, %v903, %v905
      %908 = vst [vmem:[#allocation2 + $0x2c8] sm:$0xf0] %v906
      %909 = vst [vmem:[#allocation1] ss:$2 sm:$0xff] %v742
      %v910 = vld.sshfl [vmem:[#allocation1] sm:$0xff pattern:$0x75316420]
      %v911 = vld.sshfl [vmem:[#allocation1 + $0x8] sm:$0xff pattern:$0x75316420]
      %912 = vrot.lane.b32.xlu0 %v910, 108
      %v913 = vpop.permute.xlu0 %912
      %914 = vrot.lane.b32.xlu0 %v911, 108
      %v915 = vpop.permute.xlu0 %914
      %v916 = vsel %vm266, %v913, %v915
      %918 = vst [vmem:[#allocation2 + $0xd8] sm:$0xf] %v916
      %s919 = scalar_lea.vmem [#allocation1], 1
      %920 = vst [vmem:[%s919] ss:$2 sm:$0xff] %v742
      %v921 = vld.sshfl [vmem:[#allocation1] sm:$0xff pattern:$0x75316420]
      %v922 = vld.sshfl [vmem:[#allocation1 + $0x8] sm:$0xff pattern:$0x75316420]
      %923 = vrot.lane.b32.xlu0 %v921, 108
      %v924 = vpop.permute.xlu0 %923
      %925 = vrot.lane.b32.xlu0 %v922, 108
      %v926 = vpop.permute.xlu0 %925
      %v927 = vsel %vm266, %v924, %v926
      %929 = vst [vmem:[#allocation2 + $0x1d0] sm:$0xf0] %v927
      %930 = vst [vmem:[#allocation1] ss:$2 sm:$0xff] %v742
      %v931 = vld.sshfl [vmem:[#allocation1] sm:$0xff pattern:$0x75316420]
      %v932 = vld.sshfl [vmem:[#allocation1 + $0x8] sm:$0xff pattern:$0x75316420]
      %933 = vrot.lane.b32.xlu0 %v931, 108
      %v934 = vpop.permute.xlu0 %933
      %935 = vrot.lane.b32.xlu0 %v932, 108
      %v936 = vpop.permute.xlu0 %935
      %v937 = vsel %vm266, %v934, %v936
      %939 = vst [vmem:[#allocation2 + $0x308] sm:$0xf] %v937
      %s940 = scalar_lea.vmem [#allocation1], 1
      %941 = vst [vmem:[%s940] ss:$2 sm:$0xff] %v742
      %v942 = vld.sshfl [vmem:[#allocation1] sm:$0xff pattern:$0x75316420]
      %v943 = vld.sshfl [vmem:[#allocation1 + $0x8] sm:$0xff pattern:$0x75316420]
      %944 = vrot.lane.b32.xlu0 %v942, 107
      %v945 = vpop.permute.xlu0 %944
      %946 = vrot.lane.b32.xlu0 %v943, 107
      %v947 = vpop.permute.xlu0 %946
      %v948 = vsel %vm278, %v945, %v947
      %950 = vst [vmem:[#allocation2 + $0xd8] sm:$0xf0] %v948
      %951 = vst [vmem:[#allocation1] ss:$2 sm:$0xff] %v742
      %v952 = vld.sshfl [vmem:[#allocation1] sm:$0xff pattern:$0x75316420]
      %v953 = vld.sshfl [vmem:[#allocation1 + $0x8] sm:$0xff pattern:$0x75316420]
      %954 = vrot.lane.b32.xlu0 %v952, 107
      %v955 = vpop.permute.xlu0 %954
      %956 = vrot.lane.b32.xlu0 %v953, 107
      %v957 = vpop.permute.xlu0 %956
      %v958 = vsel %vm278, %v955, %v957
      %960 = vst [vmem:[#allocation2 + $0x210] sm:$0xf] %v958
      %s961 = scalar_lea.vmem [#allocation1], 1
      %962 = vst [vmem:[%s961] ss:$2 sm:$0xff] %v742
      %v963 = vld.sshfl [vmem:[#allocation1] sm:$0xff pattern:$0x75316420]
      %v964 = vld.sshfl [vmem:[#allocation1 + $0x8] sm:$0xff pattern:$0x75316420]
      %965 = vrot.lane.b32.xlu0 %v963, 107
      %v966 = vpop.permute.xlu0 %965
      %967 = vrot.lane.b32.xlu0 %v964, 107
      %v968 = vpop.permute.xlu0 %967
      %v969 = vsel %vm278, %v966, %v968
      %971 = vst [vmem:[#allocation2 + $0x308] sm:$0xf0] %v969
      %972 = vst [vmem:[#allocation1] ss:$2 sm:$0xff] %v742
      %v973 = vld.sshfl [vmem:[#allocation1] sm:$0xff pattern:$0x75316420]
      %v974 = vld.sshfl [vmem:[#allocation1 + $0x8] sm:$0xff pattern:$0x75316420]
      %975 = vrot.lane.b32.xlu0 %v973, 106
      %v976 = vpop.permute.xlu0 %975
      %977 = vrot.lane.b32.xlu0 %v974, 106
      %v978 = vpop.permute.xlu0 %977
      %v979 = vsel %vm289, %v976, %v978
      %981 = vst [vmem:[#allocation2 + $0x118] sm:$0xf] %v979
      %s982 = scalar_lea.vmem [#allocation1], 1
      %983 = vst [vmem:[%s982] ss:$2 sm:$0xff] %v742
      %v984 = vld.sshfl [vmem:[#allocation1] sm:$0xff pattern:$0x75316420]
      %v985 = vld.sshfl [vmem:[#allocation1 + $0x8] sm:$0xff pattern:$0x75316420]
      %986 = vrot.lane.b32.xlu0 %v984, 106
      %v987 = vpop.permute.xlu0 %986
      %988 = vrot.lane.b32.xlu0 %v985, 106
      %v989 = vpop.permute.xlu0 %988
      %v990 = vsel %vm289, %v987, %v989
      %992 = vst [vmem:[#allocation2 + $0x210] sm:$0xf0] %v990
      %993 = vst [vmem:[#allocation1] ss:$2 sm:$0xff] %v742
      %v994 = vld.sshfl [vmem:[#allocation1] sm:$0xff pattern:$0x75316420]
      %v995 = vld.sshfl [vmem:[#allocation1 + $0x8] sm:$0xff pattern:$0x75316420]
      %996 = vrot.lane.b32.xlu0 %v994, 106
      %v997 = vpop.permute.xlu0 %996
      %998 = vrot.lane.b32.xlu0 %v995, 106
      %v999 = vpop.permute.xlu0 %998
      %v1000 = vsel %vm289, %v997, %v999
      %1002 = vst [vmem:[#allocation2 + $0x348] sm:$0xf] %v1000
      %s1003 = sadd.s32 %s194, 4
      %s1004 = smul.u32 %s1003, 2
      %s1005 = smul.addr %s1004, 4
      %s1006 = scalar_lea.vmem %s183, %s1005
      %v1007 = vld [vmem:[%s1006] sm:$0xff]
      %1008 = vst [vmem:[#allocation2 + $0x20] sm:$0xf] %v1007
      %s1010 = scalar_lea.vmem [#allocation1], 1
      %1011 = vst [vmem:[%s1010] ss:$2 sm:$0xff] %v1007
      %v1012 = vld.sshfl [vmem:[#allocation1] sm:$0xff pattern:$0x75316420]
      %1014 = vst [vmem:[#allocation2 + $0x118] sm:$0xf0] %v1012
      %1015 = vst [vmem:[#allocation2 + $0x250] sm:$0xf] %v1007
      %s1016 = scalar_lea.vmem [#allocation1], 1
      %1017 = vst [vmem:[%s1016] ss:$2 sm:$0xff] %v1007
      %v1018 = vld.sshfl [vmem:[#allocation1] sm:$0xff pattern:$0x75316420]
      %v1019 = vld.sshfl [vmem:[#allocation1 + $0x8] sm:$0xff pattern:$0x75316420]
      %1020 = vrot.lane.b32.xlu0 %v1018, 127
      %v1021 = vpop.permute.xlu0 %1020
      %1022 = vrot.lane.b32.xlu0 %v1019, 127
      %v1023 = vpop.permute.xlu0 %1022
      %v1024 = vsel %vm209, %v1021, %v1023
      %1026 = vst [vmem:[#allocation2 + $0x20] sm:$0xf0] %v1024
      %1027 = vst [vmem:[#allocation1] ss:$2 sm:$0xff] %v1007
      %v1028 = vld.sshfl [vmem:[#allocation1] sm:$0xff pattern:$0x75316420]
      %v1029 = vld.sshfl [vmem:[#allocation1 + $0x8] sm:$0xff pattern:$0x75316420]
      %1030 = vrot.lane.b32.xlu0 %v1028, 127
      %v1031 = vpop.permute.xlu0 %1030
      %1032 = vrot.lane.b32.xlu0 %v1029, 127
      %v1033 = vpop.permute.xlu0 %1032
      %v1034 = vsel %vm209, %v1031, %v1033
      %1036 = vst [vmem:[#allocation2 + $0x158] sm:$0xf] %v1034
      %s1037 = scalar_lea.vmem [#allocation1], 1
      %1038 = vst [vmem:[%s1037] ss:$2 sm:$0xff] %v1007
      %v1039 = vld.sshfl [vmem:[#allocation1] sm:$0xff pattern:$0x75316420]
      %v1040 = vld.sshfl [vmem:[#allocation1 + $0x8] sm:$0xff pattern:$0x75316420]
      %1041 = vrot.lane.b32.xlu0 %v1039, 127
      %v1042 = vpop.permute.xlu0 %1041
      %1043 = vrot.lane.b32.xlu0 %v1040, 127
      %v1044 = vpop.permute.xlu0 %1043
      %v1045 = vsel %vm209, %v1042, %v1044
      %1047 = vst [vmem:[#allocation2 + $0x250] sm:$0xf0] %v1045
      %1048 = vst [vmem:[#allocation1] ss:$2 sm:$0xff] %v1007
      %v1049 = vld.sshfl [vmem:[#allocation1] sm:$0xff pattern:$0x75316420]
      %v1050 = vld.sshfl [vmem:[#allocation1 + $0x8] sm:$0xff pattern:$0x75316420]
      %1051 = vrot.lane.b32.xlu0 %v1049, 126
      %v1052 = vpop.permute.xlu0 %1051
      %1053 = vrot.lane.b32.xlu0 %v1050, 126
      %v1054 = vpop.permute.xlu0 %1053
      %v1055 = vsel %vm220, %v1052, %v1054
      %1057 = vst [vmem:[#allocation2 + $0x60] sm:$0xf] %v1055
      %s1058 = scalar_lea.vmem [#allocation1], 1
      %1059 = vst [vmem:[%s1058] ss:$2 sm:$0xff] %v1007
      %v1060 = vld.sshfl [vmem:[#allocation1] sm:$0xff pattern:$0x75316420]
      %v1061 = vld.sshfl [vmem:[#allocation1 + $0x8] sm:$0xff pattern:$0x75316420]
      %1062 = vrot.lane.b32.xlu0 %v1060, 126
      %v1063 = vpop.permute.xlu0 %1062
      %1064 = vrot.lane.b32.xlu0 %v1061, 126
      %v1065 = vpop.permute.xlu0 %1064
      %v1066 = vsel %vm220, %v1063, %v1065
      %1068 = vst [vmem:[#allocation2 + $0x158] sm:$0xf0] %v1066
      %1069 = vst [vmem:[#allocation1] ss:$2 sm:$0xff] %v1007
      %v1070 = vld.sshfl [vmem:[#allocation1] sm:$0xff pattern:$0x75316420]
      %v1071 = vld.sshfl [vmem:[#allocation1 + $0x8] sm:$0xff pattern:$0x75316420]
      %1072 = vrot.lane.b32.xlu0 %v1070, 126
      %v1073 = vpop.permute.xlu0 %1072
      %1074 = vrot.lane.b32.xlu0 %v1071, 126
      %v1075 = vpop.permute.xlu0 %1074
      %v1076 = vsel %vm220, %v1073, %v1075
      %1078 = vst [vmem:[#allocation2 + $0x290] sm:$0xf] %v1076
      %s1079 = scalar_lea.vmem [#allocation1], 1
      %1080 = vst [vmem:[%s1079] ss:$2 sm:$0xff] %v1007
      %v1081 = vld.sshfl [vmem:[#allocation1] sm:$0xff pattern:$0x75316420]
      %v1082 = vld.sshfl [vmem:[#allocation1 + $0x8] sm:$0xff pattern:$0x75316420]
      %1083 = vrot.lane.b32.xlu0 %v1081, 118
      %v1084 = vpop.permute.xlu0 %1083
      %1085 = vrot.lane.b32.xlu0 %v1082, 118
      %v1086 = vpop.permute.xlu0 %1085
      %v1087 = vsel %vm232, %v1084, %v1086
      %1089 = vst [vmem:[#allocation2 + $0x60] sm:$0xf0] %v1087
      %1090 = vst [vmem:[#allocation1] ss:$2 sm:$0xff] %v1007
      %v1091 = vld.sshfl [vmem:[#allocation1] sm:$0xff pattern:$0x75316420]
      %v1092 = vld.sshfl [vmem:[#allocation1 + $0x8] sm:$0xff pattern:$0x75316420]
      %1093 = vrot.lane.b32.xlu0 %v1091, 118
      %v1094 = vpop.permute.xlu0 %1093
      %1095 = vrot.lane.b32.xlu0 %v1092, 118
      %v1096 = vpop.permute.xlu0 %1095
      %v1097 = vsel %vm232, %v1094, %v1096
      %1099 = vst [vmem:[#allocation2 + $0x198] sm:$0xf] %v1097
      %s1100 = scalar_lea.vmem [#allocation1], 1
      %1101 = vst [vmem:[%s1100] ss:$2 sm:$0xff] %v1007
      %v1102 = vld.sshfl [vmem:[#allocation1] sm:$0xff pattern:$0x75316420]
      %v1103 = vld.sshfl [vmem:[#allocation1 + $0x8] sm:$0xff pattern:$0x75316420]
      %1104 = vrot.lane.b32.xlu0 %v1102, 118
      %v1105 = vpop.permute.xlu0 %1104
      %1106 = vrot.lane.b32.xlu0 %v1103, 118
      %v1107 = vpop.permute.xlu0 %1106
      %v1108 = vsel %vm232, %v1105, %v1107
      %1110 = vst [vmem:[#allocation2 + $0x290] sm:$0xf0] %v1108
      %1111 = vst [vmem:[#allocation1] ss:$2 sm:$0xff] %v1007
      %v1112 = vld.sshfl [vmem:[#allocation1] sm:$0xff pattern:$0x75316420]
      %v1113 = vld.sshfl [vmem:[#allocation1 + $0x8] sm:$0xff pattern:$0x75316420]
      %1114 = vrot.lane.b32.xlu0 %v1112, 117
      %v1115 = vpop.permute.xlu0 %1114
      %1116 = vrot.lane.b32.xlu0 %v1113, 117
      %v1117 = vpop.permute.xlu0 %1116
      %v1118 = vsel %vm243, %v1115, %v1117
      %1120 = vst [vmem:[#allocation2 + $0xa0] sm:$0xf] %v1118
      %s1121 = scalar_lea.vmem [#allocation1], 1
      %1122 = vst [vmem:[%s1121] ss:$2 sm:$0xff] %v1007
      %v1123 = vld.sshfl [vmem:[#allocation1] sm:$0xff pattern:$0x75316420]
      %v1124 = vld.sshfl [vmem:[#allocation1 + $0x8] sm:$0xff pattern:$0x75316420]
      %1125 = vrot.lane.b32.xlu0 %v1123, 117
      %v1126 = vpop.permute.xlu0 %1125
      %1127 = vrot.lane.b32.xlu0 %v1124, 117
      %v1128 = vpop.permute.xlu0 %1127
      %v1129 = vsel %vm243, %v1126, %v1128
      %1131 = vst [vmem:[#allocation2 + $0x198] sm:$0xf0] %v1129
      %1132 = vst [vmem:[#allocation1] ss:$2 sm:$0xff] %v1007
      %v1133 = vld.sshfl [vmem:[#allocation1] sm:$0xff pattern:$0x75316420]
      %v1134 = vld.sshfl [vmem:[#allocation1 + $0x8] sm:$0xff pattern:$0x75316420]
      %1135 = vrot.lane.b32.xlu0 %v1133, 117
      %v1136 = vpop.permute.xlu0 %1135
      %1137 = vrot.lane.b32.xlu0 %v1134, 117
      %v1138 = vpop.permute.xlu0 %1137
      %v1139 = vsel %vm243, %v1136, %v1138
      %1141 = vst [vmem:[#allocation2 + $0x2d0] sm:$0xf] %v1139
      %s1142 = scalar_lea.vmem [#allocation1], 1
      %1143 = vst [vmem:[%s1142] ss:$2 sm:$0xff] %v1007
      %v1144 = vld.sshfl [vmem:[#allocation1] sm:$0xff pattern:$0x75316420]
      %v1145 = vld.sshfl [vmem:[#allocation1 + $0x8] sm:$0xff pattern:$0x75316420]
      %1146 = vrot.lane.b32.xlu0 %v1144, 116
      %v1147 = vpop.permute.xlu0 %1146
      %1148 = vrot.lane.b32.xlu0 %v1145, 116
      %v1149 = vpop.permute.xlu0 %1148
      %v1150 = vsel %vm255, %v1147, %v1149
      %1152 = vst [vmem:[#allocation2 + $0xa0] sm:$0xf0] %v1150
      %1153 = vst [vmem:[#allocation1] ss:$2 sm:$0xff] %v1007
      %v1154 = vld.sshfl [vmem:[#allocation1] sm:$0xff pattern:$0x75316420]
      %v1155 = vld.sshfl [vmem:[#allocation1 + $0x8] sm:$0xff pattern:$0x75316420]
      %1156 = vrot.lane.b32.xlu0 %v1154, 116
      %v1157 = vpop.permute.xlu0 %1156
      %1158 = vrot.lane.b32.xlu0 %v1155, 116
      %v1159 = vpop.permute.xlu0 %1158
      %v1160 = vsel %vm255, %v1157, %v1159
      %1162 = vst [vmem:[#allocation2 + $0x1d8] sm:$0xf] %v1160
      %s1163 = scalar_lea.vmem [#allocation1], 1
      %1164 = vst [vmem:[%s1163] ss:$2 sm:$0xff] %v1007
      %v1165 = vld.sshfl [vmem:[#allocation1] sm:$0xff pattern:$0x75316420]
      %v1166 = vld.sshfl [vmem:[#allocation1 + $0x8] sm:$0xff pattern:$0x75316420]
      %1167 = vrot.lane.b32.xlu0 %v1165, 116
      %v1168 = vpop.permute.xlu0 %1167
      %1169 = vrot.lane.b32.xlu0 %v1166, 116
      %v1170 = vpop.permute.xlu0 %1169
      %v1171 = vsel %vm255, %v1168, %v1170
      %1173 = vst [vmem:[#allocation2 + $0x2d0] sm:$0xf0] %v1171
      %1174 = vst [vmem:[#allocation1] ss:$2 sm:$0xff] %v1007
      %v1175 = vld.sshfl [vmem:[#allocation1] sm:$0xff pattern:$0x75316420]
      %v1176 = vld.sshfl [vmem:[#allocation1 + $0x8] sm:$0xff pattern:$0x75316420]
      %1177 = vrot.lane.b32.xlu0 %v1175, 108
      %v1178 = vpop.permute.xlu0 %1177
      %1179 = vrot.lane.b32.xlu0 %v1176, 108
      %v1180 = vpop.permute.xlu0 %1179
      %v1181 = vsel %vm266, %v1178, %v1180
      %1183 = vst [vmem:[#allocation2 + $0xe0] sm:$0xf] %v1181
      %s1184 = scalar_lea.vmem [#allocation1], 1
      %1185 = vst [vmem:[%s1184] ss:$2 sm:$0xff] %v1007
      %v1186 = vld.sshfl [vmem:[#allocation1] sm:$0xff pattern:$0x75316420]
      %v1187 = vld.sshfl [vmem:[#allocation1 + $0x8] sm:$0xff pattern:$0x75316420]
      %1188 = vrot.lane.b32.xlu0 %v1186, 108
      %v1189 = vpop.permute.xlu0 %1188
      %1190 = vrot.lane.b32.xlu0 %v1187, 108
      %v1191 = vpop.permute.xlu0 %1190
      %v1192 = vsel %vm266, %v1189, %v1191
      %1194 = vst [vmem:[#allocation2 + $0x1d8] sm:$0xf0] %v1192
      %1195 = vst [vmem:[#allocation1] ss:$2 sm:$0xff] %v1007
      %v1196 = vld.sshfl [vmem:[#allocation1] sm:$0xff pattern:$0x75316420]
      %v1197 = vld.sshfl [vmem:[#allocation1 + $0x8] sm:$0xff pattern:$0x75316420]
      %1198 = vrot.lane.b32.xlu0 %v1196, 108
      %v1199 = vpop.permute.xlu0 %1198
      %1200 = vrot.lane.b32.xlu0 %v1197, 108
      %v1201 = vpop.permute.xlu0 %1200
      %v1202 = vsel %vm266, %v1199, %v1201
      %1204 = vst [vmem:[#allocation2 + $0x310] sm:$0xf] %v1202
      %s1205 = scalar_lea.vmem [#allocation1], 1
      %1206 = vst [vmem:[%s1205] ss:$2 sm:$0xff] %v1007
      %v1207 = vld.sshfl [vmem:[#allocation1] sm:$0xff pattern:$0x75316420]
      %v1208 = vld.sshfl [vmem:[#allocation1 + $0x8] sm:$0xff pattern:$0x75316420]
      %1209 = vrot.lane.b32.xlu0 %v1207, 107
      %v1210 = vpop.permute.xlu0 %1209
      %1211 = vrot.lane.b32.xlu0 %v1208, 107
      %v1212 = vpop.permute.xlu0 %1211
      %v1213 = vsel %vm278, %v1210, %v1212
      %1215 = vst [vmem:[#allocation2 + $0xe0] sm:$0xf0] %v1213
      %1216 = vst [vmem:[#allocation1] ss:$2 sm:$0xff] %v1007
      %v1217 = vld.sshfl [vmem:[#allocation1] sm:$0xff pattern:$0x75316420]
      %v1218 = vld.sshfl [vmem:[#allocation1 + $0x8] sm:$0xff pattern:$0x75316420]
      %1219 = vrot.lane.b32.xlu0 %v1217, 107
      %v1220 = vpop.permute.xlu0 %1219
      %1221 = vrot.lane.b32.xlu0 %v1218, 107
      %v1222 = vpop.permute.xlu0 %1221
      %v1223 = vsel %vm278, %v1220, %v1222
      %1225 = vst [vmem:[#allocation2 + $0x218] sm:$0xf] %v1223
      %s1226 = scalar_lea.vmem [#allocation1], 1
      %1227 = vst [vmem:[%s1226] ss:$2 sm:$0xff] %v1007
      %v1228 = vld.sshfl [vmem:[#allocation1] sm:$0xff pattern:$0x75316420]
      %v1229 = vld.sshfl [vmem:[#allocation1 + $0x8] sm:$0xff pattern:$0x75316420]
      %1230 = vrot.lane.b32.xlu0 %v1228, 107
      %v1231 = vpop.permute.xlu0 %1230
      %1232 = vrot.lane.b32.xlu0 %v1229, 107
      %v1233 = vpop.permute.xlu0 %1232
      %v1234 = vsel %vm278, %v1231, %v1233
      %1236 = vst [vmem:[#allocation2 + $0x310] sm:$0xf0] %v1234
      %1237 = vst [vmem:[#allocation1] ss:$2 sm:$0xff] %v1007
      %v1238 = vld.sshfl [vmem:[#allocation1] sm:$0xff pattern:$0x75316420]
      %v1239 = vld.sshfl [vmem:[#allocation1 + $0x8] sm:$0xff pattern:$0x75316420]
      %1240 = vrot.lane.b32.xlu0 %v1238, 106
      %v1241 = vpop.permute.xlu0 %1240
      %1242 = vrot.lane.b32.xlu0 %v1239, 106
      %v1243 = vpop.permute.xlu0 %1242
      %v1244 = vsel %vm289, %v1241, %v1243
      %1246 = vst [vmem:[#allocation2 + $0x120] sm:$0xf] %v1244
      %s1247 = scalar_lea.vmem [#allocation1], 1
      %1248 = vst [vmem:[%s1247] ss:$2 sm:$0xff] %v1007
      %v1249 = vld.sshfl [vmem:[#allocation1] sm:$0xff pattern:$0x75316420]
      %v1250 = vld.sshfl [vmem:[#allocation1 + $0x8] sm:$0xff pattern:$0x75316420]
      %1251 = vrot.lane.b32.xlu0 %v1249, 106
      %v1252 = vpop.permute.xlu0 %1251
      %1253 = vrot.lane.b32.xlu0 %v1250, 106
      %v1254 = vpop.permute.xlu0 %1253
      %v1255 = vsel %vm289, %v1252, %v1254
      %1257 = vst [vmem:[#allocation2 + $0x218] sm:$0xf0] %v1255
      %1258 = vst [vmem:[#allocation1] ss:$2 sm:$0xff] %v1007
      %v1259 = vld.sshfl [vmem:[#allocation1] sm:$0xff pattern:$0x75316420]
      %v1260 = vld.sshfl [vmem:[#allocation1 + $0x8] sm:$0xff pattern:$0x75316420]
      %1261 = vrot.lane.b32.xlu0 %v1259, 106
      %v1262 = vpop.permute.xlu0 %1261
      %1263 = vrot.lane.b32.xlu0 %v1260, 106
      %v1264 = vpop.permute.xlu0 %1263
      %v1265 = vsel %vm289, %v1262, %v1264
      %1267 = vst [vmem:[#allocation2 + $0x350] sm:$0xf] %v1265
      %s1268 = sadd.s32 %s194, 5
      %s1269 = smul.u32 %s1268, 2
      %s1270 = smul.addr %s1269, 4
      %s1271 = scalar_lea.vmem %s183, %s1270
      %v1272 = vld [vmem:[%s1271] sm:$0xff]
      %1273 = vst [vmem:[#allocation2 + $0x28] sm:$0xf] %v1272
      %s1275 = scalar_lea.vmem [#allocation1], 1
      %1276 = vst [vmem:[%s1275] ss:$2 sm:$0xff] %v1272
      %v1277 = vld.sshfl [vmem:[#allocation1] sm:$0xff pattern:$0x75316420]
      %1279 = vst [vmem:[#allocation2 + $0x120] sm:$0xf0] %v1277
      %1280 = vst [vmem:[#allocation2 + $0x258] sm:$0xf] %v1272
      %s1281 = scalar_lea.vmem [#allocation1], 1
      %1282 = vst [vmem:[%s1281] ss:$2 sm:$0xff] %v1272
      %v1283 = vld.sshfl [vmem:[#allocation1] sm:$0xff pattern:$0x75316420]
      %v1284 = vld.sshfl [vmem:[#allocation1 + $0x8] sm:$0xff pattern:$0x75316420]
      %1285 = vrot.lane.b32.xlu0 %v1283, 127
      %v1286 = vpop.permute.xlu0 %1285
      %1287 = vrot.lane.b32.xlu0 %v1284, 127
      %v1288 = vpop.permute.xlu0 %1287
      %v1289 = vsel %vm209, %v1286, %v1288
      %1291 = vst [vmem:[#allocation2 + $0x28] sm:$0xf0] %v1289
      %1292 = vst [vmem:[#allocation1] ss:$2 sm:$0xff] %v1272
      %v1293 = vld.sshfl [vmem:[#allocation1] sm:$0xff pattern:$0x75316420]
      %v1294 = vld.sshfl [vmem:[#allocation1 + $0x8] sm:$0xff pattern:$0x75316420]
      %1295 = vrot.lane.b32.xlu0 %v1293, 127
      %v1296 = vpop.permute.xlu0 %1295
      %1297 = vrot.lane.b32.xlu0 %v1294, 127
      %v1298 = vpop.permute.xlu0 %1297
      %v1299 = vsel %vm209, %v1296, %v1298
      %1301 = vst [vmem:[#allocation2 + $0x160] sm:$0xf] %v1299
      %s1302 = scalar_lea.vmem [#allocation1], 1
      %1303 = vst [vmem:[%s1302] ss:$2 sm:$0xff] %v1272
      %v1304 = vld.sshfl [vmem:[#allocation1] sm:$0xff pattern:$0x75316420]
      %v1305 = vld.sshfl [vmem:[#allocation1 + $0x8] sm:$0xff pattern:$0x75316420]
      %1306 = vrot.lane.b32.xlu0 %v1304, 127
      %v1307 = vpop.permute.xlu0 %1306
      %1308 = vrot.lane.b32.xlu0 %v1305, 127
      %v1309 = vpop.permute.xlu0 %1308
      %v1310 = vsel %vm209, %v1307, %v1309
      %1312 = vst [vmem:[#allocation2 + $0x258] sm:$0xf0] %v1310
      %1313 = vst [vmem:[#allocation1] ss:$2 sm:$0xff] %v1272
      %v1314 = vld.sshfl [vmem:[#allocation1] sm:$0xff pattern:$0x75316420]
      %v1315 = vld.sshfl [vmem:[#allocation1 + $0x8] sm:$0xff pattern:$0x75316420]
      %1316 = vrot.lane.b32.xlu0 %v1314, 126
      %v1317 = vpop.permute.xlu0 %1316
      %1318 = vrot.lane.b32.xlu0 %v1315, 126
      %v1319 = vpop.permute.xlu0 %1318
      %v1320 = vsel %vm220, %v1317, %v1319
      %1322 = vst [vmem:[#allocation2 + $0x68] sm:$0xf] %v1320
      %s1323 = scalar_lea.vmem [#allocation1], 1
      %1324 = vst [vmem:[%s1323] ss:$2 sm:$0xff] %v1272
      %v1325 = vld.sshfl [vmem:[#allocation1] sm:$0xff pattern:$0x75316420]
      %v1326 = vld.sshfl [vmem:[#allocation1 + $0x8] sm:$0xff pattern:$0x75316420]
      %1327 = vrot.lane.b32.xlu0 %v1325, 126
      %v1328 = vpop.permute.xlu0 %1327
      %1329 = vrot.lane.b32.xlu0 %v1326, 126
      %v1330 = vpop.permute.xlu0 %1329
      %v1331 = vsel %vm220, %v1328, %v1330
      %1333 = vst [vmem:[#allocation2 + $0x160] sm:$0xf0] %v1331
      %1334 = vst [vmem:[#allocation1] ss:$2 sm:$0xff] %v1272
      %v1335 = vld.sshfl [vmem:[#allocation1] sm:$0xff pattern:$0x75316420]
      %v1336 = vld.sshfl [vmem:[#allocation1 + $0x8] sm:$0xff pattern:$0x75316420]
      %1337 = vrot.lane.b32.xlu0 %v1335, 126
      %v1338 = vpop.permute.xlu0 %1337
      %1339 = vrot.lane.b32.xlu0 %v1336, 126
      %v1340 = vpop.permute.xlu0 %1339
      %v1341 = vsel %vm220, %v1338, %v1340
      %1343 = vst [vmem:[#allocation2 + $0x298] sm:$0xf] %v1341
      %s1344 = scalar_lea.vmem [#allocation1], 1
      %1345 = vst [vmem:[%s1344] ss:$2 sm:$0xff] %v1272
      %v1346 = vld.sshfl [vmem:[#allocation1] sm:$0xff pattern:$0x75316420]
      %v1347 = vld.sshfl [vmem:[#allocation1 + $0x8] sm:$0xff pattern:$0x75316420]
      %1348 = vrot.lane.b32.xlu0 %v1346, 118
      %v1349 = vpop.permute.xlu0 %1348
      %1350 = vrot.lane.b32.xlu0 %v1347, 118
      %v1351 = vpop.permute.xlu0 %1350
      %v1352 = vsel %vm232, %v1349, %v1351
      %1354 = vst [vmem:[#allocation2 + $0x68] sm:$0xf0] %v1352
      %1355 = vst [vmem:[#allocation1] ss:$2 sm:$0xff] %v1272
      %v1356 = vld.sshfl [vmem:[#allocation1] sm:$0xff pattern:$0x75316420]
      %v1357 = vld.sshfl [vmem:[#allocation1 + $0x8] sm:$0xff pattern:$0x75316420]
      %1358 = vrot.lane.b32.xlu0 %v1356, 118
      %v1359 = vpop.permute.xlu0 %1358
      %1360 = vrot.lane.b32.xlu0 %v1357, 118
      %v1361 = vpop.permute.xlu0 %1360
      %v1362 = vsel %vm232, %v1359, %v1361
      %1364 = vst [vmem:[#allocation2 + $0x1a0] sm:$0xf] %v1362
      %s1365 = scalar_lea.vmem [#allocation1], 1
      %1366 = vst [vmem:[%s1365] ss:$2 sm:$0xff] %v1272
      %v1367 = vld.sshfl [vmem:[#allocation1] sm:$0xff pattern:$0x75316420]
      %v1368 = vld.sshfl [vmem:[#allocation1 + $0x8] sm:$0xff pattern:$0x75316420]
      %1369 = vrot.lane.b32.xlu0 %v1367, 118
      %v1370 = vpop.permute.xlu0 %1369
      %1371 = vrot.lane.b32.xlu0 %v1368, 118
      %v1372 = vpop.permute.xlu0 %1371
      %v1373 = vsel %vm232, %v1370, %v1372
      %1375 = vst [vmem:[#allocation2 + $0x298] sm:$0xf0] %v1373
      %1376 = vst [vmem:[#allocation1] ss:$2 sm:$0xff] %v1272
      %v1377 = vld.sshfl [vmem:[#allocation1] sm:$0xff pattern:$0x75316420]
      %v1378 = vld.sshfl [vmem:[#allocation1 + $0x8] sm:$0xff pattern:$0x75316420]
      %1379 = vrot.lane.b32.xlu0 %v1377, 117
      %v1380 = vpop.permute.xlu0 %1379
      %1381 = vrot.lane.b32.xlu0 %v1378, 117
      %v1382 = vpop.permute.xlu0 %1381
      %v1383 = vsel %vm243, %v1380, %v1382
      %1385 = vst [vmem:[#allocation2 + $0xa8] sm:$0xf] %v1383
      %s1386 = scalar_lea.vmem [#allocation1], 1
      %1387 = vst [vmem:[%s1386] ss:$2 sm:$0xff] %v1272
      %v1388 = vld.sshfl [vmem:[#allocation1] sm:$0xff pattern:$0x75316420]
      %v1389 = vld.sshfl [vmem:[#allocation1 + $0x8] sm:$0xff pattern:$0x75316420]
      %1390 = vrot.lane.b32.xlu0 %v1388, 117
      %v1391 = vpop.permute.xlu0 %1390
      %1392 = vrot.lane.b32.xlu0 %v1389, 117
      %v1393 = vpop.permute.xlu0 %1392
      %v1394 = vsel %vm243, %v1391, %v1393
      %1396 = vst [vmem:[#allocation2 + $0x1a0] sm:$0xf0] %v1394
      %1397 = vst [vmem:[#allocation1] ss:$2 sm:$0xff] %v1272
      %v1398 = vld.sshfl [vmem:[#allocation1] sm:$0xff pattern:$0x75316420]
      %v1399 = vld.sshfl [vmem:[#allocation1 + $0x8] sm:$0xff pattern:$0x75316420]
      %1400 = vrot.lane.b32.xlu0 %v1398, 117
      %v1401 = vpop.permute.xlu0 %1400
      %1402 = vrot.lane.b32.xlu0 %v1399, 117
      %v1403 = vpop.permute.xlu0 %1402
      %v1404 = vsel %vm243, %v1401, %v1403
      %1406 = vst [vmem:[#allocation2 + $0x2d8] sm:$0xf] %v1404
      %s1407 = scalar_lea.vmem [#allocation1], 1
      %1408 = vst [vmem:[%s1407] ss:$2 sm:$0xff] %v1272
      %v1409 = vld.sshfl [vmem:[#allocation1] sm:$0xff pattern:$0x75316420]
      %v1410 = vld.sshfl [vmem:[#allocation1 + $0x8] sm:$0xff pattern:$0x75316420]
      %1411 = vrot.lane.b32.xlu0 %v1409, 116
      %v1412 = vpop.permute.xlu0 %1411
      %1413 = vrot.lane.b32.xlu0 %v1410, 116
      %v1414 = vpop.permute.xlu0 %1413
      %v1415 = vsel %vm255, %v1412, %v1414
      %1417 = vst [vmem:[#allocation2 + $0xa8] sm:$0xf0] %v1415
      %1418 = vst [vmem:[#allocation1] ss:$2 sm:$0xff] %v1272
      %v1419 = vld.sshfl [vmem:[#allocation1] sm:$0xff pattern:$0x75316420]
      %v1420 = vld.sshfl [vmem:[#allocation1 + $0x8] sm:$0xff pattern:$0x75316420]
      %1421 = vrot.lane.b32.xlu0 %v1419, 116
      %v1422 = vpop.permute.xlu0 %1421
      %1423 = vrot.lane.b32.xlu0 %v1420, 116
      %v1424 = vpop.permute.xlu0 %1423
      %v1425 = vsel %vm255, %v1422, %v1424
      %1427 = vst [vmem:[#allocation2 + $0x1e0] sm:$0xf] %v1425
      %s1428 = scalar_lea.vmem [#allocation1], 1
      %1429 = vst [vmem:[%s1428] ss:$2 sm:$0xff] %v1272
      %v1430 = vld.sshfl [vmem:[#allocation1] sm:$0xff pattern:$0x75316420]
      %v1431 = vld.sshfl [vmem:[#allocation1 + $0x8] sm:$0xff pattern:$0x75316420]
      %1432 = vrot.lane.b32.xlu0 %v1430, 116
      %v1433 = vpop.permute.xlu0 %1432
      %1434 = vrot.lane.b32.xlu0 %v1431, 116
      %v1435 = vpop.permute.xlu0 %1434
      %v1436 = vsel %vm255, %v1433, %v1435
      %1438 = vst [vmem:[#allocation2 + $0x2d8] sm:$0xf0] %v1436
      %1439 = vst [vmem:[#allocation1] ss:$2 sm:$0xff] %v1272
      %v1440 = vld.sshfl [vmem:[#allocation1] sm:$0xff pattern:$0x75316420]
      %v1441 = vld.sshfl [vmem:[#allocation1 + $0x8] sm:$0xff pattern:$0x75316420]
      %1442 = vrot.lane.b32.xlu0 %v1440, 108
      %v1443 = vpop.permute.xlu0 %1442
      %1444 = vrot.lane.b32.xlu0 %v1441, 108
      %v1445 = vpop.permute.xlu0 %1444
      %v1446 = vsel %vm266, %v1443, %v1445
      %1448 = vst [vmem:[#allocation2 + $0xe8] sm:$0xf] %v1446
      %s1449 = scalar_lea.vmem [#allocation1], 1
      %1450 = vst [vmem:[%s1449] ss:$2 sm:$0xff] %v1272
      %v1451 = vld.sshfl [vmem:[#allocation1] sm:$0xff pattern:$0x75316420]
      %v1452 = vld.sshfl [vmem:[#allocation1 + $0x8] sm:$0xff pattern:$0x75316420]
      %1453 = vrot.lane.b32.xlu0 %v1451, 108
      %v1454 = vpop.permute.xlu0 %1453
      %1455 = vrot.lane.b32.xlu0 %v1452, 108
      %v1456 = vpop.permute.xlu0 %1455
      %v1457 = vsel %vm266, %v1454, %v1456
      %1459 = vst [vmem:[#allocation2 + $0x1e0] sm:$0xf0] %v1457
      %1460 = vst [vmem:[#allocation1] ss:$2 sm:$0xff] %v1272
      %v1461 = vld.sshfl [vmem:[#allocation1] sm:$0xff pattern:$0x75316420]
      %v1462 = vld.sshfl [vmem:[#allocation1 + $0x8] sm:$0xff pattern:$0x75316420]
      %1463 = vrot.lane.b32.xlu0 %v1461, 108
      %v1464 = vpop.permute.xlu0 %1463
      %1465 = vrot.lane.b32.xlu0 %v1462, 108
      %v1466 = vpop.permute.xlu0 %1465
      %v1467 = vsel %vm266, %v1464, %v1466
      %1469 = vst [vmem:[#allocation2 + $0x318] sm:$0xf] %v1467
      %s1470 = scalar_lea.vmem [#allocation1], 1
      %1471 = vst [vmem:[%s1470] ss:$2 sm:$0xff] %v1272
      %v1472 = vld.sshfl [vmem:[#allocation1] sm:$0xff pattern:$0x75316420]
      %v1473 = vld.sshfl [vmem:[#allocation1 + $0x8] sm:$0xff pattern:$0x75316420]
      %1474 = vrot.lane.b32.xlu0 %v1472, 107
      %v1475 = vpop.permute.xlu0 %1474
      %1476 = vrot.lane.b32.xlu0 %v1473, 107
      %v1477 = vpop.permute.xlu0 %1476
      %v1478 = vsel %vm278, %v1475, %v1477
      %1480 = vst [vmem:[#allocation2 + $0xe8] sm:$0xf0] %v1478
      %1481 = vst [vmem:[#allocation1] ss:$2 sm:$0xff] %v1272
      %v1482 = vld.sshfl [vmem:[#allocation1] sm:$0xff pattern:$0x75316420]
      %v1483 = vld.sshfl [vmem:[#allocation1 + $0x8] sm:$0xff pattern:$0x75316420]
      %1484 = vrot.lane.b32.xlu0 %v1482, 107
      %v1485 = vpop.permute.xlu0 %1484
      %1486 = vrot.lane.b32.xlu0 %v1483, 107
      %v1487 = vpop.permute.xlu0 %1486
      %v1488 = vsel %vm278, %v1485, %v1487
      %1490 = vst [vmem:[#allocation2 + $0x220] sm:$0xf] %v1488
      %s1491 = scalar_lea.vmem [#allocation1], 1
      %1492 = vst [vmem:[%s1491] ss:$2 sm:$0xff] %v1272
      %v1493 = vld.sshfl [vmem:[#allocation1] sm:$0xff pattern:$0x75316420]
      %v1494 = vld.sshfl [vmem:[#allocation1 + $0x8] sm:$0xff pattern:$0x75316420]
      %1495 = vrot.lane.b32.xlu0 %v1493, 107
      %v1496 = vpop.permute.xlu0 %1495
      %1497 = vrot.lane.b32.xlu0 %v1494, 107
      %v1498 = vpop.permute.xlu0 %1497
      %v1499 = vsel %vm278, %v1496, %v1498
      %1501 = vst [vmem:[#allocation2 + $0x318] sm:$0xf0] %v1499
      %1502 = vst [vmem:[#allocation1] ss:$2 sm:$0xff] %v1272
      %v1503 = vld.sshfl [vmem:[#allocation1] sm:$0xff pattern:$0x75316420]
      %v1504 = vld.sshfl [vmem:[#allocation1 + $0x8] sm:$0xff pattern:$0x75316420]
      %1505 = vrot.lane.b32.xlu0 %v1503, 106
      %v1506 = vpop.permute.xlu0 %1505
      %1507 = vrot.lane.b32.xlu0 %v1504, 106
      %v1508 = vpop.permute.xlu0 %1507
      %v1509 = vsel %vm289, %v1506, %v1508
      %1511 = vst [vmem:[#allocation2 + $0x128] sm:$0xf] %v1509
      %s1512 = scalar_lea.vmem [#allocation1], 1
      %1513 = vst [vmem:[%s1512] ss:$2 sm:$0xff] %v1272
      %v1514 = vld.sshfl [vmem:[#allocation1] sm:$0xff pattern:$0x75316420]
      %v1515 = vld.sshfl [vmem:[#allocation1 + $0x8] sm:$0xff pattern:$0x75316420]
      %1516 = vrot.lane.b32.xlu0 %v1514, 106
      %v1517 = vpop.permute.xlu0 %1516
      %1518 = vrot.lane.b32.xlu0 %v1515, 106
      %v1519 = vpop.permute.xlu0 %1518
      %v1520 = vsel %vm289, %v1517, %v1519
      %1522 = vst [vmem:[#allocation2 + $0x220] sm:$0xf0] %v1520
      %1523 = vst [vmem:[#allocation1] ss:$2 sm:$0xff] %v1272
      %v1524 = vld.sshfl [vmem:[#allocation1] sm:$0xff pattern:$0x75316420]
      %v1525 = vld.sshfl [vmem:[#allocation1 + $0x8] sm:$0xff pattern:$0x75316420]
      %1526 = vrot.lane.b32.xlu0 %v1524, 106
      %v1527 = vpop.permute.xlu0 %1526
      %1528 = vrot.lane.b32.xlu0 %v1525, 106
      %v1529 = vpop.permute.xlu0 %1528
      %v1530 = vsel %vm289, %v1527, %v1529
      %1532 = vst [vmem:[#allocation2 + $0x358] sm:$0xf] %v1530
      %s1533 = sadd.s32 %s194, 6
      %s1534 = smul.u32 %s1533, 2
      %s1535 = smul.addr %s1534, 4
      %s1536 = scalar_lea.vmem %s183, %s1535
      %v1537 = vld [vmem:[%s1536] sm:$0xff]
      %1538 = vst [vmem:[#allocation2 + $0x30] sm:$0xf] %v1537
      %s1540 = scalar_lea.vmem [#allocation1], 1
      %1541 = vst [vmem:[%s1540] ss:$2 sm:$0xff] %v1537
      %v1542 = vld.sshfl [vmem:[#allocation1] sm:$0xff pattern:$0x75316420]
      %1544 = vst [vmem:[#allocation2 + $0x128] sm:$0xf0] %v1542
      %1545 = vst [vmem:[#allocation2 + $0x260] sm:$0xf] %v1537
      %s1546 = scalar_lea.vmem [#allocation1], 1
      %1547 = vst [vmem:[%s1546] ss:$2 sm:$0xff] %v1537
      %v1548 = vld.sshfl [vmem:[#allocation1] sm:$0xff pattern:$0x75316420]
      %v1549 = vld.sshfl [vmem:[#allocation1 + $0x8] sm:$0xff pattern:$0x75316420]
      %1550 = vrot.lane.b32.xlu0 %v1548, 127
      %v1551 = vpop.permute.xlu0 %1550
      %1552 = vrot.lane.b32.xlu0 %v1549, 127
      %v1553 = vpop.permute.xlu0 %1552
      %v1554 = vsel %vm209, %v1551, %v1553
      %1556 = vst [vmem:[#allocation2 + $0x30] sm:$0xf0] %v1554
      %1557 = vst [vmem:[#allocation1] ss:$2 sm:$0xff] %v1537
      %v1558 = vld.sshfl [vmem:[#allocation1] sm:$0xff pattern:$0x75316420]
      %v1559 = vld.sshfl [vmem:[#allocation1 + $0x8] sm:$0xff pattern:$0x75316420]
      %1560 = vrot.lane.b32.xlu0 %v1558, 127
      %v1561 = vpop.permute.xlu0 %1560
      %1562 = vrot.lane.b32.xlu0 %v1559, 127
      %v1563 = vpop.permute.xlu0 %1562
      %v1564 = vsel %vm209, %v1561, %v1563
      %1566 = vst [vmem:[#allocation2 + $0x168] sm:$0xf] %v1564
      %s1567 = scalar_lea.vmem [#allocation1], 1
      %1568 = vst [vmem:[%s1567] ss:$2 sm:$0xff] %v1537
      %v1569 = vld.sshfl [vmem:[#allocation1] sm:$0xff pattern:$0x75316420]
      %v1570 = vld.sshfl [vmem:[#allocation1 + $0x8] sm:$0xff pattern:$0x75316420]
      %1571 = vrot.lane.b32.xlu0 %v1569, 127
      %v1572 = vpop.permute.xlu0 %1571
      %1573 = vrot.lane.b32.xlu0 %v1570, 127
      %v1574 = vpop.permute.xlu0 %1573
      %v1575 = vsel %vm209, %v1572, %v1574
      %1577 = vst [vmem:[#allocation2 + $0x260] sm:$0xf0] %v1575
      %1578 = vst [vmem:[#allocation1] ss:$2 sm:$0xff] %v1537
      %v1579 = vld.sshfl [vmem:[#allocation1] sm:$0xff pattern:$0x75316420]
      %v1580 = vld.sshfl [vmem:[#allocation1 + $0x8] sm:$0xff pattern:$0x75316420]
      %1581 = vrot.lane.b32.xlu0 %v1579, 126
      %v1582 = vpop.permute.xlu0 %1581
      %1583 = vrot.lane.b32.xlu0 %v1580, 126
      %v1584 = vpop.permute.xlu0 %1583
      %v1585 = vsel %vm220, %v1582, %v1584
      %1587 = vst [vmem:[#allocation2 + $0x70] sm:$0xf] %v1585
      %s1588 = scalar_lea.vmem [#allocation1], 1
      %1589 = vst [vmem:[%s1588] ss:$2 sm:$0xff] %v1537
      %v1590 = vld.sshfl [vmem:[#allocation1] sm:$0xff pattern:$0x75316420]
      %v1591 = vld.sshfl [vmem:[#allocation1 + $0x8] sm:$0xff pattern:$0x75316420]
      %1592 = vrot.lane.b32.xlu0 %v1590, 126
      %v1593 = vpop.permute.xlu0 %1592
      %1594 = vrot.lane.b32.xlu0 %v1591, 126
      %v1595 = vpop.permute.xlu0 %1594
      %v1596 = vsel %vm220, %v1593, %v1595
      %1598 = vst [vmem:[#allocation2 + $0x168] sm:$0xf0] %v1596
      %1599 = vst [vmem:[#allocation1] ss:$2 sm:$0xff] %v1537
      %v1600 = vld.sshfl [vmem:[#allocation1] sm:$0xff pattern:$0x75316420]
      %v1601 = vld.sshfl [vmem:[#allocation1 + $0x8] sm:$0xff pattern:$0x75316420]
      %1602 = vrot.lane.b32.xlu0 %v1600, 126
      %v1603 = vpop.permute.xlu0 %1602
      %1604 = vrot.lane.b32.xlu0 %v1601, 126
      %v1605 = vpop.permute.xlu0 %1604
      %v1606 = vsel %vm220, %v1603, %v1605
      %1608 = vst [vmem:[#allocation2 + $0x2a0] sm:$0xf] %v1606
      %s1609 = scalar_lea.vmem [#allocation1], 1
      %1610 = vst [vmem:[%s1609] ss:$2 sm:$0xff] %v1537
      %v1611 = vld.sshfl [vmem:[#allocation1] sm:$0xff pattern:$0x75316420]
      %v1612 = vld.sshfl [vmem:[#allocation1 + $0x8] sm:$0xff pattern:$0x75316420]
      %1613 = vrot.lane.b32.xlu0 %v1611, 118
      %v1614 = vpop.permute.xlu0 %1613
      %1615 = vrot.lane.b32.xlu0 %v1612, 118
      %v1616 = vpop.permute.xlu0 %1615
      %v1617 = vsel %vm232, %v1614, %v1616
      %1619 = vst [vmem:[#allocation2 + $0x70] sm:$0xf0] %v1617
      %1620 = vst [vmem:[#allocation1] ss:$2 sm:$0xff] %v1537
      %v1621 = vld.sshfl [vmem:[#allocation1] sm:$0xff pattern:$0x75316420]
      %v1622 = vld.sshfl [vmem:[#allocation1 + $0x8] sm:$0xff pattern:$0x75316420]
      %1623 = vrot.lane.b32.xlu0 %v1621, 118
      %v1624 = vpop.permute.xlu0 %1623
      %1625 = vrot.lane.b32.xlu0 %v1622, 118
      %v1626 = vpop.permute.xlu0 %1625
      %v1627 = vsel %vm232, %v1624, %v1626
      %1629 = vst [vmem:[#allocation2 + $0x1a8] sm:$0xf] %v1627
      %s1630 = scalar_lea.vmem [#allocation1], 1
      %1631 = vst [vmem:[%s1630] ss:$2 sm:$0xff] %v1537
      %v1632 = vld.sshfl [vmem:[#allocation1] sm:$0xff pattern:$0x75316420]
      %v1633 = vld.sshfl [vmem:[#allocation1 + $0x8] sm:$0xff pattern:$0x75316420]
      %1634 = vrot.lane.b32.xlu0 %v1632, 118
      %v1635 = vpop.permute.xlu0 %1634
      %1636 = vrot.lane.b32.xlu0 %v1633, 118
      %v1637 = vpop.permute.xlu0 %1636
      %v1638 = vsel %vm232, %v1635, %v1637
      %1640 = vst [vmem:[#allocation2 + $0x2a0] sm:$0xf0] %v1638
      %1641 = vst [vmem:[#allocation1] ss:$2 sm:$0xff] %v1537
      %v1642 = vld.sshfl [vmem:[#allocation1] sm:$0xff pattern:$0x75316420]
      %v1643 = vld.sshfl [vmem:[#allocation1 + $0x8] sm:$0xff pattern:$0x75316420]
      %1644 = vrot.lane.b32.xlu0 %v1642, 117
      %v1645 = vpop.permute.xlu0 %1644
      %1646 = vrot.lane.b32.xlu0 %v1643, 117
      %v1647 = vpop.permute.xlu0 %1646
      %v1648 = vsel %vm243, %v1645, %v1647
      %1650 = vst [vmem:[#allocation2 + $0xb0] sm:$0xf] %v1648
      %s1651 = scalar_lea.vmem [#allocation1], 1
      %1652 = vst [vmem:[%s1651] ss:$2 sm:$0xff] %v1537
      %v1653 = vld.sshfl [vmem:[#allocation1] sm:$0xff pattern:$0x75316420]
      %v1654 = vld.sshfl [vmem:[#allocation1 + $0x8] sm:$0xff pattern:$0x75316420]
      %1655 = vrot.lane.b32.xlu0 %v1653, 117
      %v1656 = vpop.permute.xlu0 %1655
      %1657 = vrot.lane.b32.xlu0 %v1654, 117
      %v1658 = vpop.permute.xlu0 %1657
      %v1659 = vsel %vm243, %v1656, %v1658
      %1661 = vst [vmem:[#allocation2 + $0x1a8] sm:$0xf0] %v1659
      %1662 = vst [vmem:[#allocation1] ss:$2 sm:$0xff] %v1537
      %v1663 = vld.sshfl [vmem:[#allocation1] sm:$0xff pattern:$0x75316420]
      %v1664 = vld.sshfl [vmem:[#allocation1 + $0x8] sm:$0xff pattern:$0x75316420]
      %1665 = vrot.lane.b32.xlu0 %v1663, 117
      %v1666 = vpop.permute.xlu0 %1665
      %1667 = vrot.lane.b32.xlu0 %v1664, 117
      %v1668 = vpop.permute.xlu0 %1667
      %v1669 = vsel %vm243, %v1666, %v1668
      %1671 = vst [vmem:[#allocation2 + $0x2e0] sm:$0xf] %v1669
      %s1672 = scalar_lea.vmem [#allocation1], 1
      %1673 = vst [vmem:[%s1672] ss:$2 sm:$0xff] %v1537
      %v1674 = vld.sshfl [vmem:[#allocation1] sm:$0xff pattern:$0x75316420]
      %v1675 = vld.sshfl [vmem:[#allocation1 + $0x8] sm:$0xff pattern:$0x75316420]
      %1676 = vrot.lane.b32.xlu0 %v1674, 116
      %v1677 = vpop.permute.xlu0 %1676
      %1678 = vrot.lane.b32.xlu0 %v1675, 116
      %v1679 = vpop.permute.xlu0 %1678
      %v1680 = vsel %vm255, %v1677, %v1679
      %1682 = vst [vmem:[#allocation2 + $0xb0] sm:$0xf0] %v1680
      %1683 = vst [vmem:[#allocation1] ss:$2 sm:$0xff] %v1537
      %v1684 = vld.sshfl [vmem:[#allocation1] sm:$0xff pattern:$0x75316420]
      %v1685 = vld.sshfl [vmem:[#allocation1 + $0x8] sm:$0xff pattern:$0x75316420]
      %1686 = vrot.lane.b32.xlu0 %v1684, 116
      %v1687 = vpop.permute.xlu0 %1686
      %1688 = vrot.lane.b32.xlu0 %v1685, 116
      %v1689 = vpop.permute.xlu0 %1688
      %v1690 = vsel %vm255, %v1687, %v1689
      %1692 = vst [vmem:[#allocation2 + $0x1e8] sm:$0xf] %v1690
      %s1693 = scalar_lea.vmem [#allocation1], 1
      %1694 = vst [vmem:[%s1693] ss:$2 sm:$0xff] %v1537
      %v1695 = vld.sshfl [vmem:[#allocation1] sm:$0xff pattern:$0x75316420]
      %v1696 = vld.sshfl [vmem:[#allocation1 + $0x8] sm:$0xff pattern:$0x75316420]
      %1697 = vrot.lane.b32.xlu0 %v1695, 116
      %v1698 = vpop.permute.xlu0 %1697
      %1699 = vrot.lane.b32.xlu0 %v1696, 116
      %v1700 = vpop.permute.xlu0 %1699
      %v1701 = vsel %vm255, %v1698, %v1700
      %1703 = vst [vmem:[#allocation2 + $0x2e0] sm:$0xf0] %v1701
      %1704 = vst [vmem:[#allocation1] ss:$2 sm:$0xff] %v1537
      %v1705 = vld.sshfl [vmem:[#allocation1] sm:$0xff pattern:$0x75316420]
      %v1706 = vld.sshfl [vmem:[#allocation1 + $0x8] sm:$0xff pattern:$0x75316420]
      %1707 = vrot.lane.b32.xlu0 %v1705, 108
      %v1708 = vpop.permute.xlu0 %1707
      %1709 = vrot.lane.b32.xlu0 %v1706, 108
      %v1710 = vpop.permute.xlu0 %1709
      %v1711 = vsel %vm266, %v1708, %v1710
      %1713 = vst [vmem:[#allocation2 + $0xf0] sm:$0xf] %v1711
      %s1714 = scalar_lea.vmem [#allocation1], 1
      %1715 = vst [vmem:[%s1714] ss:$2 sm:$0xff] %v1537
      %v1716 = vld.sshfl [vmem:[#allocation1] sm:$0xff pattern:$0x75316420]
      %v1717 = vld.sshfl [vmem:[#allocation1 + $0x8] sm:$0xff pattern:$0x75316420]
      %1718 = vrot.lane.b32.xlu0 %v1716, 108
      %v1719 = vpop.permute.xlu0 %1718
      %1720 = vrot.lane.b32.xlu0 %v1717, 108
      %v1721 = vpop.permute.xlu0 %1720
      %v1722 = vsel %vm266, %v1719, %v1721
      %1724 = vst [vmem:[#allocation2 + $0x1e8] sm:$0xf0] %v1722
      %1725 = vst [vmem:[#allocation1] ss:$2 sm:$0xff] %v1537
      %v1726 = vld.sshfl [vmem:[#allocation1] sm:$0xff pattern:$0x75316420]
      %v1727 = vld.sshfl [vmem:[#allocation1 + $0x8] sm:$0xff pattern:$0x75316420]
      %1728 = vrot.lane.b32.xlu0 %v1726, 108
      %v1729 = vpop.permute.xlu0 %1728
      %1730 = vrot.lane.b32.xlu0 %v1727, 108
      %v1731 = vpop.permute.xlu0 %1730
      %v1732 = vsel %vm266, %v1729, %v1731
      %1734 = vst [vmem:[#allocation2 + $0x320] sm:$0xf] %v1732
      %s1735 = scalar_lea.vmem [#allocation1], 1
      %1736 = vst [vmem:[%s1735] ss:$2 sm:$0xff] %v1537
      %v1737 = vld.sshfl [vmem:[#allocation1] sm:$0xff pattern:$0x75316420]
      %v1738 = vld.sshfl [vmem:[#allocation1 + $0x8] sm:$0xff pattern:$0x75316420]
      %1739 = vrot.lane.b32.xlu0 %v1737, 107
      %v1740 = vpop.permute.xlu0 %1739
      %1741 = vrot.lane.b32.xlu0 %v1738, 107
      %v1742 = vpop.permute.xlu0 %1741
      %v1743 = vsel %vm278, %v1740, %v1742
      %1745 = vst [vmem:[#allocation2 + $0xf0] sm:$0xf0] %v1743
      %1746 = vst [vmem:[#allocation1] ss:$2 sm:$0xff] %v1537
      %v1747 = vld.sshfl [vmem:[#allocation1] sm:$0xff pattern:$0x75316420]
      %v1748 = vld.sshfl [vmem:[#allocation1 + $0x8] sm:$0xff pattern:$0x75316420]
      %1749 = vrot.lane.b32.xlu0 %v1747, 107
      %v1750 = vpop.permute.xlu0 %1749
      %1751 = vrot.lane.b32.xlu0 %v1748, 107
      %v1752 = vpop.permute.xlu0 %1751
      %v1753 = vsel %vm278, %v1750, %v1752
      %1755 = vst [vmem:[#allocation2 + $0x228] sm:$0xf] %v1753
      %s1756 = scalar_lea.vmem [#allocation1], 1
      %1757 = vst [vmem:[%s1756] ss:$2 sm:$0xff] %v1537
      %v1758 = vld.sshfl [vmem:[#allocation1] sm:$0xff pattern:$0x75316420]
      %v1759 = vld.sshfl [vmem:[#allocation1 + $0x8] sm:$0xff pattern:$0x75316420]
      %1760 = vrot.lane.b32.xlu0 %v1758, 107
      %v1761 = vpop.permute.xlu0 %1760
      %1762 = vrot.lane.b32.xlu0 %v1759, 107
      %v1763 = vpop.permute.xlu0 %1762
      %v1764 = vsel %vm278, %v1761, %v1763
      %1766 = vst [vmem:[#allocation2 + $0x320] sm:$0xf0] %v1764
      %1767 = vst [vmem:[#allocation1] ss:$2 sm:$0xff] %v1537
      %v1768 = vld.sshfl [vmem:[#allocation1] sm:$0xff pattern:$0x75316420]
      %v1769 = vld.sshfl [vmem:[#allocation1 + $0x8] sm:$0xff pattern:$0x75316420]
      %1770 = vrot.lane.b32.xlu0 %v1768, 106
      %v1771 = vpop.permute.xlu0 %1770
      %1772 = vrot.lane.b32.xlu0 %v1769, 106
      %v1773 = vpop.permute.xlu0 %1772
      %v1774 = vsel %vm289, %v1771, %v1773
      %1776 = vst [vmem:[#allocation2 + $0x130] sm:$0xf] %v1774
      %s1777 = scalar_lea.vmem [#allocation1], 1
      %1778 = vst [vmem:[%s1777] ss:$2 sm:$0xff] %v1537
      %v1779 = vld.sshfl [vmem:[#allocation1] sm:$0xff pattern:$0x75316420]
      %v1780 = vld.sshfl [vmem:[#allocation1 + $0x8] sm:$0xff pattern:$0x75316420]
      %1781 = vrot.lane.b32.xlu0 %v1779, 106
      %v1782 = vpop.permute.xlu0 %1781
      %1783 = vrot.lane.b32.xlu0 %v1780, 106
      %v1784 = vpop.permute.xlu0 %1783
      %v1785 = vsel %vm289, %v1782, %v1784
      %1787 = vst [vmem:[#allocation2 + $0x228] sm:$0xf0] %v1785
      %1788 = vst [vmem:[#allocation1] ss:$2 sm:$0xff] %v1537
      %v1789 = vld.sshfl [vmem:[#allocation1] sm:$0xff pattern:$0x75316420]
      %v1790 = vld.sshfl [vmem:[#allocation1 + $0x8] sm:$0xff pattern:$0x75316420]
      %1791 = vrot.lane.b32.xlu0 %v1789, 106
      %v1792 = vpop.permute.xlu0 %1791
      %1793 = vrot.lane.b32.xlu0 %v1790, 106
      %v1794 = vpop.permute.xlu0 %1793
      %v1795 = vsel %vm289, %v1792, %v1794
      %1797 = vst [vmem:[#allocation2 + $0x360] sm:$0xf] %v1795
      %s1798 = sadd.s32 %s194, 7
      %s1799 = smul.u32 %s1798, 2
      %s1800 = smul.addr %s1799, 4
      %s1801 = scalar_lea.vmem %s183, %s1800
      %v1802 = vld [vmem:[%s1801] sm:$0xff]
      %1803 = vst [vmem:[#allocation2 + $0x38] sm:$0xf] %v1802
      %s1805 = scalar_lea.vmem [#allocation1], 1
      %1806 = vst [vmem:[%s1805] ss:$2 sm:$0xff] %v1802
      %v1807 = vld.sshfl [vmem:[#allocation1] sm:$0xff pattern:$0x75316420]
      %1809 = vst [vmem:[#allocation2 + $0x130] sm:$0xf0] %v1807
      %1810 = vst [vmem:[#allocation2 + $0x268] sm:$0xf] %v1802
      %s1811 = scalar_lea.vmem [#allocation1], 1
      %1812 = vst [vmem:[%s1811] ss:$2 sm:$0xff] %v1802
      %v1813 = vld.sshfl [vmem:[#allocation1] sm:$0xff pattern:$0x75316420]
      %v1814 = vld.sshfl [vmem:[#allocation1 + $0x8] sm:$0xff pattern:$0x75316420]
      %1815 = vrot.lane.b32.xlu0 %v1813, 127
      %v1816 = vpop.permute.xlu0 %1815
      %1817 = vrot.lane.b32.xlu0 %v1814, 127
      %v1818 = vpop.permute.xlu0 %1817
      %v1819 = vsel %vm209, %v1816, %v1818
      %1821 = vst [vmem:[#allocation2 + $0x38] sm:$0xf0] %v1819
      %1822 = vst [vmem:[#allocation1] ss:$2 sm:$0xff] %v1802
      %v1823 = vld.sshfl [vmem:[#allocation1] sm:$0xff pattern:$0x75316420]
      %v1824 = vld.sshfl [vmem:[#allocation1 + $0x8] sm:$0xff pattern:$0x75316420]
      %1825 = vrot.lane.b32.xlu0 %v1823, 127
      %v1826 = vpop.permute.xlu0 %1825
      %1827 = vrot.lane.b32.xlu0 %v1824, 127
      %v1828 = vpop.permute.xlu0 %1827
      %v1829 = vsel %vm209, %v1826, %v1828
      %1831 = vst [vmem:[#allocation2 + $0x170] sm:$0xf] %v1829
      %s1832 = scalar_lea.vmem [#allocation1], 1
      %1833 = vst [vmem:[%s1832] ss:$2 sm:$0xff] %v1802
      %v1834 = vld.sshfl [vmem:[#allocation1] sm:$0xff pattern:$0x75316420]
      %v1835 = vld.sshfl [vmem:[#allocation1 + $0x8] sm:$0xff pattern:$0x75316420]
      %1836 = vrot.lane.b32.xlu0 %v1834, 127
      %v1837 = vpop.permute.xlu0 %1836
      %1838 = vrot.lane.b32.xlu0 %v1835, 127
      %v1839 = vpop.permute.xlu0 %1838
      %v1840 = vsel %vm209, %v1837, %v1839
      %1842 = vst [vmem:[#allocation2 + $0x268] sm:$0xf0] %v1840
      %1843 = vst [vmem:[#allocation1] ss:$2 sm:$0xff] %v1802
      %v1844 = vld.sshfl [vmem:[#allocation1] sm:$0xff pattern:$0x75316420]
      %v1845 = vld.sshfl [vmem:[#allocation1 + $0x8] sm:$0xff pattern:$0x75316420]
      %1846 = vrot.lane.b32.xlu0 %v1844, 126
      %v1847 = vpop.permute.xlu0 %1846
      %1848 = vrot.lane.b32.xlu0 %v1845, 126
      %v1849 = vpop.permute.xlu0 %1848
      %v1850 = vsel %vm220, %v1847, %v1849
      %1852 = vst [vmem:[#allocation2 + $0x78] sm:$0xf] %v1850
      %s1853 = scalar_lea.vmem [#allocation1], 1
      %1854 = vst [vmem:[%s1853] ss:$2 sm:$0xff] %v1802
      %v1855 = vld.sshfl [vmem:[#allocation1] sm:$0xff pattern:$0x75316420]
      %v1856 = vld.sshfl [vmem:[#allocation1 + $0x8] sm:$0xff pattern:$0x75316420]
      %1857 = vrot.lane.b32.xlu0 %v1855, 126
      %v1858 = vpop.permute.xlu0 %1857
      %1859 = vrot.lane.b32.xlu0 %v1856, 126
      %v1860 = vpop.permute.xlu0 %1859
      %v1861 = vsel %vm220, %v1858, %v1860
      %1863 = vst [vmem:[#allocation2 + $0x170] sm:$0xf0] %v1861
      %1864 = vst [vmem:[#allocation1] ss:$2 sm:$0xff] %v1802
      %v1865 = vld.sshfl [vmem:[#allocation1] sm:$0xff pattern:$0x75316420]
      %v1866 = vld.sshfl [vmem:[#allocation1 + $0x8] sm:$0xff pattern:$0x75316420]
      %1867 = vrot.lane.b32.xlu0 %v1865, 126
      %v1868 = vpop.permute.xlu0 %1867
      %1869 = vrot.lane.b32.xlu0 %v1866, 126
      %v1870 = vpop.permute.xlu0 %1869
      %v1871 = vsel %vm220, %v1868, %v1870
      %1873 = vst [vmem:[#allocation2 + $0x2a8] sm:$0xf] %v1871
      %s1874 = scalar_lea.vmem [#allocation1], 1
      %1875 = vst [vmem:[%s1874] ss:$2 sm:$0xff] %v1802
      %v1876 = vld.sshfl [vmem:[#allocation1] sm:$0xff pattern:$0x75316420]
      %v1877 = vld.sshfl [vmem:[#allocation1 + $0x8] sm:$0xff pattern:$0x75316420]
      %1878 = vrot.lane.b32.xlu0 %v1876, 118
      %v1879 = vpop.permute.xlu0 %1878
      %1880 = vrot.lane.b32.xlu0 %v1877, 118
      %v1881 = vpop.permute.xlu0 %1880
      %v1882 = vsel %vm232, %v1879, %v1881
      %1884 = vst [vmem:[#allocation2 + $0x78] sm:$0xf0] %v1882
      %1885 = vst [vmem:[#allocation1] ss:$2 sm:$0xff] %v1802
      %v1886 = vld.sshfl [vmem:[#allocation1] sm:$0xff pattern:$0x75316420]
      %v1887 = vld.sshfl [vmem:[#allocation1 + $0x8] sm:$0xff pattern:$0x75316420]
      %1888 = vrot.lane.b32.xlu0 %v1886, 118
      %v1889 = vpop.permute.xlu0 %1888
      %1890 = vrot.lane.b32.xlu0 %v1887, 118
      %v1891 = vpop.permute.xlu0 %1890
      %v1892 = vsel %vm232, %v1889, %v1891
      %1894 = vst [vmem:[#allocation2 + $0x1b0] sm:$0xf] %v1892
      %s1895 = scalar_lea.vmem [#allocation1], 1
      %1896 = vst [vmem:[%s1895] ss:$2 sm:$0xff] %v1802
      %v1897 = vld.sshfl [vmem:[#allocation1] sm:$0xff pattern:$0x75316420]
      %v1898 = vld.sshfl [vmem:[#allocation1 + $0x8] sm:$0xff pattern:$0x75316420]
      %1899 = vrot.lane.b32.xlu0 %v1897, 118
      %v1900 = vpop.permute.xlu0 %1899
      %1901 = vrot.lane.b32.xlu0 %v1898, 118
      %v1902 = vpop.permute.xlu0 %1901
      %v1903 = vsel %vm232, %v1900, %v1902
      %1905 = vst [vmem:[#allocation2 + $0x2a8] sm:$0xf0] %v1903
      %1906 = vst [vmem:[#allocation1] ss:$2 sm:$0xff] %v1802
      %v1907 = vld.sshfl [vmem:[#allocation1] sm:$0xff pattern:$0x75316420]
      %v1908 = vld.sshfl [vmem:[#allocation1 + $0x8] sm:$0xff pattern:$0x75316420]
      %1909 = vrot.lane.b32.xlu0 %v1907, 117
      %v1910 = vpop.permute.xlu0 %1909
      %1911 = vrot.lane.b32.xlu0 %v1908, 117
      %v1912 = vpop.permute.xlu0 %1911
      %v1913 = vsel %vm243, %v1910, %v1912
      %1915 = vst [vmem:[#allocation2 + $0xb8] sm:$0xf] %v1913
      %s1916 = scalar_lea.vmem [#allocation1], 1
      %1917 = vst [vmem:[%s1916] ss:$2 sm:$0xff] %v1802
      %v1918 = vld.sshfl [vmem:[#allocation1] sm:$0xff pattern:$0x75316420]
      %v1919 = vld.sshfl [vmem:[#allocation1 + $0x8] sm:$0xff pattern:$0x75316420]
      %1920 = vrot.lane.b32.xlu0 %v1918, 117
      %v1921 = vpop.permute.xlu0 %1920
      %1922 = vrot.lane.b32.xlu0 %v1919, 117
      %v1923 = vpop.permute.xlu0 %1922
      %v1924 = vsel %vm243, %v1921, %v1923
      %1926 = vst [vmem:[#allocation2 + $0x1b0] sm:$0xf0] %v1924
      %1927 = vst [vmem:[#allocation1] ss:$2 sm:$0xff] %v1802
      %v1928 = vld.sshfl [vmem:[#allocation1] sm:$0xff pattern:$0x75316420]
      %v1929 = vld.sshfl [vmem:[#allocation1 + $0x8] sm:$0xff pattern:$0x75316420]
      %1930 = vrot.lane.b32.xlu0 %v1928, 117
      %v1931 = vpop.permute.xlu0 %1930
      %1932 = vrot.lane.b32.xlu0 %v1929, 117
      %v1933 = vpop.permute.xlu0 %1932
      %v1934 = vsel %vm243, %v1931, %v1933
      %1936 = vst [vmem:[#allocation2 + $0x2e8] sm:$0xf] %v1934
      %s1937 = scalar_lea.vmem [#allocation1], 1
      %1938 = vst [vmem:[%s1937] ss:$2 sm:$0xff] %v1802
      %v1939 = vld.sshfl [vmem:[#allocation1] sm:$0xff pattern:$0x75316420]
      %v1940 = vld.sshfl [vmem:[#allocation1 + $0x8] sm:$0xff pattern:$0x75316420]
      %1941 = vrot.lane.b32.xlu0 %v1939, 116
      %v1942 = vpop.permute.xlu0 %1941
      %1943 = vrot.lane.b32.xlu0 %v1940, 116
      %v1944 = vpop.permute.xlu0 %1943
      %v1945 = vsel %vm255, %v1942, %v1944
      %1947 = vst [vmem:[#allocation2 + $0xb8] sm:$0xf0] %v1945
      %1948 = vst [vmem:[#allocation1] ss:$2 sm:$0xff] %v1802
      %v1949 = vld.sshfl [vmem:[#allocation1] sm:$0xff pattern:$0x75316420]
      %v1950 = vld.sshfl [vmem:[#allocation1 + $0x8] sm:$0xff pattern:$0x75316420]
      %1951 = vrot.lane.b32.xlu0 %v1949, 116
      %v1952 = vpop.permute.xlu0 %1951
      %1953 = vrot.lane.b32.xlu0 %v1950, 116
      %v1954 = vpop.permute.xlu0 %1953
      %v1955 = vsel %vm255, %v1952, %v1954
      %1957 = vst [vmem:[#allocation2 + $0x1f0] sm:$0xf] %v1955
      %s1958 = scalar_lea.vmem [#allocation1], 1
      %1959 = vst [vmem:[%s1958] ss:$2 sm:$0xff] %v1802
      %v1960 = vld.sshfl [vmem:[#allocation1] sm:$0xff pattern:$0x75316420]
      %v1961 = vld.sshfl [vmem:[#allocation1 + $0x8] sm:$0xff pattern:$0x75316420]
      %1962 = vrot.lane.b32.xlu0 %v1960, 116
      %v1963 = vpop.permute.xlu0 %1962
      %1964 = vrot.lane.b32.xlu0 %v1961, 116
      %v1965 = vpop.permute.xlu0 %1964
      %v1966 = vsel %vm255, %v1963, %v1965
      %1968 = vst [vmem:[#allocation2 + $0x2e8] sm:$0xf0] %v1966
      %1969 = vst [vmem:[#allocation1] ss:$2 sm:$0xff] %v1802
      %v1970 = vld.sshfl [vmem:[#allocation1] sm:$0xff pattern:$0x75316420]
      %v1971 = vld.sshfl [vmem:[#allocation1 + $0x8] sm:$0xff pattern:$0x75316420]
      %1972 = vrot.lane.b32.xlu0 %v1970, 108
      %v1973 = vpop.permute.xlu0 %1972
      %1974 = vrot.lane.b32.xlu0 %v1971, 108
      %v1975 = vpop.permute.xlu0 %1974
      %v1976 = vsel %vm266, %v1973, %v1975
      %1978 = vst [vmem:[#allocation2 + $0xf8] sm:$0xf] %v1976
      %s1979 = scalar_lea.vmem [#allocation1], 1
      %1980 = vst [vmem:[%s1979] ss:$2 sm:$0xff] %v1802
      %v1981 = vld.sshfl [vmem:[#allocation1] sm:$0xff pattern:$0x75316420]
      %v1982 = vld.sshfl [vmem:[#allocation1 + $0x8] sm:$0xff pattern:$0x75316420]
      %1983 = vrot.lane.b32.xlu0 %v1981, 108
      %v1984 = vpop.permute.xlu0 %1983
      %1985 = vrot.lane.b32.xlu0 %v1982, 108
      %v1986 = vpop.permute.xlu0 %1985
      %v1987 = vsel %vm266, %v1984, %v1986
      %1989 = vst [vmem:[#allocation2 + $0x1f0] sm:$0xf0] %v1987
      %1990 = vst [vmem:[#allocation1] ss:$2 sm:$0xff] %v1802
      %v1991 = vld.sshfl [vmem:[#allocation1] sm:$0xff pattern:$0x75316420]
      %v1992 = vld.sshfl [vmem:[#allocation1 + $0x8] sm:$0xff pattern:$0x75316420]
      %1993 = vrot.lane.b32.xlu0 %v1991, 108
      %v1994 = vpop.permute.xlu0 %1993
      %1995 = vrot.lane.b32.xlu0 %v1992, 108
      %v1996 = vpop.permute.xlu0 %1995
      %v1997 = vsel %vm266, %v1994, %v1996
      %1999 = vst [vmem:[#allocation2 + $0x328] sm:$0xf] %v1997
      %s2000 = scalar_lea.vmem [#allocation1], 1
      %2001 = vst [vmem:[%s2000] ss:$2 sm:$0xff] %v1802
      %v2002 = vld.sshfl [vmem:[#allocation1] sm:$0xff pattern:$0x75316420]
      %v2003 = vld.sshfl [vmem:[#allocation1 + $0x8] sm:$0xff pattern:$0x75316420]
      %2004 = vrot.lane.b32.xlu0 %v2002, 107
      %v2005 = vpop.permute.xlu0 %2004
      %2006 = vrot.lane.b32.xlu0 %v2003, 107
      %v2007 = vpop.permute.xlu0 %2006
      %v2008 = vsel %vm278, %v2005, %v2007
      %2010 = vst [vmem:[#allocation2 + $0xf8] sm:$0xf0] %v2008
      %2011 = vst [vmem:[#allocation1] ss:$2 sm:$0xff] %v1802
      %v2012 = vld.sshfl [vmem:[#allocation1] sm:$0xff pattern:$0x75316420]
      %v2013 = vld.sshfl [vmem:[#allocation1 + $0x8] sm:$0xff pattern:$0x75316420]
      %2014 = vrot.lane.b32.xlu0 %v2012, 107
      %v2015 = vpop.permute.xlu0 %2014
      %2016 = vrot.lane.b32.xlu0 %v2013, 107
      %v2017 = vpop.permute.xlu0 %2016
      %v2018 = vsel %vm278, %v2015, %v2017
      %2020 = vst [vmem:[#allocation2 + $0x230] sm:$0xf] %v2018
      %s2021 = scalar_lea.vmem [#allocation1], 1
      %2022 = vst [vmem:[%s2021] ss:$2 sm:$0xff] %v1802
      %v2023 = vld.sshfl [vmem:[#allocation1] sm:$0xff pattern:$0x75316420]
      %v2024 = vld.sshfl [vmem:[#allocation1 + $0x8] sm:$0xff pattern:$0x75316420]
      %2025 = vrot.lane.b32.xlu0 %v2023, 107
      %v2026 = vpop.permute.xlu0 %2025
      %2027 = vrot.lane.b32.xlu0 %v2024, 107
      %v2028 = vpop.permute.xlu0 %2027
      %v2029 = vsel %vm278, %v2026, %v2028
      %2031 = vst [vmem:[#allocation2 + $0x328] sm:$0xf0] %v2029
      %2032 = vst [vmem:[#allocation1] ss:$2 sm:$0xff] %v1802
      %v2033 = vld.sshfl [vmem:[#allocation1] sm:$0xff pattern:$0x75316420]
      %v2034 = vld.sshfl [vmem:[#allocation1 + $0x8] sm:$0xff pattern:$0x75316420]
      %2035 = vrot.lane.b32.xlu0 %v2033, 106
      %v2036 = vpop.permute.xlu0 %2035
      %2037 = vrot.lane.b32.xlu0 %v2034, 106
      %v2038 = vpop.permute.xlu0 %2037
      %v2039 = vsel %vm289, %v2036, %v2038
      %2041 = vst [vmem:[#allocation2 + $0x138] sm:$0xf] %v2039
      %s2042 = scalar_lea.vmem [#allocation1], 1
      %2043 = vst [vmem:[%s2042] ss:$2 sm:$0xff] %v1802
      %v2044 = vld.sshfl [vmem:[#allocation1] sm:$0xff pattern:$0x75316420]
      %v2045 = vld.sshfl [vmem:[#allocation1 + $0x8] sm:$0xff pattern:$0x75316420]
      %2046 = vrot.lane.b32.xlu0 %v2044, 106
      %v2047 = vpop.permute.xlu0 %2046
      %2048 = vrot.lane.b32.xlu0 %v2045, 106
      %v2049 = vpop.permute.xlu0 %2048
      %v2050 = vsel %vm289, %v2047, %v2049
      %2052 = vst [vmem:[#allocation2 + $0x230] sm:$0xf0] %v2050
      %2053 = vst [vmem:[#allocation1] ss:$2 sm:$0xff] %v1802
      %v2054 = vld.sshfl [vmem:[#allocation1] sm:$0xff pattern:$0x75316420]
      %v2055 = vld.sshfl [vmem:[#allocation1 + $0x8] sm:$0xff pattern:$0x75316420]
      %2056 = vrot.lane.b32.xlu0 %v2054, 106
      %v2057 = vpop.permute.xlu0 %2056
      %2058 = vrot.lane.b32.xlu0 %v2055, 106
      %v2059 = vpop.permute.xlu0 %2058
      %v2060 = vsel %vm289, %v2057, %v2059
      %2062 = vst [vmem:[#allocation2 + $0x368] sm:$0xf] %v2060
      %s2063 = sadd.s32 %s194, 8
      %s2064 = smul.u32 %s2063, 2
      %s2065 = smul.addr %s2064, 4
      %s2066 = scalar_lea.vmem %s183, %s2065
      %v2067 = vld [vmem:[%s2066] sm:$0xff]
      %s2069 = scalar_lea.vmem [#allocation1], 1
      %2070 = vst [vmem:[%s2069] ss:$2 sm:$0xff] %v2067
      %v2071 = vld.sshfl [vmem:[#allocation1] sm:$0xff pattern:$0x75316420]
      %2073 = vst [vmem:[#allocation2 + $0x138] sm:$0xf0] %v2071
      %2074 = vst [vmem:[#allocation2 + $0x270] sm:$0xf] %v2067
      %2075 = vst [vmem:[#allocation1] ss:$2 sm:$0xff] %v2067
      %v2076 = vld.sshfl [vmem:[#allocation1] sm:$0xff pattern:$0x75316420]
      %v2077 = vld.sshfl [vmem:[#allocation1 + $0x8] sm:$0xff pattern:$0x75316420]
      %2078 = vrot.lane.b32.xlu0 %v2076, 127
      %v2079 = vpop.permute.xlu0 %2078
      %2080 = vrot.lane.b32.xlu0 %v2077, 127
      %v2081 = vpop.permute.xlu0 %2080
      %v2082 = vsel %vm209, %v2079, %v2081
      %2084 = vst [vmem:[#allocation2 + $0x178] sm:$0xf] %v2082
      %s2085 = scalar_lea.vmem [#allocation1], 1
      %2086 = vst [vmem:[%s2085] ss:$2 sm:$0xff] %v2067
      %v2087 = vld.sshfl [vmem:[#allocation1] sm:$0xff pattern:$0x75316420]
      %v2088 = vld.sshfl [vmem:[#allocation1 + $0x8] sm:$0xff pattern:$0x75316420]
      %2089 = vrot.lane.b32.xlu0 %v2087, 127
      %v2090 = vpop.permute.xlu0 %2089
      %2091 = vrot.lane.b32.xlu0 %v2088, 127
      %v2092 = vpop.permute.xlu0 %2091
      %v2093 = vsel %vm209, %v2090, %v2092
      %2095 = vst [vmem:[#allocation2 + $0x270] sm:$0xf0] %v2093
      %s2096 = scalar_lea.vmem [#allocation1], 1
      %2097 = vst [vmem:[%s2096] ss:$2 sm:$0xff] %v2067
      %v2098 = vld.sshfl [vmem:[#allocation1] sm:$0xff pattern:$0x75316420]
      %v2099 = vld.sshfl [vmem:[#allocation1 + $0x8] sm:$0xff pattern:$0x75316420]
      %2100 = vrot.lane.b32.xlu0 %v2098, 126
      %v2101 = vpop.permute.xlu0 %2100
      %2102 = vrot.lane.b32.xlu0 %v2099, 126
      %v2103 = vpop.permute.xlu0 %2102
      %v2104 = vsel %vm220, %v2101, %v2103
      %2106 = vst [vmem:[#allocation2 + $0x178] sm:$0xf0] %v2104
      %2107 = vst [vmem:[#allocation1] ss:$2 sm:$0xff] %v2067
      %v2108 = vld.sshfl [vmem:[#allocation1] sm:$0xff pattern:$0x75316420]
      %v2109 = vld.sshfl [vmem:[#allocation1 + $0x8] sm:$0xff pattern:$0x75316420]
      %2110 = vrot.lane.b32.xlu0 %v2108, 126
      %v2111 = vpop.permute.xlu0 %2110
      %2112 = vrot.lane.b32.xlu0 %v2109, 126
      %v2113 = vpop.permute.xlu0 %2112
      %v2114 = vsel %vm220, %v2111, %v2113
      %2116 = vst [vmem:[#allocation2 + $0x2b0] sm:$0xf] %v2114
      %2117 = vst [vmem:[#allocation1] ss:$2 sm:$0xff] %v2067
      %v2118 = vld.sshfl [vmem:[#allocation1] sm:$0xff pattern:$0x75316420]
      %v2119 = vld.sshfl [vmem:[#allocation1 + $0x8] sm:$0xff pattern:$0x75316420]
      %2120 = vrot.lane.b32.xlu0 %v2118, 118
      %v2121 = vpop.permute.xlu0 %2120
      %2122 = vrot.lane.b32.xlu0 %v2119, 118
      %v2123 = vpop.permute.xlu0 %2122
      %v2124 = vsel %vm232, %v2121, %v2123
      %2126 = vst [vmem:[#allocation2 + $0x1b8] sm:$0xf] %v2124
      %s2127 = scalar_lea.vmem [#allocation1], 1
      %2128 = vst [vmem:[%s2127] ss:$2 sm:$0xff] %v2067
      %v2129 = vld.sshfl [vmem:[#allocation1] sm:$0xff pattern:$0x75316420]
      %v2130 = vld.sshfl [vmem:[#allocation1 + $0x8] sm:$0xff pattern:$0x75316420]
      %2131 = vrot.lane.b32.xlu0 %v2129, 118
      %v2132 = vpop.permute.xlu0 %2131
      %2133 = vrot.lane.b32.xlu0 %v2130, 118
      %v2134 = vpop.permute.xlu0 %2133
      %v2135 = vsel %vm232, %v2132, %v2134
      %2137 = vst [vmem:[#allocation2 + $0x2b0] sm:$0xf0] %v2135
      %s2138 = scalar_lea.vmem [#allocation1], 1
      %2139 = vst [vmem:[%s2138] ss:$2 sm:$0xff] %v2067
      %v2140 = vld.sshfl [vmem:[#allocation1] sm:$0xff pattern:$0x75316420]
      %v2141 = vld.sshfl [vmem:[#allocation1 + $0x8] sm:$0xff pattern:$0x75316420]
      %2142 = vrot.lane.b32.xlu0 %v2140, 117
      %v2143 = vpop.permute.xlu0 %2142
      %2144 = vrot.lane.b32.xlu0 %v2141, 117
      %v2145 = vpop.permute.xlu0 %2144
      %v2146 = vsel %vm243, %v2143, %v2145
      %2148 = vst [vmem:[#allocation2 + $0x1b8] sm:$0xf0] %v2146
      %2149 = vst [vmem:[#allocation1] ss:$2 sm:$0xff] %v2067
      %v2150 = vld.sshfl [vmem:[#allocation1] sm:$0xff pattern:$0x75316420]
      %v2151 = vld.sshfl [vmem:[#allocation1 + $0x8] sm:$0xff pattern:$0x75316420]
      %2152 = vrot.lane.b32.xlu0 %v2150, 117
      %v2153 = vpop.permute.xlu0 %2152
      %2154 = vrot.lane.b32.xlu0 %v2151, 117
      %v2155 = vpop.permute.xlu0 %2154
      %v2156 = vsel %vm243, %v2153, %v2155
      %2158 = vst [vmem:[#allocation2 + $0x2f0] sm:$0xf] %v2156
      %2159 = vst [vmem:[#allocation1] ss:$2 sm:$0xff] %v2067
      %v2160 = vld.sshfl [vmem:[#allocation1] sm:$0xff pattern:$0x75316420]
      %v2161 = vld.sshfl [vmem:[#allocation1 + $0x8] sm:$0xff pattern:$0x75316420]
      %2162 = vrot.lane.b32.xlu0 %v2160, 116
      %v2163 = vpop.permute.xlu0 %2162
      %2164 = vrot.lane.b32.xlu0 %v2161, 116
      %v2165 = vpop.permute.xlu0 %2164
      %v2166 = vsel %vm255, %v2163, %v2165
      %2168 = vst [vmem:[#allocation2 + $0x1f8] sm:$0xf] %v2166
      %s2169 = scalar_lea.vmem [#allocation1], 1
      %2170 = vst [vmem:[%s2169] ss:$2 sm:$0xff] %v2067
      %v2171 = vld.sshfl [vmem:[#allocation1] sm:$0xff pattern:$0x75316420]
      %v2172 = vld.sshfl [vmem:[#allocation1 + $0x8] sm:$0xff pattern:$0x75316420]
      %2173 = vrot.lane.b32.xlu0 %v2171, 116
      %v2174 = vpop.permute.xlu0 %2173
      %2175 = vrot.lane.b32.xlu0 %v2172, 116
      %v2176 = vpop.permute.xlu0 %2175
      %v2177 = vsel %vm255, %v2174, %v2176
      %2179 = vst [vmem:[#allocation2 + $0x2f0] sm:$0xf0] %v2177
      %s2180 = scalar_lea.vmem [#allocation1], 1
      %2181 = vst [vmem:[%s2180] ss:$2 sm:$0xff] %v2067
      %v2182 = vld.sshfl [vmem:[#allocation1] sm:$0xff pattern:$0x75316420]
      %v2183 = vld.sshfl [vmem:[#allocation1 + $0x8] sm:$0xff pattern:$0x75316420]
      %2184 = vrot.lane.b32.xlu0 %v2182, 108
      %v2185 = vpop.permute.xlu0 %2184
      %2186 = vrot.lane.b32.xlu0 %v2183, 108
      %v2187 = vpop.permute.xlu0 %2186
      %v2188 = vsel %vm266, %v2185, %v2187
      %2190 = vst [vmem:[#allocation2 + $0x1f8] sm:$0xf0] %v2188
      %2191 = vst [vmem:[#allocation1] ss:$2 sm:$0xff] %v2067
      %v2192 = vld.sshfl [vmem:[#allocation1] sm:$0xff pattern:$0x75316420]
      %v2193 = vld.sshfl [vmem:[#allocation1 + $0x8] sm:$0xff pattern:$0x75316420]
      %2194 = vrot.lane.b32.xlu0 %v2192, 108
      %v2195 = vpop.permute.xlu0 %2194
      %2196 = vrot.lane.b32.xlu0 %v2193, 108
      %v2197 = vpop.permute.xlu0 %2196
      %v2198 = vsel %vm266, %v2195, %v2197
      %2200 = vst [vmem:[#allocation2 + $0x330] sm:$0xf] %v2198
      %2201 = vst [vmem:[#allocation1] ss:$2 sm:$0xff] %v2067
      %v2202 = vld.sshfl [vmem:[#allocation1] sm:$0xff pattern:$0x75316420]
      %v2203 = vld.sshfl [vmem:[#allocation1 + $0x8] sm:$0xff pattern:$0x75316420]
      %2204 = vrot.lane.b32.xlu0 %v2202, 107
      %v2205 = vpop.permute.xlu0 %2204
      %2206 = vrot.lane.b32.xlu0 %v2203, 107
      %v2207 = vpop.permute.xlu0 %2206
      %v2208 = vsel %vm278, %v2205, %v2207
      %2210 = vst [vmem:[#allocation2 + $0x238] sm:$0xf] %v2208
      %s2211 = scalar_lea.vmem [#allocation1], 1
      %2212 = vst [vmem:[%s2211] ss:$2 sm:$0xff] %v2067
      %v2213 = vld.sshfl [vmem:[#allocation1] sm:$0xff pattern:$0x75316420]
      %v2214 = vld.sshfl [vmem:[#allocation1 + $0x8] sm:$0xff pattern:$0x75316420]
      %2215 = vrot.lane.b32.xlu0 %v2213, 107
      %v2216 = vpop.permute.xlu0 %2215
      %2217 = vrot.lane.b32.xlu0 %v2214, 107
      %v2218 = vpop.permute.xlu0 %2217
      %v2219 = vsel %vm278, %v2216, %v2218
      %2221 = vst [vmem:[#allocation2 + $0x330] sm:$0xf0] %v2219
      %s2222 = scalar_lea.vmem [#allocation1], 1
      %2223 = vst [vmem:[%s2222] ss:$2 sm:$0xff] %v2067
      %v2224 = vld.sshfl [vmem:[#allocation1] sm:$0xff pattern:$0x75316420]
      %v2225 = vld.sshfl [vmem:[#allocation1 + $0x8] sm:$0xff pattern:$0x75316420]
      %2226 = vrot.lane.b32.xlu0 %v2224, 106
      %v2227 = vpop.permute.xlu0 %2226
      %2228 = vrot.lane.b32.xlu0 %v2225, 106
      %v2229 = vpop.permute.xlu0 %2228
      %v2230 = vsel %vm289, %v2227, %v2229
      %2232 = vst [vmem:[#allocation2 + $0x238] sm:$0xf0] %v2230
      %2233 = vst [vmem:[#allocation1] ss:$2 sm:$0xff] %v2067
      %v2234 = vld.sshfl [vmem:[#allocation1] sm:$0xff pattern:$0x75316420]
      %v2235 = vld.sshfl [vmem:[#allocation1 + $0x8] sm:$0xff pattern:$0x75316420]
      %2236 = vrot.lane.b32.xlu0 %v2234, 106
      %v2237 = vpop.permute.xlu0 %2236
      %2238 = vrot.lane.b32.xlu0 %v2235, 106
      %v2239 = vpop.permute.xlu0 %2238
      %v2240 = vsel %vm289, %v2237, %v2239
      %2242 = vst [vmem:[#allocation2 + $0x370] sm:$0xf] %v2240
      %s2243 = sadd.s32 %s194, 9
      %s2244 = smul.u32 %s2243, 2
      %s2245 = smul.addr %s2244, 4
      %s2246 = scalar_lea.vmem %s183, %s2245
      %v2247 = vld [vmem:[%s2246] sm:$0xff]
      %2248 = vst [vmem:[#allocation2 + $0x278] sm:$0xf] %v2247
      %s2250 = scalar_lea.vmem [#allocation1], 1
      %2251 = vst [vmem:[%s2250] ss:$2 sm:$0xff] %v2247
      %v2252 = vld.sshfl [vmem:[#allocation1] sm:$0xff pattern:$0x75316420]
      %v2253 = vld.sshfl [vmem:[#allocation1 + $0x8] sm:$0xff pattern:$0x75316420]
      %2254 = vrot.lane.b32.xlu0 %v2252, 127
      %v2255 = vpop.permute.xlu0 %2254
      %2256 = vrot.lane.b32.xlu0 %v2253, 127
      %v2257 = vpop.permute.xlu0 %2256
      %v2258 = vsel %vm209, %v2255, %v2257
      %2260 = vst [vmem:[#allocation2 + $0x278] sm:$0xf0] %v2258
      %2261 = vst [vmem:[#allocation1] ss:$2 sm:$0xff] %v2247
      %v2262 = vld.sshfl [vmem:[#allocation1] sm:$0xff pattern:$0x75316420]
      %v2263 = vld.sshfl [vmem:[#allocation1 + $0x8] sm:$0xff pattern:$0x75316420]
      %2264 = vrot.lane.b32.xlu0 %v2262, 126
      %v2265 = vpop.permute.xlu0 %2264
      %2266 = vrot.lane.b32.xlu0 %v2263, 126
      %v2267 = vpop.permute.xlu0 %2266
      %v2268 = vsel %vm220, %v2265, %v2267
      %2270 = vst [vmem:[#allocation2 + $0x2b8] sm:$0xf] %v2268
      %s2271 = scalar_lea.vmem [#allocation1], 1
      %2272 = vst [vmem:[%s2271] ss:$2 sm:$0xff] %v2247
      %v2273 = vld.sshfl [vmem:[#allocation1] sm:$0xff pattern:$0x75316420]
      %v2274 = vld.sshfl [vmem:[#allocation1 + $0x8] sm:$0xff pattern:$0x75316420]
      %2275 = vrot.lane.b32.xlu0 %v2273, 118
      %v2276 = vpop.permute.xlu0 %2275
      %2277 = vrot.lane.b32.xlu0 %v2274, 118
      %v2278 = vpop.permute.xlu0 %2277
      %v2279 = vsel %vm232, %v2276, %v2278
      %2281 = vst [vmem:[#allocation2 + $0x2b8] sm:$0xf0] %v2279
      %2282 = vst [vmem:[#allocation1] ss:$2 sm:$0xff] %v2247
      %v2283 = vld.sshfl [vmem:[#allocation1] sm:$0xff pattern:$0x75316420]
      %v2284 = vld.sshfl [vmem:[#allocation1 + $0x8] sm:$0xff pattern:$0x75316420]
      %2285 = vrot.lane.b32.xlu0 %v2283, 117
      %v2286 = vpop.permute.xlu0 %2285
      %2287 = vrot.lane.b32.xlu0 %v2284, 117
      %v2288 = vpop.permute.xlu0 %2287
      %v2289 = vsel %vm243, %v2286, %v2288
      %2291 = vst [vmem:[#allocation2 + $0x2f8] sm:$0xf] %v2289
      %s2292 = scalar_lea.vmem [#allocation1], 1
      %2293 = vst [vmem:[%s2292] ss:$2 sm:$0xff] %v2247
      %v2294 = vld.sshfl [vmem:[#allocation1] sm:$0xff pattern:$0x75316420]
      %v2295 = vld.sshfl [vmem:[#allocation1 + $0x8] sm:$0xff pattern:$0x75316420]
      %2296 = vrot.lane.b32.xlu0 %v2294, 116
      %v2297 = vpop.permute.xlu0 %2296
      %2298 = vrot.lane.b32.xlu0 %v2295, 116
      %v2299 = vpop.permute.xlu0 %2298
      %v2300 = vsel %vm255, %v2297, %v2299
      %2302 = vst [vmem:[#allocation2 + $0x2f8] sm:$0xf0] %v2300
      %2303 = vst [vmem:[#allocation1] ss:$2 sm:$0xff] %v2247
      %v2304 = vld.sshfl [vmem:[#allocation1] sm:$0xff pattern:$0x75316420]
      %v2305 = vld.sshfl [vmem:[#allocation1 + $0x8] sm:$0xff pattern:$0x75316420]
      %2306 = vrot.lane.b32.xlu0 %v2304, 108
      %v2307 = vpop.permute.xlu0 %2306
      %2308 = vrot.lane.b32.xlu0 %v2305, 108
      %v2309 = vpop.permute.xlu0 %2308
      %v2310 = vsel %vm266, %v2307, %v2309
      %2312 = vst [vmem:[#allocation2 + $0x338] sm:$0xf] %v2310
      %s2313 = scalar_lea.vmem [#allocation1], 1
      %2314 = vst [vmem:[%s2313] ss:$2 sm:$0xff] %v2247
      %v2315 = vld.sshfl [vmem:[#allocation1] sm:$0xff pattern:$0x75316420]
      %v2316 = vld.sshfl [vmem:[#allocation1 + $0x8] sm:$0xff pattern:$0x75316420]
      %2317 = vrot.lane.b32.xlu0 %v2315, 107
      %v2318 = vpop.permute.xlu0 %2317
      %2319 = vrot.lane.b32.xlu0 %v2316, 107
      %v2320 = vpop.permute.xlu0 %2319
      %v2321 = vsel %vm278, %v2318, %v2320
      %2323 = vst [vmem:[#allocation2 + $0x338] sm:$0xf0] %v2321
      %2324 = vst [vmem:[#allocation1] ss:$2 sm:$0xff] %v2247
      %v2325 = vld.sshfl [vmem:[#allocation1] sm:$0xff pattern:$0x75316420]
      %v2326 = vld.sshfl [vmem:[#allocation1 + $0x8] sm:$0xff pattern:$0x75316420]
      %2327 = vrot.lane.b32.xlu0 %v2325, 106
      %v2328 = vpop.permute.xlu0 %2327
      %2329 = vrot.lane.b32.xlu0 %v2326, 106
      %v2330 = vpop.permute.xlu0 %2329
      %v2331 = vsel %vm289, %v2328, %v2330
      %2333 = vst [vmem:[#allocation2 + $0x378] sm:$0xf] %v2331
      %v2334 = vld [vmem:[%s1] sm:$0xff]
      %v2335 = vld [vmem:[#allocation2] sm:$0xff]
      %v2336 = vld [vmem:[#allocation2 + $0x8] sm:$0xff]
      %v2337 = vld [vmem:[#allocation2 + $0x10] sm:$0xff]
      %v2338 = vld [vmem:[#allocation2 + $0x18] sm:$0xff]
      %v2339 = vld [vmem:[#allocation2 + $0x20] sm:$0xff]
      %v2340 = vld [vmem:[#allocation2 + $0x28] sm:$0xff]
      %v2341 = vld [vmem:[#allocation2 + $0x30] sm:$0xff]
      %v2342 = vld [vmem:[#allocation2 + $0x38] sm:$0xff]
      %v2343 = vld [vmem:[#allocation2 + $0x40] sm:$0xff]
      %v2344 = vld [vmem:[#allocation2 + $0x48] sm:$0xff]
      %v2345 = vld [vmem:[#allocation2 + $0x50] sm:$0xff]
      %v2346 = vld [vmem:[#allocation2 + $0x58] sm:$0xff]
      %v2347 = vld [vmem:[#allocation2 + $0x60] sm:$0xff]
      %v2348 = vld [vmem:[#allocation2 + $0x68] sm:$0xff]
      %v2349 = vld [vmem:[#allocation2 + $0x70] sm:$0xff]
      %v2350 = vld [vmem:[#allocation2 + $0x78] sm:$0xff]
      %v2351 = vld [vmem:[#allocation2 + $0x80] sm:$0xff]
      %v2352 = vld [vmem:[#allocation2 + $0x88] sm:$0xff]
      %v2353 = vld [vmem:[#allocation2 + $0x90] sm:$0xff]
      %v2354 = vld [vmem:[#allocation2 + $0x98] sm:$0xff]
      %v2355 = vld [vmem:[#allocation2 + $0xa0] sm:$0xff]
      %v2356 = vld [vmem:[#allocation2 + $0xa8] sm:$0xff]
      %v2357 = vld [vmem:[#allocation2 + $0xb0] sm:$0xff]
      %v2358 = vld [vmem:[#allocation2 + $0xb8] sm:$0xff]
      %v2359 = vld [vmem:[#allocation2 + $0xc0] sm:$0xff]
      %v2360 = vld [vmem:[#allocation2 + $0xc8] sm:$0xff]
      %v2361 = vld [vmem:[#allocation2 + $0xd0] sm:$0xff]
      %v2362 = vld [vmem:[#allocation2 + $0xd8] sm:$0xff]
      %v2363 = vld [vmem:[#allocation2 + $0xe0] sm:$0xff]
      %v2364 = vld [vmem:[#allocation2 + $0xe8] sm:$0xff]
      %v2365 = vld [vmem:[#allocation2 + $0xf0] sm:$0xff]
      %v2366 = vld [vmem:[#allocation2 + $0xf8] sm:$0xff]
      %v2367 = vld [vmem:[#allocation2 + $0x100] sm:$0xff]
      %v2368 = vld [vmem:[#allocation2 + $0x108] sm:$0xff]
      %v2369 = vld [vmem:[#allocation2 + $0x110] sm:$0xff]
      %v2370 = vld [vmem:[#allocation2 + $0x118] sm:$0xff]
      %v2371 = vld [vmem:[#allocation2 + $0x120] sm:$0xff]
      %v2372 = vld [vmem:[#allocation2 + $0x128] sm:$0xff]
      %v2373 = vld [vmem:[#allocation2 + $0x130] sm:$0xff]
      %v2374 = vld [vmem:[#allocation2 + $0x138] sm:$0xff]
      %v2375 = vld [vmem:[#allocation2 + $0x140] sm:$0xff]
      %v2376 = vld [vmem:[#allocation2 + $0x148] sm:$0xff]
      %v2377 = vld [vmem:[#allocation2 + $0x150] sm:$0xff]
      %v2378 = vld [vmem:[#allocation2 + $0x158] sm:$0xff]
      %v2379 = vld [vmem:[#allocation2 + $0x160] sm:$0xff]
      %v2380 = vld [vmem:[#allocation2 + $0x168] sm:$0xff]
      %v2381 = vld [vmem:[#allocation2 + $0x170] sm:$0xff]
      %v2382 = vld [vmem:[#allocation2 + $0x178] sm:$0xff]
      %v2383 = vld [vmem:[#allocation2 + $0x180] sm:$0xff]
      %v2384 = vld [vmem:[#allocation2 + $0x188] sm:$0xff]
      %v2385 = vld [vmem:[#allocation2 + $0x190] sm:$0xff]
      %v2386 = vld [vmem:[#allocation2 + $0x198] sm:$0xff]
      %v2387 = vld [vmem:[#allocation2 + $0x1a0] sm:$0xff]
      %v2388 = vld [vmem:[#allocation2 + $0x1a8] sm:$0xff]
      %v2389 = vld [vmem:[#allocation2 + $0x1b0] sm:$0xff]
      %v2390 = vld [vmem:[#allocation2 + $0x1b8] sm:$0xff]
      %v2391 = vld [vmem:[#allocation2 + $0x1c0] sm:$0xff]
      %v2392 = vld [vmem:[#allocation2 + $0x1c8] sm:$0xff]
      %v2393 = vld [vmem:[#allocation2 + $0x1d0] sm:$0xff]
      %v2394 = vld [vmem:[#allocation2 + $0x1d8] sm:$0xff]
      %v2395 = vld [vmem:[#allocation2 + $0x1e0] sm:$0xff]
      %v2396 = vld [vmem:[#allocation2 + $0x1e8] sm:$0xff]
      %v2397 = vld [vmem:[#allocation2 + $0x1f0] sm:$0xff]
      %v2398 = vld [vmem:[#allocation2 + $0x1f8] sm:$0xff]
      %v2399 = vld [vmem:[#allocation2 + $0x200] sm:$0xff]
      %v2400 = vld [vmem:[#allocation2 + $0x208] sm:$0xff]
      %v2401 = vld [vmem:[#allocation2 + $0x210] sm:$0xff]
      %v2402 = vld [vmem:[#allocation2 + $0x218] sm:$0xff]
      %v2403 = vld [vmem:[#allocation2 + $0x220] sm:$0xff]
      %v2404 = vld [vmem:[#allocation2 + $0x228] sm:$0xff]
      %v2405 = vld [vmem:[#allocation2 + $0x230] sm:$0xff]
      %v2406 = vld [vmem:[#allocation2 + $0x238] sm:$0xff]
      %v2407 = vld [vmem:[#allocation2 + $0x240] sm:$0xff]
      %v2408 = vld [vmem:[#allocation2 + $0x248] sm:$0xff]
      %v2409 = vld [vmem:[#allocation2 + $0x250] sm:$0xff]
      %v2410 = vld [vmem:[#allocation2 + $0x258] sm:$0xff]
      %v2411 = vld [vmem:[#allocation2 + $0x260] sm:$0xff]
      %v2412 = vld [vmem:[#allocation2 + $0x268] sm:$0xff]
      %v2413 = vld [vmem:[#allocation2 + $0x270] sm:$0xff]
      %v2414 = vld [vmem:[#allocation2 + $0x278] sm:$0xff]
      %v2415 = vld [vmem:[#allocation2 + $0x280] sm:$0xff]
      %v2416 = vld [vmem:[#allocation2 + $0x288] sm:$0xff]
      %v2417 = vld [vmem:[#allocation2 + $0x290] sm:$0xff]
      %v2418 = vld [vmem:[#allocation2 + $0x298] sm:$0xff]
      %v2419 = vld [vmem:[#allocation2 + $0x2a0] sm:$0xff]
      %v2420 = vld [vmem:[#allocation2 + $0x2a8] sm:$0xff]
      %v2421 = vld [vmem:[#allocation2 + $0x2b0] sm:$0xff]
      %v2422 = vld [vmem:[#allocation2 + $0x2b8] sm:$0xff]
      %v2423 = vld [vmem:[#allocation2 + $0x2c0] sm:$0xff]
      %v2424 = vld [vmem:[#allocation2 + $0x2c8] sm:$0xff]
      %v2425 = vld [vmem:[#allocation2 + $0x2d0] sm:$0xff]
      %v2426 = vld [vmem:[#allocation2 + $0x2d8] sm:$0xff]
      %v2427 = vld [vmem:[#allocation2 + $0x2e0] sm:$0xff]
      %v2428 = vld [vmem:[#allocation2 + $0x2e8] sm:$0xff]
      %v2429 = vld [vmem:[#allocation2 + $0x2f0] sm:$0xff]
      %v2430 = vld [vmem:[#allocation2 + $0x2f8] sm:$0xff]
      %v2431 = vld [vmem:[#allocation2 + $0x300] sm:$0xff]
      %v2432 = vld [vmem:[#allocation2 + $0x308] sm:$0xff]
      %v2433 = vld [vmem:[#allocation2 + $0x310] sm:$0xff]
      %v2434 = vld [vmem:[#allocation2 + $0x318] sm:$0xff]
      %v2435 = vld [vmem:[#allocation2 + $0x320] sm:$0xff]
      %v2436 = vld [vmem:[#allocation2 + $0x328] sm:$0xff]
      %v2437 = vld [vmem:[#allocation2 + $0x330] sm:$0xff]
      %v2438 = vld [vmem:[#allocation2 + $0x338] sm:$0xff]
      %v2439 = vld [vmem:[#allocation2 + $0x340] sm:$0xf]
      %v2440 = vld [vmem:[#allocation2 + $0x348] sm:$0xf]
      %v2441 = vld [vmem:[#allocation2 + $0x350] sm:$0xf]
      %v2442 = vld [vmem:[#allocation2 + $0x358] sm:$0xf]
      %v2443 = vld [vmem:[#allocation2 + $0x360] sm:$0xf]
      %v2444 = vld [vmem:[#allocation2 + $0x368] sm:$0xf]
      %v2445 = vld [vmem:[#allocation2 + $0x370] sm:$0xf]
      %v2446 = vld [vmem:[#allocation2 + $0x378] sm:$0xf]
      %v2447 = vld [vmem:[%s2] sm:$0xff]
      %2449 = vset.pattern.permute.xlu0 0
      %2450 = vperm.xlu0 %2449, %v2447
      %v2451 = vpop.permute.xlu0 %2450
      %v2454 = vsel %vm266, %v2334, 0
      %vm2456 = vcmask 1043456
      %v2458 = vsel %vm2456, %v2439, 0
      %v2461 = vsel %vm2456, %v2440, 0
      %v2464 = vsel %vm2456, %v2441, 0
      %v2467 = vsel %vm2456, %v2442, 0
      %v2470 = vsel %vm2456, %v2443, 0
      %v2473 = vsel %vm2456, %v2444, 0
      %v2476 = vsel %vm2456, %v2445, 0
      %v2479 = vsel %vm2456, %v2446, 0
      %2481 = vmatpush.msra.mxu0 0.0
      %2482 = vmatpush.msra.mxu0 0.0
      %2483 = vmatpush.msra.mxu0 %v2458
      %2484 = vmatpush.msra.mxu0 %v2431
      %2485 = vmatpush.msra.mxu0 %v2423
      %2486 = vmatpush.msra.mxu0 %v2415
      %2487 = vmatpush.msra.mxu0 %v2407
      %2488 = vmatpush.msra.mxu0 %v2399
      %2489 = vmatpush.msra.mxu0 %v2391
      %2490 = vmatpush.msra.mxu0 %v2383
      %2491 = vmatpush.msra.mxu0 %v2375
      %2492 = vmatpush.msra.mxu0 %v2367
      %2493 = vmatpush.msra.mxu0 %v2359
      %2494 = vmatpush.msra.mxu0 %v2351
      %2495 = vmatpush.msra.mxu0 %v2343
      %2496 = vmatpush.msra.mxu0 %v2335
      %2497 = vmatmul.f32.gmra.mxu0 %v2454
      %v2498 = vpop.f32.mrf.mxu0
      %v2499 = vadd.f32 %v2451, %v2498
      %2500 = vdwg.mxu0
      %2501 = vmatpush.msra.mxu0 0.0
      %2502 = vmatpush.msra.mxu0 0.0
      %2503 = vmatpush.msra.mxu0 %v2461
      %2504 = vmatpush.msra.mxu0 %v2432
      %2505 = vmatpush.msra.mxu0 %v2424
      %2506 = vmatpush.msra.mxu0 %v2416
      %2507 = vmatpush.msra.mxu0 %v2408
      %2508 = vmatpush.msra.mxu0 %v2400
      %2509 = vmatpush.msra.mxu0 %v2392
      %2510 = vmatpush.msra.mxu0 %v2384
      %2511 = vmatpush.msra.mxu0 %v2376
      %2512 = vmatpush.msra.mxu0 %v2368
      %2513 = vmatpush.msra.mxu0 %v2360
      %2514 = vmatpush.msra.mxu0 %v2352
      %2515 = vmatpush.msra.mxu0 %v2344
      %2516 = vmatpush.msra.mxu0 %v2336
      %2517 = vmatmul.f32.gmra.mxu0 %v2454
      %v2518 = vpop.f32.mrf.mxu0
      %v2519 = vadd.f32 %v2451, %v2518
      %2520 = vdwg.mxu0
      %2521 = vmatpush.msra.mxu0 0.0
      %2522 = vmatpush.msra.mxu0 0.0
      %2523 = vmatpush.msra.mxu0 %v2464
      %2524 = vmatpush.msra.mxu0 %v2433
      %2525 = vmatpush.msra.mxu0 %v2425
      %2526 = vmatpush.msra.mxu0 %v2417
      %2527 = vmatpush.msra.mxu0 %v2409
      %2528 = vmatpush.msra.mxu0 %v2401
      %2529 = vmatpush.msra.mxu0 %v2393
      %2530 = vmatpush.msra.mxu0 %v2385
      %2531 = vmatpush.msra.mxu0 %v2377
      %2532 = vmatpush.msra.mxu0 %v2369
      %2533 = vmatpush.msra.mxu0 %v2361
      %2534 = vmatpush.msra.mxu0 %v2353
      %2535 = vmatpush.msra.mxu0 %v2345
      %2536 = vmatpush.msra.mxu0 %v2337
      %2537 = vmatmul.f32.gmra.mxu0 %v2454
      %v2538 = vpop.f32.mrf.mxu0
      %v2539 = vadd.f32 %v2451, %v2538
      %2540 = vdwg.mxu0
      %2541 = vmatpush.msra.mxu0 0.0
      %2542 = vmatpush.msra.mxu0 0.0
      %2543 = vmatpush.msra.mxu0 %v2467
      %2544 = vmatpush.msra.mxu0 %v2434
      %2545 = vmatpush.msra.mxu0 %v2426
      %2546 = vmatpush.msra.mxu0 %v2418
      %2547 = vmatpush.msra.mxu0 %v2410
      %2548 = vmatpush.msra.mxu0 %v2402
      %2549 = vmatpush.msra.mxu0 %v2394
      %2550 = vmatpush.msra.mxu0 %v2386
      %2551 = vmatpush.msra.mxu0 %v2378
      %2552 = vmatpush.msra.mxu0 %v2370
      %2553 = vmatpush.msra.mxu0 %v2362
      %2554 = vmatpush.msra.mxu0 %v2354
      %2555 = vmatpush.msra.mxu0 %v2346
      %2556 = vmatpush.msra.mxu0 %v2338
      %2557 = vmatmul.f32.gmra.mxu0 %v2454
      %v2558 = vpop.f32.mrf.mxu0
      %v2559 = vadd.f32 %v2451, %v2558
      %2560 = vdwg.mxu0
      %2561 = vmatpush.msra.mxu0 0.0
      %2562 = vmatpush.msra.mxu0 0.0
      %2563 = vmatpush.msra.mxu0 %v2470
      %2564 = vmatpush.msra.mxu0 %v2435
      %2565 = vmatpush.msra.mxu0 %v2427
      %2566 = vmatpush.msra.mxu0 %v2419
      %2567 = vmatpush.msra.mxu0 %v2411
      %2568 = vmatpush.msra.mxu0 %v2403
      %2569 = vmatpush.msra.mxu0 %v2395
      %2570 = vmatpush.msra.mxu0 %v2387
      %2571 = vmatpush.msra.mxu0 %v2379
      %2572 = vmatpush.msra.mxu0 %v2371
      %2573 = vmatpush.msra.mxu0 %v2363
      %2574 = vmatpush.msra.mxu0 %v2355
      %2575 = vmatpush.msra.mxu0 %v2347
      %2576 = vmatpush.msra.mxu0 %v2339
      %2577 = vmatmul.f32.gmra.mxu0 %v2454
      %v2578 = vpop.f32.mrf.mxu0
      %v2579 = vadd.f32 %v2451, %v2578
      %2580 = vdwg.mxu0
      %2581 = vmatpush.msra.mxu0 0.0
      %2582 = vmatpush.msra.mxu0 0.0
      %2583 = vmatpush.msra.mxu0 %v2473
      %2584 = vmatpush.msra.mxu0 %v2436
      %2585 = vmatpush.msra.mxu0 %v2428
      %2586 = vmatpush.msra.mxu0 %v2420
      %2587 = vmatpush.msra.mxu0 %v2412
      %2588 = vmatpush.msra.mxu0 %v2404
      %2589 = vmatpush.msra.mxu0 %v2396
      %2590 = vmatpush.msra.mxu0 %v2388
      %2591 = vmatpush.msra.mxu0 %v2380
      %2592 = vmatpush.msra.mxu0 %v2372
      %2593 = vmatpush.msra.mxu0 %v2364
      %2594 = vmatpush.msra.mxu0 %v2356
      %2595 = vmatpush.msra.mxu0 %v2348
      %2596 = vmatpush.msra.mxu0 %v2340
      %2597 = vmatmul.f32.gmra.mxu0 %v2454
      %v2598 = vpop.f32.mrf.mxu0
      %v2599 = vadd.f32 %v2451, %v2598
      %2600 = vdwg.mxu0
      %2601 = vmatpush.msra.mxu0 0.0
      %2602 = vmatpush.msra.mxu0 0.0
      %2603 = vmatpush.msra.mxu0 %v2476
      %2604 = vmatpush.msra.mxu0 %v2437
      %2605 = vmatpush.msra.mxu0 %v2429
      %2606 = vmatpush.msra.mxu0 %v2421
      %2607 = vmatpush.msra.mxu0 %v2413
      %2608 = vmatpush.msra.mxu0 %v2405
      %2609 = vmatpush.msra.mxu0 %v2397
      %2610 = vmatpush.msra.mxu0 %v2389
      %2611 = vmatpush.msra.mxu0 %v2381
      %2612 = vmatpush.msra.mxu0 %v2373
      %2613 = vmatpush.msra.mxu0 %v2365
      %2614 = vmatpush.msra.mxu0 %v2357
      %2615 = vmatpush.msra.mxu0 %v2349
      %2616 = vmatpush.msra.mxu0 %v2341
      %2617 = vmatmul.f32.gmra.mxu0 %v2454
      %v2618 = vpop.f32.mrf.mxu0
      %v2619 = vadd.f32 %v2451, %v2618
      %2620 = vdwg.mxu0
      %2621 = vmatpush.msra.mxu0 0.0
      %2622 = vmatpush.msra.mxu0 0.0
      %2623 = vmatpush.msra.mxu0 %v2479
      %2624 = vmatpush.msra.mxu0 %v2438
      %2625 = vmatpush.msra.mxu0 %v2430
      %2626 = vmatpush.msra.mxu0 %v2422
      %2627 = vmatpush.msra.mxu0 %v2414
      %2628 = vmatpush.msra.mxu0 %v2406
      %2629 = vmatpush.msra.mxu0 %v2398
      %2630 = vmatpush.msra.mxu0 %v2390
      %2631 = vmatpush.msra.mxu0 %v2382
      %2632 = vmatpush.msra.mxu0 %v2374
      %2633 = vmatpush.msra.mxu0 %v2366
      %2634 = vmatpush.msra.mxu0 %v2358
      %2635 = vmatpush.msra.mxu0 %v2350
      %2636 = vmatpush.msra.mxu0 %v2342
      %2637 = vmatmul.f32.gmra.mxu0 %v2454
      %v2638 = vpop.f32.mrf.mxu0
      %v2639 = vadd.f32 %v2451, %v2638
      %2640 = vdwg.mxu0
      %v2641 = vxor.u32 %v2499, 2147483648
      %v2642 = vxor.u32 %v2519, 2147483648
      %v2643 = vxor.u32 %v2539, 2147483648
      %v2644 = vxor.u32 %v2559, 2147483648
      %v2645 = vxor.u32 %v2579, 2147483648
      %v2646 = vxor.u32 %v2599, 2147483648
      %v2647 = vxor.u32 %v2619, 2147483648
      %v2648 = vxor.u32 %v2639, 2147483648
      %v2649 = vmul.f32 %v2641, 1.442695
      %v2650 = vpow.pop %v2649
      %v2651 = vmul.f32 %v2642, 1.442695
      %v2652 = vpow.pop %v2651
      %v2653 = vmul.f32 %v2643, 1.442695
      %v2654 = vpow.pop %v2653
      %v2655 = vmul.f32 %v2644, 1.442695
      %v2656 = vpow.pop %v2655
      %v2657 = vmul.f32 %v2645, 1.442695
      %v2658 = vpow.pop %v2657
      %v2659 = vmul.f32 %v2646, 1.442695
      %v2660 = vpow.pop %v2659
      %v2661 = vmul.f32 %v2647, 1.442695
      %v2662 = vpow.pop %v2661
      %v2663 = vmul.f32 %v2648, 1.442695
      %v2664 = vpow.pop %v2663
      %v2665 = vadd.f32 %v2650, 1.0
      %v2666 = vadd.f32 %v2652, 1.0
      %v2667 = vadd.f32 %v2654, 1.0
      %v2668 = vadd.f32 %v2656, 1.0
      %v2669 = vadd.f32 %v2658, 1.0
      %v2670 = vadd.f32 %v2660, 1.0
      %v2671 = vadd.f32 %v2662, 1.0
      %v2672 = vadd.f32 %v2664, 1.0
      %v2673 = vrcp.pop %v2665
      %v2674 = vmul.f32 %v2665, %v2673
      %v2675 = vsub.f32 1.0, %v2674
      %v2676 = vmul.f32 %v2673, %v2675
      %v2677 = vadd.f32 %v2673, %v2676
      %vm2678 = vweird.f32 %v2665
      %vm2679 = vweird.f32 %v2673
      %vm2680 = vmor %vm2678, %vm2679
      %v2681 = vsel %vm2680, %v2673, %v2677
      %v2682 = vand.u32 2147483647, %v2665
      %vm2683 = vcmp.eq.f32.partialorder %v2682, 8.507059e+37
      %v2684 = vand.u32 %v2665, 2147483648
      %v2685 = vor.u32 1.1754944e-38, %v2684
      %v2686 = vsel %vm2683, %v2685, %v2681
      %v2687 = vmul.f32 1.0, %v2686
      %v2688 = vrcp.pop %v2666
      %v2689 = vmul.f32 %v2666, %v2688
      %v2690 = vsub.f32 1.0, %v2689
      %v2691 = vmul.f32 %v2688, %v2690
      %v2692 = vadd.f32 %v2688, %v2691
      %vm2693 = vweird.f32 %v2666
      %vm2694 = vweird.f32 %v2688
      %vm2695 = vmor %vm2693, %vm2694
      %v2696 = vsel %vm2695, %v2688, %v2692
      %v2697 = vand.u32 2147483647, %v2666
      %vm2698 = vcmp.eq.f32.partialorder %v2697, 8.507059e+37
      %v2699 = vand.u32 %v2666, 2147483648
      %v2700 = vor.u32 1.1754944e-38, %v2699
      %v2701 = vsel %vm2698, %v2700, %v2696
      %v2702 = vmul.f32 1.0, %v2701
      %v2703 = vrcp.pop %v2667
      %v2704 = vmul.f32 %v2667, %v2703
      %v2705 = vsub.f32 1.0, %v2704
      %v2706 = vmul.f32 %v2703, %v2705
      %v2707 = vadd.f32 %v2703, %v2706
      %vm2708 = vweird.f32 %v2667
      %vm2709 = vweird.f32 %v2703
      %vm2710 = vmor %vm2708, %vm2709
      %v2711 = vsel %vm2710, %v2703, %v2707
      %v2712 = vand.u32 2147483647, %v2667
      %vm2713 = vcmp.eq.f32.partialorder %v2712, 8.507059e+37
      %v2714 = vand.u32 %v2667, 2147483648
      %v2715 = vor.u32 1.1754944e-38, %v2714
      %v2716 = vsel %vm2713, %v2715, %v2711
      %v2717 = vmul.f32 1.0, %v2716
      %v2718 = vrcp.pop %v2668
      %v2719 = vmul.f32 %v2668, %v2718
      %v2720 = vsub.f32 1.0, %v2719
      %v2721 = vmul.f32 %v2718, %v2720
      %v2722 = vadd.f32 %v2718, %v2721
      %vm2723 = vweird.f32 %v2668
      %vm2724 = vweird.f32 %v2718
      %vm2725 = vmor %vm2723, %vm2724
      %v2726 = vsel %vm2725, %v2718, %v2722
      %v2727 = vand.u32 2147483647, %v2668
      %vm2728 = vcmp.eq.f32.partialorder %v2727, 8.507059e+37
      %v2729 = vand.u32 %v2668, 2147483648
      %v2730 = vor.u32 1.1754944e-38, %v2729
      %v2731 = vsel %vm2728, %v2730, %v2726
      %v2732 = vmul.f32 1.0, %v2731
      %v2733 = vrcp.pop %v2669
      %v2734 = vmul.f32 %v2669, %v2733
      %v2735 = vsub.f32 1.0, %v2734
      %v2736 = vmul.f32 %v2733, %v2735
      %v2737 = vadd.f32 %v2733, %v2736
      %vm2738 = vweird.f32 %v2669
      %vm2739 = vweird.f32 %v2733
      %vm2740 = vmor %vm2738, %vm2739
      %v2741 = vsel %vm2740, %v2733, %v2737
      %v2742 = vand.u32 2147483647, %v2669
      %vm2743 = vcmp.eq.f32.partialorder %v2742, 8.507059e+37
      %v2744 = vand.u32 %v2669, 2147483648
      %v2745 = vor.u32 1.1754944e-38, %v2744
      %v2746 = vsel %vm2743, %v2745, %v2741
      %v2747 = vmul.f32 1.0, %v2746
      %v2748 = vrcp.pop %v2670
      %v2749 = vmul.f32 %v2670, %v2748
      %v2750 = vsub.f32 1.0, %v2749
      %v2751 = vmul.f32 %v2748, %v2750
      %v2752 = vadd.f32 %v2748, %v2751
      %vm2753 = vweird.f32 %v2670
      %vm2754 = vweird.f32 %v2748
      %vm2755 = vmor %vm2753, %vm2754
      %v2756 = vsel %vm2755, %v2748, %v2752
      %v2757 = vand.u32 2147483647, %v2670
      %vm2758 = vcmp.eq.f32.partialorder %v2757, 8.507059e+37
      %v2759 = vand.u32 %v2670, 2147483648
      %v2760 = vor.u32 1.1754944e-38, %v2759
      %v2761 = vsel %vm2758, %v2760, %v2756
      %v2762 = vmul.f32 1.0, %v2761
      %v2763 = vrcp.pop %v2671
      %v2764 = vmul.f32 %v2671, %v2763
      %v2765 = vsub.f32 1.0, %v2764
      %v2766 = vmul.f32 %v2763, %v2765
      %v2767 = vadd.f32 %v2763, %v2766
      %vm2768 = vweird.f32 %v2671
      %vm2769 = vweird.f32 %v2763
      %vm2770 = vmor %vm2768, %vm2769
      %v2771 = vsel %vm2770, %v2763, %v2767
      %v2772 = vand.u32 2147483647, %v2671
      %vm2773 = vcmp.eq.f32.partialorder %v2772, 8.507059e+37
      %v2774 = vand.u32 %v2671, 2147483648
      %v2775 = vor.u32 1.1754944e-38, %v2774
      %v2776 = vsel %vm2773, %v2775, %v2771
      %v2777 = vmul.f32 1.0, %v2776
      %v2778 = vrcp.pop %v2672
      %v2779 = vmul.f32 %v2672, %v2778
      %v2780 = vsub.f32 1.0, %v2779
      %v2781 = vmul.f32 %v2778, %v2780
      %v2782 = vadd.f32 %v2778, %v2781
      %vm2783 = vweird.f32 %v2672
      %vm2784 = vweird.f32 %v2778
      %vm2785 = vmor %vm2783, %vm2784
      %v2786 = vsel %vm2785, %v2778, %v2782
      %v2787 = vand.u32 2147483647, %v2672
      %vm2788 = vcmp.eq.f32.partialorder %v2787, 8.507059e+37
      %v2789 = vand.u32 %v2672, 2147483648
      %v2790 = vor.u32 1.1754944e-38, %v2789
      %v2791 = vsel %vm2788, %v2790, %v2786
      %v2792 = vmul.f32 1.0, %v2791
      %v2793 = vmul.f32 %v2499, %v2687
      %v2794 = vmul.f32 %v2519, %v2702
      %v2795 = vmul.f32 %v2539, %v2717
      %v2796 = vmul.f32 %v2559, %v2732
      %v2797 = vmul.f32 %v2579, %v2747
      %v2798 = vmul.f32 %v2599, %v2762
      %v2799 = vmul.f32 %v2619, %v2777
      %v2800 = vmul.f32 %v2639, %v2792
      %2801 = vst [vmem:[%s192] sm:$0xff] %v2793
      %2802 = vst [vmem:[%s192 + $0x8] sm:$0xff] %v2794
      %2803 = vst [vmem:[%s192 + $0x10] sm:$0xff] %v2795
      %2804 = vst [vmem:[%s192 + $0x18] sm:$0xff] %v2796
      %2805 = vst [vmem:[%s192 + $0x20] sm:$0xff] %v2797
      %2806 = vst [vmem:[%s192 + $0x28] sm:$0xff] %v2798
      %2807 = vst [vmem:[%s192 + $0x30] sm:$0xff] %v2799
      %2808 = vst [vmem:[%s192 + $0x38] sm:$0xff] %v2800
      %s2809 = smul.u32 8, %s19
      %p2810 = scmp.lt.s32.totalorder %s18, 5
      %s2811 = scalar_select %p2810, %s18, 5
      %p2812 = scmp.lt.s32.totalorder %s2809, 7
      %s2813 = scalar_select %p2812, %s2809, 7
      %s2814 = smul.addr %s2811, 8
      %s2815 = sadd.s32 %s2813, %s2814
      %s2816 = smul.addr %s2815, 8
      %s2817 = scalar_lea.vmem %s3, %s2816
      // Predicated region
      $region33: #{distributed_conv3d.1} parent=31 // pred_check
        %p2818 = pneg %p114
      $region34: #{distributed_conv3d.1} parent=31 // pred_check_branch
        %2820 = sbr.rel (%p2818) target = $region36
      $region35: #{distributed_conv3d.1} parent=31 // pred_region
        %s2821 = smul.u32 8, %s19
      $region36: #{distributed_conv3d.1} parent=31 // pred_fallthru
        _
    $region32: #{distributed_conv3d.1} parent=5 // pred_fallthru
      _
    %p2822 = scmp.le.s32.totalorder 2, %s9
    // Predicated region
    $region37: #{distributed_conv3d.1} parent=5 // pred_check
      %p2823 = pneg %p2822
    $region38: #{distributed_conv3d.1} parent=5 // pred_check_branch
      %2825 = sbr.rel (%p2823) target = $region40
    $region39: #{distributed_conv3d.1} parent=5 // pred_region
      %s2826 = ssub.s32 %s9, 2
      // Predicated region
      $region41: #{distributed_conv3d.1} parent=39 // pred_check
        %p2827 = pneg %p120
      $region42: #{distributed_conv3d.1} parent=39 // pred_check_branch
        %2829 = sbr.rel (%p2827) target = $region44
      $region43: #{distributed_conv3d.1} parent=39 // pred_region
        %s2830 = smul.u32 8, %s21
        %p2831 = scmp.lt.s32.totalorder %s20, 5
        %s2832 = scalar_select %p2831, %s20, 5
        %p2833 = scmp.lt.s32.totalorder %s2830, 7
        %s2834 = scalar_select %p2833, %s2830, 7
        %s2835 = smul.addr %s2832, 8
        %s2836 = sadd.s32 %s2834, %s2835
        %s2837 = smul.addr %s2836, 8
        %s2838 = scalar_lea.vmem %s3, %s2837
      $region44: #{distributed_conv3d.1} parent=39 // pred_fallthru
        _
    $region40: #{distributed_conv3d.1} parent=5 // pred_fallthru
      _
  $region6: #{distributed_conv3d.1} parent=0 // loop_footer
    %s13 = sadd.s32 1, %s9
  $region7: #{distributed_conv3d.1} parent=0 // loop_footer_branch
    %8 = sbr.rel target = $region3
  $region8: #{distributed_conv3d.1} parent=0 // loop_exit
    _

</llo_original>
